<compile_context>
chip_gen: v7x
topology: tpu7x:2x2x1
jax: 0.10.0
libtpu: 0.0.40
codegen_flags: <defaults>
</compile_context>

<pallas_src>
import jax
import jax.numpy as jnp
from jax.experimental import pallas as pl
from jax.experimental.pallas import tpu as pltpu

# ----------------------------- config ---------------------------------------
CONFIG = dict(
    window_size=4,          # ctx
    embedding_dim=32,       # RoBERTa dim (synthetic, small)
    audio_embedding_dim=24,
    hidden_dim=8,           # H  (2H=16, 4H=32, 8H=64)
    dropout=0.1,            # identity at inference
    num_layers=1,
    bidirectional=True,
    out_dim=2,
    sum_emb_rep=False,
)
CONV_CHANNELS = 32
KERNEL_SIZE = 5


# --------------------------- fused kernel ------------------------------------
def _fused_classifier_kernel(
        # data
        i2c_lex_ref, i2c_aco_ref, xcomb_ref, mask_ref,
        # conv (im2col) weights
        wc_lex_ref, bc_lex_ref, wc_aco_ref, bc_aco_ref,
        # context LSTM (lexical || acoustic, lane-stacked)
        wih_la_lex_ref, wih_la_aco_ref, whh_la_ref, b_la_ref,
        # context attention heads
        aw_lex_ref, ab_lex_ref, aw_aco_ref, ab_aco_ref,
        # sentence-encoder LSTM (4 directions lane-stacked)
        wih_se_ref, whh_se_ref, b_se_ref,
        # txt / enc self-attention
        w1t_ref, b1t_ref, w2t_ref, b2t_ref,
        w1e_ref, b1e_ref, w2e_ref, b2e_ref,
        # heads
        wi_ref, bi_ref, wp_ref, bp_ref, wo_ref, bo_ref,
        # output
        out_ref):
    f32 = jnp.float32
    B, S = mask_ref.shape
    CTX = CONFIG["window_size"]
    H = CONFIG["hidden_dim"]
    HLA = whh_la_ref.shape[0]          # 2*H   (lex||aco stacked hidden width)
    HSE = whh_se_ref.shape[0]          # 4*2H  (4 stacked directions)
    D2 = HSE // 4                      # 2H    (per-direction hidden)

    mask = mask_ref[...]               # (B, S)

    # -------- 1. Conv1d('same') -> max over seq -> relu (im2col matmul) ------
    def conv_feat(i2c_ref, wc_ref, bc_ref):
        y = (jnp.dot(i2c_ref[...], wc_ref[...], preferred_element_type=f32)
             + bc_ref[...])                                       # (B*S, C)
        rows = [jnp.max(y[b * S:(b + 1) * S, :], axis=0, keepdims=True)
                for b in range(B)]
        return jnp.maximum(jnp.concatenate(rows, axis=0), 0.0)    # (B, C)

    feat_lex = conv_feat(i2c_lex_ref, wc_lex_ref, bc_lex_ref)
    feat_aco = conv_feat(i2c_aco_ref, wc_aco_ref, bc_aco_ref)
    # an all-zero context window: conv(0) == bias (const over seq) -> relu(bias)
    zfeat_lex = jnp.maximum(bc_lex_ref[...], 0.0)                 # (1, C)
    zfeat_aco = jnp.maximum(bc_aco_ref[...], 0.0)

    # -------- 2. context LSTM (lexical & acoustic as one 2-wide chain) -------
    # hoisted input-gate projection for [zero-window, batch0, ..., batchB-1]
    x_l = jnp.concatenate([zfeat_lex, feat_lex], axis=0)          # (1+B, C)
    x_a = jnp.concatenate([zfeat_aco, feat_aco], axis=0)
    gx_base = (jnp.dot(x_l, wih_la_lex_ref[...], preferred_element_type=f32)
               + jnp.dot(x_a, wih_la_aco_ref[...], preferred_element_type=f32)
               + b_la_ref[...])                                   # (1+B, 4*HLA)

    def ctx_input_row(r):
        # window row r of the zero-padded context sequence
        idx = 0 if r < CTX - 1 else r - (CTX - 1) + 1
        return gx_base[idx:idx + 1, :]

    whh_la = whh_la_ref[...]
    h = jnp.zeros((B, HLA), f32)
    c = jnp.zeros((B, HLA), f32)
    ctx_hist = []
    for j in range(CTX):                                          # unrolled, CTX=4
        gx_j = jnp.concatenate([ctx_input_row(j + b) for b in range(B)], axis=0)
        g = gx_j + jnp.dot(h, whh_la, preferred_element_type=f32)  # (B, 4*HLA)
        i_g = jax.nn.sigmoid(g[:, 0 * HLA:1 * HLA])
        f_g = jax.nn.sigmoid(g[:, 1 * HLA:2 * HLA])
        g_g = jnp.tanh(g[:, 2 * HLA:3 * HLA])
        o_g = jax.nn.sigmoid(g[:, 3 * HLA:4 * HLA])
        c = f_g * c + i_g * g_g
        h = o_g * jnp.tanh(c)
        ctx_hist.append(h)                                        # (B, HLA)

    def softmax_attend(score_list, value_list):
        # softmax over the list axis, then weighted sum of values
        m = score_list[0]
        for s in score_list[1:]:
            m = jnp.maximum(m, s)
        es = [jnp.exp(s - m) for s in score_list]
        denom = es[0]
        for e in es[1:]:
            denom = denom + e
        inv = pl.reciprocal(denom, approx=True)
        out = (es[0] * inv) * value_list[0]
        for e, v in zip(es[1:], value_list[1:]):
            out = out + (e * inv) * v
        return out

    def ctx_attend(lane_lo, aw_ref, ab_ref):
        aw = aw_ref[...]                                          # (1, H)
        ab = ab_ref[...]                                          # (1, 1)
        vals = [hh[:, lane_lo:lane_lo + H] for hh in ctx_hist]    # (B, H) each
        scores = [jnp.sum(v * aw, axis=-1, keepdims=True) + ab for v in vals]
        return softmax_attend(scores, vals)                       # (B, H)

    lexical_out = ctx_attend(0, aw_lex_ref, ab_lex_ref)
    acoustic_out = ctx_attend(H, aw_aco_ref, ab_aco_ref)

    # -------- 3. sentence-encoder BiLSTMs (4 directions as one 4-wide chain) -
    g_x = (jnp.dot(xcomb_ref[...], wih_se_ref[...], preferred_element_type=f32)
           + b_se_ref[...])                                       # (S*B, 4*HSE)
    whh_se = whh_se_ref[...]
    h = jnp.zeros((B, HSE), f32)
    c = jnp.zeros((B, HSE), f32)
    se_hist = []
    for t in range(S):                                            # unrolled, S=8
        g = (g_x[t * B:(t + 1) * B, :]
             + jnp.dot(h, whh_se, preferred_element_type=f32))    # (B, 4*HSE)
        i_g = jax.nn.sigmoid(g[:, 0 * HSE:1 * HSE])
        f_g = jax.nn.sigmoid(g[:, 1 * HSE:2 * HSE])
        g_g = jnp.tanh(g[:, 2 * HSE:3 * HSE])
        o_g = jax.nn.sigmoid(g[:, 3 * HSE:4 * HSE])
        c = f_g * c + i_g * g_g
        h = o_g * jnp.tanh(c)
        se_hist.append(h)                                         # (B, HSE)

    # re-assemble PyTorch bidirectional outputs per original sequence position
    outp_txt = [jnp.concatenate([se_hist[s][:, 0 * D2:1 * D2],
                                 se_hist[S - 1 - s][:, 1 * D2:2 * D2]], axis=-1)
                for s in range(S)]                                # (B, 4H) each
    outp_enc = [jnp.concatenate([se_hist[s][:, 2 * D2:3 * D2],
                                 se_hist[S - 1 - s][:, 3 * D2:4 * D2]], axis=-1)
                for s in range(S)]

    def self_attend(outp_list, w1_ref, b1_ref, w2_ref, b2_ref, masked):
        w1 = w1_ref[...]
        b1 = b1_ref[...]
        w2 = w2_ref[...]                                          # (1, 4H)
        b2 = b2_ref[...]                                          # (1, 1)
        scores = []
        for s, o in enumerate(outp_list):
            a1 = jnp.tanh(jnp.dot(o, w1, preferred_element_type=f32) + b1)
            sc = jnp.sum(a1 * w2, axis=-1, keepdims=True) + b2    # (B, 1)
            if masked:
                sc = sc + (-10000.0) * (1.0 - mask[:, s:s + 1])
            scores.append(sc)
        return softmax_attend(scores, outp_list)                  # (B, 4H)

    txt_enc = self_attend(outp_txt, w1t_ref, b1t_ref, w2t_ref, b2t_ref, True)
    enc_enc = self_attend(outp_enc, w1e_ref, b1e_ref, w2e_ref, b2e_ref, False)

    # -------- 4. heads --------------------------------------------------------
    joint = jnp.concatenate([txt_enc, enc_enc], axis=-1)          # (B, 8H)
    joint = jnp.maximum(
        jnp.dot(joint, wi_ref[...], preferred_element_type=f32) + bi_ref[...],
        0.0)
    pre = jnp.maximum(
        jnp.dot(joint, wp_ref[...], preferred_element_type=f32) + bp_ref[...],
        0.0)                                                      # (B, 2H)
    comb = jnp.concatenate([pre, lexical_out, acoustic_out], axis=-1)  # (B, 4H)
    out_ref[...] = (jnp.dot(comb, wo_ref[...], preferred_element_type=f32)
                    + bo_ref[...])


# ------------------------- wrapper / param packing ---------------------------
def _zero_index_map(ndim):
    return lambda i: (0,) * ndim


def _gate_scatter(w, h, n, idx):
    """Map a per-chain weight (din, 4*h), PyTorch gate order [i,f,g,o], into the
    lane-stacked layout (din, 4*n*h): gate-major, chain `idx` occupies its slot."""
    din = w.shape[0]
    out = jnp.zeros((din, 4 * n * h), w.dtype)
    for q in range(4):
        out = out.at[:, q * n * h + idx * h: q * n * h + (idx + 1) * h].set(
            w[:, q * h:(q + 1) * h])
    return out


def prepare_params(P):
    """Re-pack per-module parameters into the fused-kernel layout (done once)."""
    H = CONFIG["hidden_dim"]
    H2 = 2 * H
    C = CONV_CHANNELS

    lex, aco = P["lex"], P["aco"]
    dirs = [P["txt_lstm_f"], P["txt_lstm_b"], P["enc_lstm_f"], P["enc_lstm_b"]]
    wih_se = jnp.concatenate(
        [_gate_scatter(w_ih, H2, 4, d) for d, (w_ih, _, _) in enumerate(dirs)],
        axis=0)
    whh_se = jnp.concatenate(
        [_gate_scatter(w_hh, H2, 4, d) for d, (_, w_hh, _) in enumerate(dirs)],
        axis=0)
    b_se = sum(_gate_scatter(b, H2, 4, d) for d, (_, _, b) in enumerate(dirs))

    w1t, b1t, w2t, b2t = P["txt_attn"]
    w1e, b1e, w2e, b2e = P["enc_attn"]

    return dict(
        wc_lex=lex["conv_w"].reshape(-1, C), bc_lex=lex["conv_b"],
        wc_aco=aco["conv_w"].reshape(-1, C), bc_aco=aco["conv_b"],
        wih_la_lex=_gate_scatter(lex["wih"], H, 2, 0),
        wih_la_aco=_gate_scatter(aco["wih"], H, 2, 1),
        whh_la=jnp.concatenate([_gate_scatter(lex["whh"], H, 2, 0),
                                _gate_scatter(aco["whh"], H, 2, 1)], axis=0),
        b_la=_gate_scatter(lex["b"], H, 2, 0) + _gate_scatter(aco["b"], H, 2, 1),
        aw_lex=lex["attn_w"].T, ab_lex=lex["attn_b"],
        aw_aco=aco["attn_w"].T, ab_aco=aco["attn_b"],
        wih_se=wih_se, whh_se=whh_se, b_se=b_se,
        w1t=w1t, b1t=b1t, w2t=w2t.T, b2t=b2t,
        w1e=w1e, b1e=b1e, w2e=w2e.T, b2e=b2e,
        wi=P["inner_w"], bi=P["inner_b"],
        wp=P["pre_pred_w"], bp=P["pre_pred_b"],
        wo=P["pred_w"], bo=P["pred_b"],
    )


@jax.jit
def classifier_forward(text_emb, attention_mask, enc_feats, prepared):
    B, S, E = text_emb.shape
    A = enc_feats.shape[-1]
    K = KERNEL_SIZE
    pad_l = (K - 1) // 2

    def im2col(x):
        b, s, e = x.shape
        xp = jnp.pad(x, ((0, 0), (pad_l, K - 1 - pad_l), (0, 0)))
        cols = jnp.stack([xp[:, i:i + K, :].reshape(b, K * e) for i in range(s)],
                         axis=1)                                  # (b, s, K*e)
        return cols.reshape(b * s, K * e)

    i2c_lex = im2col(text_emb)                                    # (B*S, K*E)
    i2c_aco = im2col(enc_feats)                                   # (B*S, K*A)

    # inputs for the 4 stacked LSTM directions, time-major rows (row = t*B + b)
    xcomb = jnp.concatenate(
        [text_emb, text_emb[:, ::-1, :], enc_feats, enc_feats[:, ::-1, :]],
        axis=-1)                                                  # (B, S, 2E+2A)
    xcomb = jnp.transpose(xcomb, (1, 0, 2)).reshape(S * B, 2 * E + 2 * A)

    mask = attention_mask.astype(jnp.float32)                     # (B, S)

    args = (
        i2c_lex, i2c_aco, xcomb, mask,
        prepared["wc_lex"], prepared["bc_lex"],
        prepared["wc_aco"], prepared["bc_aco"],
        prepared["wih_la_lex"], prepared["wih_la_aco"],
        prepared["whh_la"], prepared["b_la"],
        prepared["aw_lex"], prepared["ab_lex"],
        prepared["aw_aco"], prepared["ab_aco"],
        prepared["wih_se"], prepared["whh_se"], prepared["b_se"],
        prepared["w1t"], prepared["b1t"], prepared["w2t"], prepared["b2t"],
        prepared["w1e"], prepared["b1e"], prepared["w2e"], prepared["b2e"],
        prepared["wi"], prepared["bi"],
        prepared["wp"], prepared["bp"],
        prepared["wo"], prepared["bo"],
    )
    in_specs = [pl.BlockSpec(a.shape, _zero_index_map(a.ndim)) for a in args]
    out_dim = CONFIG["out_dim"]

    return pl.pallas_call(
        _fused_classifier_kernel,
        out_shape=jax.ShapeDtypeStruct((B, out_dim), jnp.float32),
        grid_spec=pltpu.PrefetchScalarGridSpec(
            num_scalar_prefetch=0,
            grid=(1,),
            in_specs=in_specs,
            out_specs=pl.BlockSpec((B, out_dim), lambda i: (0, 0)),
        ),
        compiler_params=pltpu.CompilerParams(
            dimension_semantics=("arbitrary",)),
    )(*args)


# --------------------------- parameter init ----------------------------------
def _p(key, shape, scale=0.1):
    return scale * jax.random.normal(key, shape, dtype=jnp.float32)


def build_params(key):
    H = CONFIG["hidden_dim"]
    E = CONFIG["embedding_dim"]
    A = CONFIG["audio_embedding_dim"]
    C = CONV_CHANNELS
    K = KERNEL_SIZE
    H2, H4, H8 = 2 * H, 4 * H, 8 * H
    out_dim = CONFIG["out_dim"]
    keys = iter(jax.random.split(key, 64))

    def conv_lstm_branch(in_dim):
        return dict(
            conv_w=_p(next(keys), (K, in_dim, C)),
            conv_b=_p(next(keys), (1, C)),
            wih=_p(next(keys), (C, 4 * H)),
            whh=_p(next(keys), (H, 4 * H)),
            b=_p(next(keys), (1, 4 * H)),
            attn_w=_p(next(keys), (H, 1)),
            attn_b=_p(next(keys), (1, 1)),
        )

    def lstm_dir(in_dim, hid):
        return (_p(next(keys), (in_dim, 4 * hid)),
                _p(next(keys), (hid, 4 * hid)),
                _p(next(keys), (1, 4 * hid)))

    def attn_params(d):
        return (_p(next(keys), (d, d)), jnp.zeros((1, d), jnp.float32),
                _p(next(keys), (d, 1)), jnp.zeros((1, 1), jnp.float32))

    return dict(
        lex=conv_lstm_branch(E),
        aco=conv_lstm_branch(A),
        txt_lstm_f=lstm_dir(E, H2), txt_lstm_b=lstm_dir(E, H2),
        enc_lstm_f=lstm_dir(A, H2), enc_lstm_b=lstm_dir(A, H2),
        txt_attn=attn_params(H4),
        enc_attn=attn_params(H4),
        inner_w=_p(next(keys), (H8, H8)), inner_b=jnp.zeros((1, H8), jnp.float32),
        pre_pred_w=_p(next(keys), (H8, H2)), pre_pred_b=jnp.zeros((1, H2), jnp.float32),
        pred_w=_p(next(keys), (H4, out_dim)), pred_b=jnp.zeros((1, out_dim), jnp.float32),
    )


# -------------------------------- main ---------------------------------------
if __name__ == "__main__":
    key = jax.random.PRNGKey(0)
    k_par, k_txt, k_aud = jax.random.split(key, 3)

    B, S = 2, 8
    E = CONFIG["embedding_dim"]
    A = CONFIG["audio_embedding_dim"]

    # TODO(synk): synthetic stand-ins for RoBERTa word embeddings + mask.
    text_emb = jax.random.normal(k_txt, (B, S, E), dtype=jnp.float32)
    attention_mask = jnp.array([[1, 1, 1, 1, 1, 1, 1, 1],
                                [1, 1, 1, 1, 1, 0, 0, 0]], dtype=jnp.float32)
    enc_feats = jax.random.normal(k_aud, (B, S, A), dtype=jnp.float32)

    params = build_params(k_par)
    prepared = prepare_params(params)

    pred = classifier_forward(text_emb, attention_mask, enc_feats, prepared)
    pred = jax.block_until_ready(pred)
    assert pred.shape == (B, CONFIG["out_dim"])
    print("KERNEL_OK")
</pallas_src>

<mosaic_0001>
module attributes {stable_mosaic.version = 11 : i64} {
  func.func @_fused_classifier_kernel(%arg0: i32, %arg1: memref<16x160xf32, #tpu.memory_space<vmem>>, %arg2: memref<16x120xf32, #tpu.memory_space<vmem>>, %arg3: memref<16x112xf32, #tpu.memory_space<vmem>>, %arg4: memref<2x8xf32, #tpu.memory_space<vmem>>, %arg5: memref<160x32xf32, #tpu.memory_space<vmem>>, %arg6: memref<1x32xf32, #tpu.memory_space<vmem>>, %arg7: memref<120x32xf32, #tpu.memory_space<vmem>>, %arg8: memref<1x32xf32, #tpu.memory_space<vmem>>, %arg9: memref<32x64xf32, #tpu.memory_space<vmem>>, %arg10: memref<32x64xf32, #tpu.memory_space<vmem>>, %arg11: memref<16x64xf32, #tpu.memory_space<vmem>>, %arg12: memref<1x64xf32, #tpu.memory_space<vmem>>, %arg13: memref<1x8xf32, #tpu.memory_space<vmem>>, %arg14: memref<1x1xf32, #tpu.memory_space<vmem>>, %arg15: memref<1x8xf32, #tpu.memory_space<vmem>>, %arg16: memref<1x1xf32, #tpu.memory_space<vmem>>, %arg17: memref<112x256xf32, #tpu.memory_space<vmem>>, %arg18: memref<64x256xf32, #tpu.memory_space<vmem>>, %arg19: memref<1x256xf32, #tpu.memory_space<vmem>>, %arg20: memref<32x32xf32, #tpu.memory_space<vmem>>, %arg21: memref<1x32xf32, #tpu.memory_space<vmem>>, %arg22: memref<1x32xf32, #tpu.memory_space<vmem>>, %arg23: memref<1x1xf32, #tpu.memory_space<vmem>>, %arg24: memref<32x32xf32, #tpu.memory_space<vmem>>, %arg25: memref<1x32xf32, #tpu.memory_space<vmem>>, %arg26: memref<1x32xf32, #tpu.memory_space<vmem>>, %arg27: memref<1x1xf32, #tpu.memory_space<vmem>>, %arg28: memref<64x64xf32, #tpu.memory_space<vmem>>, %arg29: memref<1x64xf32, #tpu.memory_space<vmem>>, %arg30: memref<64x16xf32, #tpu.memory_space<vmem>>, %arg31: memref<1x16xf32, #tpu.memory_space<vmem>>, %arg32: memref<32x2xf32, #tpu.memory_space<vmem>>, %arg33: memref<1x2xf32, #tpu.memory_space<vmem>>, %arg34: memref<2x2xf32, #tpu.memory_space<vmem>>) attributes {dimension_semantics = [#tpu.dimension_semantics<arbitrary>], iteration_bounds = array<i64: 1>, scalar_prefetch = 0 : i64, scratch_operands = 0 : i64, tpu.core_type = #tpu.core_type<tc>, window_params = [{pipeline_mode = #tpu.pipeline_mode<synchronous>, transform_indices = @transform_0, window_bounds = array<i64: 16, 160>}, {pipeline_mode = #tpu.pipeline_mode<synchronous>, transform_indices = @transform_1, window_bounds = array<i64: 16, 120>}, {pipeline_mode = #tpu.pipeline_mode<synchronous>, transform_indices = @transform_2, window_bounds = array<i64: 16, 112>}, {pipeline_mode = #tpu.pipeline_mode<synchronous>, transform_indices = @transform_3, window_bounds = array<i64: 2, 8>}, {pipeline_mode = #tpu.pipeline_mode<synchronous>, transform_indices = @transform_4, window_bounds = array<i64: 160, 32>}, {pipeline_mode = #tpu.pipeline_mode<synchronous>, transform_indices = @transform_5, window_bounds = array<i64: 1, 32>}, {pipeline_mode = #tpu.pipeline_mode<synchronous>, transform_indices = @transform_6, window_bounds = array<i64: 120, 32>}, {pipeline_mode = #tpu.pipeline_mode<synchronous>, transform_indices = @transform_7, window_bounds = array<i64: 1, 32>}, {pipeline_mode = #tpu.pipeline_mode<synchronous>, transform_indices = @transform_8, window_bounds = array<i64: 32, 64>}, {pipeline_mode = #tpu.pipeline_mode<synchronous>, transform_indices = @transform_9, window_bounds = array<i64: 32, 64>}, {pipeline_mode = #tpu.pipeline_mode<synchronous>, transform_indices = @transform_10, window_bounds = array<i64: 16, 64>}, {pipeline_mode = #tpu.pipeline_mode<synchronous>, transform_indices = @transform_11, window_bounds = array<i64: 1, 64>}, {pipeline_mode = #tpu.pipeline_mode<synchronous>, transform_indices = @transform_12, window_bounds = array<i64: 1, 8>}, {pipeline_mode = #tpu.pipeline_mode<synchronous>, transform_indices = @transform_13, window_bounds = array<i64: 1, 1>}, {pipeline_mode = #tpu.pipeline_mode<synchronous>, transform_indices = @transform_14, window_bounds = array<i64: 1, 8>}, {pipeline_mode = #tpu.pipeline_mode<synchronous>, transform_indices = @transform_15, window_bounds = array<i64: 1, 1>}, {pipeline_mode = #tpu.pipeline_mode<synchronous>, transform_indices = @transform_16, window_bounds = array<i64: 112, 256>}, {pipeline_mode = #tpu.pipeline_mode<synchronous>, transform_indices = @transform_17, window_bounds = array<i64: 64, 256>}, {pipeline_mode = #tpu.pipeline_mode<synchronous>, transform_indices = @transform_18, window_bounds = array<i64: 1, 256>}, {pipeline_mode = #tpu.pipeline_mode<synchronous>, transform_indices = @transform_19, window_bounds = array<i64: 32, 32>}, {pipeline_mode = #tpu.pipeline_mode<synchronous>, transform_indices = @transform_20, window_bounds = array<i64: 1, 32>}, {pipeline_mode = #tpu.pipeline_mode<synchronous>, transform_indices = @transform_21, window_bounds = array<i64: 1, 32>}, {pipeline_mode = #tpu.pipeline_mode<synchronous>, transform_indices = @transform_22, window_bounds = array<i64: 1, 1>}, {pipeline_mode = #tpu.pipeline_mode<synchronous>, transform_indices = @transform_23, window_bounds = array<i64: 32, 32>}, {pipeline_mode = #tpu.pipeline_mode<synchronous>, transform_indices = @transform_24, window_bounds = array<i64: 1, 32>}, {pipeline_mode = #tpu.pipeline_mode<synchronous>, transform_indices = @transform_25, window_bounds = array<i64: 1, 32>}, {pipeline_mode = #tpu.pipeline_mode<synchronous>, transform_indices = @transform_26, window_bounds = array<i64: 1, 1>}, {pipeline_mode = #tpu.pipeline_mode<synchronous>, transform_indices = @transform_27, window_bounds = array<i64: 64, 64>}, {pipeline_mode = #tpu.pipeline_mode<synchronous>, transform_indices = @transform_28, window_bounds = array<i64: 1, 64>}, {pipeline_mode = #tpu.pipeline_mode<synchronous>, transform_indices = @transform_29, window_bounds = array<i64: 64, 16>}, {pipeline_mode = #tpu.pipeline_mode<synchronous>, transform_indices = @transform_30, window_bounds = array<i64: 1, 16>}, {pipeline_mode = #tpu.pipeline_mode<synchronous>, transform_indices = @transform_31, window_bounds = array<i64: 32, 2>}, {pipeline_mode = #tpu.pipeline_mode<synchronous>, transform_indices = @transform_32, window_bounds = array<i64: 1, 2>}, {pipeline_mode = #tpu.pipeline_mode<synchronous>, transform_indices = @transform_33, window_bounds = array<i64: 2, 2>}]} {
    %c0 = arith.constant 0 : index
    %c0_0 = arith.constant 0 : index
    %0 = vector.load %arg4[%c0, %c0_0] : memref<2x8xf32, #tpu.memory_space<vmem>>, vector<2x8xf32>
    %c0_1 = arith.constant 0 : index
    %c0_2 = arith.constant 0 : index
    %1 = vector.load %arg1[%c0_1, %c0_2] : memref<16x160xf32, #tpu.memory_space<vmem>>, vector<16x160xf32>
    %c0_3 = arith.constant 0 : index
    %c0_4 = arith.constant 0 : index
    %2 = vector.load %arg5[%c0_3, %c0_4] : memref<160x32xf32, #tpu.memory_space<vmem>>, vector<160x32xf32>
    %cst = arith.constant dense<0.000000e+00> : vector<16x32xf32>
    %3 = tpu.matmul %1, %2, %cst {dimension_numbers = #tpu.dot_dimension_numbers<[1], [0], [0], [1], [0, 0, 1, 1], [], []>} : vector<16x160xf32>, vector<160x32xf32>, vector<16x32xf32> -> vector<16x32xf32>
    %c0_5 = arith.constant 0 : index
    %c0_6 = arith.constant 0 : index
    %4 = vector.load %arg6[%c0_5, %c0_6] : memref<1x32xf32, #tpu.memory_space<vmem>>, vector<1x32xf32>
    %5 = vector.broadcast %4 : vector<1x32xf32> to vector<16x32xf32>
    %6 = arith.addf %3, %5 : vector<16x32xf32>
    %7 = vector.extract_strided_slice %6 {offsets = [0, 0], sizes = [8, 32], strides = [1, 1]} : vector<16x32xf32> to vector<8x32xf32>
    %cst_7 = arith.constant dense<0xFF800000> : vector<32xf32>
    %8 = vector.multi_reduction <maximumf>, %7, %cst_7 [0] : vector<8x32xf32> to vector<32xf32>
    %9 = vector.shape_cast %8 : vector<32xf32> to vector<1x32xf32>
    %10 = vector.extract_strided_slice %6 {offsets = [8, 0], sizes = [8, 32], strides = [1, 1]} : vector<16x32xf32> to vector<8x32xf32>
    %cst_8 = arith.constant dense<0xFF800000> : vector<32xf32>
    %11 = vector.multi_reduction <maximumf>, %10, %cst_8 [0] : vector<8x32xf32> to vector<32xf32>
    %12 = vector.shape_cast %11 : vector<32xf32> to vector<1x32xf32>
    %13 = tpu.concatenate %9, %12 in 0 : vector<1x32xf32>, vector<1x32xf32> -> vector<2x32xf32>
    %cst_9 = arith.constant 0.000000e+00 : f32
    %14 = vector.broadcast %cst_9 : f32 to vector<2x32xf32>
    %15 = arith.maximumf %13, %14 : vector<2x32xf32>
    %c0_10 = arith.constant 0 : index
    %c0_11 = arith.constant 0 : index
    %16 = vector.load %arg2[%c0_10, %c0_11] : memref<16x120xf32, #tpu.memory_space<vmem>>, vector<16x120xf32>
    %c0_12 = arith.constant 0 : index
    %c0_13 = arith.constant 0 : index
    %17 = vector.load %arg7[%c0_12, %c0_13] : memref<120x32xf32, #tpu.memory_space<vmem>>, vector<120x32xf32>
    %cst_14 = arith.constant dense<0.000000e+00> : vector<16x32xf32>
    %18 = tpu.matmul %16, %17, %cst_14 {dimension_numbers = #tpu.dot_dimension_numbers<[1], [0], [0], [1], [0, 0, 1, 1], [], []>} : vector<16x120xf32>, vector<120x32xf32>, vector<16x32xf32> -> vector<16x32xf32>
    %c0_15 = arith.constant 0 : index
    %c0_16 = arith.constant 0 : index
    %19 = vector.load %arg8[%c0_15, %c0_16] : memref<1x32xf32, #tpu.memory_space<vmem>>, vector<1x32xf32>
    %20 = vector.broadcast %19 : vector<1x32xf32> to vector<16x32xf32>
    %21 = arith.addf %18, %20 : vector<16x32xf32>
    %22 = vector.extract_strided_slice %21 {offsets = [0, 0], sizes = [8, 32], strides = [1, 1]} : vector<16x32xf32> to vector<8x32xf32>
    %cst_17 = arith.constant dense<0xFF800000> : vector<32xf32>
    %23 = vector.multi_reduction <maximumf>, %22, %cst_17 [0] : vector<8x32xf32> to vector<32xf32>
    %24 = vector.shape_cast %23 : vector<32xf32> to vector<1x32xf32>
    %25 = vector.extract_strided_slice %21 {offsets = [8, 0], sizes = [8, 32], strides = [1, 1]} : vector<16x32xf32> to vector<8x32xf32>
    %cst_18 = arith.constant dense<0xFF800000> : vector<32xf32>
    %26 = vector.multi_reduction <maximumf>, %25, %cst_18 [0] : vector<8x32xf32> to vector<32xf32>
    %27 = vector.shape_cast %26 : vector<32xf32> to vector<1x32xf32>
    %28 = tpu.concatenate %24, %27 in 0 : vector<1x32xf32>, vector<1x32xf32> -> vector<2x32xf32>
    %cst_19 = arith.constant 0.000000e+00 : f32
    %29 = vector.broadcast %cst_19 : f32 to vector<2x32xf32>
    %30 = arith.maximumf %28, %29 : vector<2x32xf32>
    %c0_20 = arith.constant 0 : index
    %c0_21 = arith.constant 0 : index
    %31 = vector.load %arg6[%c0_20, %c0_21] : memref<1x32xf32, #tpu.memory_space<vmem>>, vector<1x32xf32>
    %cst_22 = arith.constant 0.000000e+00 : f32
    %32 = vector.broadcast %cst_22 : f32 to vector<1x32xf32>
    %33 = arith.maximumf %31, %32 : vector<1x32xf32>
    %c0_23 = arith.constant 0 : index
    %c0_24 = arith.constant 0 : index
    %34 = vector.load %arg8[%c0_23, %c0_24] : memref<1x32xf32, #tpu.memory_space<vmem>>, vector<1x32xf32>
    %cst_25 = arith.constant 0.000000e+00 : f32
    %35 = vector.broadcast %cst_25 : f32 to vector<1x32xf32>
    %36 = arith.maximumf %34, %35 : vector<1x32xf32>
    %37 = tpu.concatenate %33, %15 in 0 : vector<1x32xf32>, vector<2x32xf32> -> vector<3x32xf32>
    %38 = tpu.concatenate %36, %30 in 0 : vector<1x32xf32>, vector<2x32xf32> -> vector<3x32xf32>
    %c0_26 = arith.constant 0 : index
    %c0_27 = arith.constant 0 : index
    %39 = vector.load %arg9[%c0_26, %c0_27] : memref<32x64xf32, #tpu.memory_space<vmem>>, vector<32x64xf32>
    %cst_28 = arith.constant dense<0.000000e+00> : vector<3x64xf32>
    %40 = tpu.matmul %37, %39, %cst_28 {dimension_numbers = #tpu.dot_dimension_numbers<[1], [0], [0], [1], [0, 0, 1, 1], [], []>} : vector<3x32xf32>, vector<32x64xf32>, vector<3x64xf32> -> vector<3x64xf32>
    %c0_29 = arith.constant 0 : index
    %c0_30 = arith.constant 0 : index
    %41 = vector.load %arg10[%c0_29, %c0_30] : memref<32x64xf32, #tpu.memory_space<vmem>>, vector<32x64xf32>
    %cst_31 = arith.constant dense<0.000000e+00> : vector<3x64xf32>
    %42 = tpu.matmul %38, %41, %cst_31 {dimension_numbers = #tpu.dot_dimension_numbers<[1], [0], [0], [1], [0, 0, 1, 1], [], []>} : vector<3x32xf32>, vector<32x64xf32>, vector<3x64xf32> -> vector<3x64xf32>
    %43 = arith.addf %40, %42 : vector<3x64xf32>
    %c0_32 = arith.constant 0 : index
    %c0_33 = arith.constant 0 : index
    %44 = vector.load %arg12[%c0_32, %c0_33] : memref<1x64xf32, #tpu.memory_space<vmem>>, vector<1x64xf32>
    %45 = vector.broadcast %44 : vector<1x64xf32> to vector<3x64xf32>
    %46 = arith.addf %43, %45 : vector<3x64xf32>
    %c0_34 = arith.constant 0 : index
    %c0_35 = arith.constant 0 : index
    %47 = vector.load %arg11[%c0_34, %c0_35] : memref<16x64xf32, #tpu.memory_space<vmem>>, vector<16x64xf32>
    %cst_36 = arith.constant 0.000000e+00 : f32
    %48 = vector.broadcast %cst_36 : f32 to vector<2x16xf32>
    %cst_37 = arith.constant 0.000000e+00 : f32
    %49 = vector.broadcast %cst_37 : f32 to vector<2x16xf32>
    %50 = vector.extract_strided_slice %46 {offsets = [0, 0], sizes = [1, 64], strides = [1, 1]} : vector<3x64xf32> to vector<1x64xf32>
    %51 = vector.extract_strided_slice %46 {offsets = [0, 0], sizes = [1, 64], strides = [1, 1]} : vector<3x64xf32> to vector<1x64xf32>
    %52 = tpu.concatenate %50, %51 in 0 : vector<1x64xf32>, vector<1x64xf32> -> vector<2x64xf32>
    %cst_38 = arith.constant dense<0.000000e+00> : vector<2x64xf32>
    %53 = tpu.matmul %48, %47, %cst_38 {dimension_numbers = #tpu.dot_dimension_numbers<[1], [0], [0], [1], [0, 0, 1, 1], [], []>} : vector<2x16xf32>, vector<16x64xf32>, vector<2x64xf32> -> vector<2x64xf32>
    %54 = arith.addf %52, %53 : vector<2x64xf32>
    %55 = vector.extract_strided_slice %54 {offsets = [0, 0], sizes = [2, 16], strides = [1, 1]} : vector<2x64xf32> to vector<2x16xf32>
    %56 = arith.negf %55 : vector<2x16xf32>
    %57 = math.exp %56 : vector<2x16xf32>
    %cst_39 = arith.constant 1.000000e+00 : f32
    %58 = vector.broadcast %cst_39 : f32 to vector<2x16xf32>
    %59 = arith.addf %58, %57 : vector<2x16xf32>
    %60 = arith.divf %58, %59 : vector<2x16xf32>
    %61 = vector.extract_strided_slice %54 {offsets = [0, 16], sizes = [2, 16], strides = [1, 1]} : vector<2x64xf32> to vector<2x16xf32>
    %62 = arith.negf %61 : vector<2x16xf32>
    %63 = math.exp %62 : vector<2x16xf32>
    %cst_40 = arith.constant 1.000000e+00 : f32
    %64 = vector.broadcast %cst_40 : f32 to vector<2x16xf32>
    %65 = arith.addf %64, %63 : vector<2x16xf32>
    %66 = arith.divf %64, %65 : vector<2x16xf32>
    %67 = vector.extract_strided_slice %54 {offsets = [0, 32], sizes = [2, 16], strides = [1, 1]} : vector<2x64xf32> to vector<2x16xf32>
    %68 = math.tanh %67 : vector<2x16xf32>
    %69 = vector.extract_strided_slice %54 {offsets = [0, 48], sizes = [2, 16], strides = [1, 1]} : vector<2x64xf32> to vector<2x16xf32>
    %70 = arith.negf %69 : vector<2x16xf32>
    %71 = math.exp %70 : vector<2x16xf32>
    %cst_41 = arith.constant 1.000000e+00 : f32
    %72 = vector.broadcast %cst_41 : f32 to vector<2x16xf32>
    %73 = arith.addf %72, %71 : vector<2x16xf32>
    %74 = arith.divf %72, %73 : vector<2x16xf32>
    %75 = arith.mulf %66, %49 : vector<2x16xf32>
    %76 = arith.mulf %60, %68 : vector<2x16xf32>
    %77 = arith.addf %75, %76 : vector<2x16xf32>
    %78 = math.tanh %77 : vector<2x16xf32>
    %79 = arith.mulf %74, %78 : vector<2x16xf32>
    %80 = vector.extract_strided_slice %46 {offsets = [0, 0], sizes = [1, 64], strides = [1, 1]} : vector<3x64xf32> to vector<1x64xf32>
    %81 = vector.extract_strided_slice %46 {offsets = [0, 0], sizes = [1, 64], strides = [1, 1]} : vector<3x64xf32> to vector<1x64xf32>
    %82 = tpu.concatenate %80, %81 in 0 : vector<1x64xf32>, vector<1x64xf32> -> vector<2x64xf32>
    %cst_42 = arith.constant dense<0.000000e+00> : vector<2x64xf32>
    %83 = tpu.matmul %79, %47, %cst_42 {dimension_numbers = #tpu.dot_dimension_numbers<[1], [0], [0], [1], [0, 0, 1, 1], [], []>} : vector<2x16xf32>, vector<16x64xf32>, vector<2x64xf32> -> vector<2x64xf32>
    %84 = arith.addf %82, %83 : vector<2x64xf32>
    %85 = vector.extract_strided_slice %84 {offsets = [0, 0], sizes = [2, 16], strides = [1, 1]} : vector<2x64xf32> to vector<2x16xf32>
    %86 = arith.negf %85 : vector<2x16xf32>
    %87 = math.exp %86 : vector<2x16xf32>
    %cst_43 = arith.constant 1.000000e+00 : f32
    %88 = vector.broadcast %cst_43 : f32 to vector<2x16xf32>
    %89 = arith.addf %88, %87 : vector<2x16xf32>
    %90 = arith.divf %88, %89 : vector<2x16xf32>
    %91 = vector.extract_strided_slice %84 {offsets = [0, 16], sizes = [2, 16], strides = [1, 1]} : vector<2x64xf32> to vector<2x16xf32>
    %92 = arith.negf %91 : vector<2x16xf32>
    %93 = math.exp %92 : vector<2x16xf32>
    %cst_44 = arith.constant 1.000000e+00 : f32
    %94 = vector.broadcast %cst_44 : f32 to vector<2x16xf32>
    %95 = arith.addf %94, %93 : vector<2x16xf32>
    %96 = arith.divf %94, %95 : vector<2x16xf32>
    %97 = vector.extract_strided_slice %84 {offsets = [0, 32], sizes = [2, 16], strides = [1, 1]} : vector<2x64xf32> to vector<2x16xf32>
    %98 = math.tanh %97 : vector<2x16xf32>
    %99 = vector.extract_strided_slice %84 {offsets = [0, 48], sizes = [2, 16], strides = [1, 1]} : vector<2x64xf32> to vector<2x16xf32>
    %100 = arith.negf %99 : vector<2x16xf32>
    %101 = math.exp %100 : vector<2x16xf32>
    %cst_45 = arith.constant 1.000000e+00 : f32
    %102 = vector.broadcast %cst_45 : f32 to vector<2x16xf32>
    %103 = arith.addf %102, %101 : vector<2x16xf32>
    %104 = arith.divf %102, %103 : vector<2x16xf32>
    %105 = arith.mulf %96, %77 : vector<2x16xf32>
    %106 = arith.mulf %90, %98 : vector<2x16xf32>
    %107 = arith.addf %105, %106 : vector<2x16xf32>
    %108 = math.tanh %107 : vector<2x16xf32>
    %109 = arith.mulf %104, %108 : vector<2x16xf32>
    %110 = vector.extract_strided_slice %46 {offsets = [0, 0], sizes = [1, 64], strides = [1, 1]} : vector<3x64xf32> to vector<1x64xf32>
    %111 = vector.extract_strided_slice %46 {offsets = [1, 0], sizes = [1, 64], strides = [1, 1]} : vector<3x64xf32> to vector<1x64xf32>
    %112 = tpu.concatenate %110, %111 in 0 : vector<1x64xf32>, vector<1x64xf32> -> vector<2x64xf32>
    %cst_46 = arith.constant dense<0.000000e+00> : vector<2x64xf32>
    %113 = tpu.matmul %109, %47, %cst_46 {dimension_numbers = #tpu.dot_dimension_numbers<[1], [0], [0], [1], [0, 0, 1, 1], [], []>} : vector<2x16xf32>, vector<16x64xf32>, vector<2x64xf32> -> vector<2x64xf32>
    %114 = arith.addf %112, %113 : vector<2x64xf32>
    %115 = vector.extract_strided_slice %114 {offsets = [0, 0], sizes = [2, 16], strides = [1, 1]} : vector<2x64xf32> to vector<2x16xf32>
    %116 = arith.negf %115 : vector<2x16xf32>
    %117 = math.exp %116 : vector<2x16xf32>
    %cst_47 = arith.constant 1.000000e+00 : f32
    %118 = vector.broadcast %cst_47 : f32 to vector<2x16xf32>
    %119 = arith.addf %118, %117 : vector<2x16xf32>
    %120 = arith.divf %118, %119 : vector<2x16xf32>
    %121 = vector.extract_strided_slice %114 {offsets = [0, 16], sizes = [2, 16], strides = [1, 1]} : vector<2x64xf32> to vector<2x16xf32>
    %122 = arith.negf %121 : vector<2x16xf32>
    %123 = math.exp %122 : vector<2x16xf32>
    %cst_48 = arith.constant 1.000000e+00 : f32
    %124 = vector.broadcast %cst_48 : f32 to vector<2x16xf32>
    %125 = arith.addf %124, %123 : vector<2x16xf32>
    %126 = arith.divf %124, %125 : vector<2x16xf32>
    %127 = vector.extract_strided_slice %114 {offsets = [0, 32], sizes = [2, 16], strides = [1, 1]} : vector<2x64xf32> to vector<2x16xf32>
    %128 = math.tanh %127 : vector<2x16xf32>
    %129 = vector.extract_strided_slice %114 {offsets = [0, 48], sizes = [2, 16], strides = [1, 1]} : vector<2x64xf32> to vector<2x16xf32>
    %130 = arith.negf %129 : vector<2x16xf32>
    %131 = math.exp %130 : vector<2x16xf32>
    %cst_49 = arith.constant 1.000000e+00 : f32
    %132 = vector.broadcast %cst_49 : f32 to vector<2x16xf32>
    %133 = arith.addf %132, %131 : vector<2x16xf32>
    %134 = arith.divf %132, %133 : vector<2x16xf32>
    %135 = arith.mulf %126, %107 : vector<2x16xf32>
    %136 = arith.mulf %120, %128 : vector<2x16xf32>
    %137 = arith.addf %135, %136 : vector<2x16xf32>
    %138 = math.tanh %137 : vector<2x16xf32>
    %139 = arith.mulf %134, %138 : vector<2x16xf32>
    %140 = vector.extract_strided_slice %46 {offsets = [1, 0], sizes = [1, 64], strides = [1, 1]} : vector<3x64xf32> to vector<1x64xf32>
    %141 = vector.extract_strided_slice %46 {offsets = [2, 0], sizes = [1, 64], strides = [1, 1]} : vector<3x64xf32> to vector<1x64xf32>
    %142 = tpu.concatenate %140, %141 in 0 : vector<1x64xf32>, vector<1x64xf32> -> vector<2x64xf32>
    %cst_50 = arith.constant dense<0.000000e+00> : vector<2x64xf32>
    %143 = tpu.matmul %139, %47, %cst_50 {dimension_numbers = #tpu.dot_dimension_numbers<[1], [0], [0], [1], [0, 0, 1, 1], [], []>} : vector<2x16xf32>, vector<16x64xf32>, vector<2x64xf32> -> vector<2x64xf32>
    %144 = arith.addf %142, %143 : vector<2x64xf32>
    %145 = vector.extract_strided_slice %144 {offsets = [0, 0], sizes = [2, 16], strides = [1, 1]} : vector<2x64xf32> to vector<2x16xf32>
    %146 = arith.negf %145 : vector<2x16xf32>
    %147 = math.exp %146 : vector<2x16xf32>
    %cst_51 = arith.constant 1.000000e+00 : f32
    %148 = vector.broadcast %cst_51 : f32 to vector<2x16xf32>
    %149 = arith.addf %148, %147 : vector<2x16xf32>
    %150 = arith.divf %148, %149 : vector<2x16xf32>
    %151 = vector.extract_strided_slice %144 {offsets = [0, 16], sizes = [2, 16], strides = [1, 1]} : vector<2x64xf32> to vector<2x16xf32>
    %152 = arith.negf %151 : vector<2x16xf32>
    %153 = math.exp %152 : vector<2x16xf32>
    %cst_52 = arith.constant 1.000000e+00 : f32
    %154 = vector.broadcast %cst_52 : f32 to vector<2x16xf32>
    %155 = arith.addf %154, %153 : vector<2x16xf32>
    %156 = arith.divf %154, %155 : vector<2x16xf32>
    %157 = vector.extract_strided_slice %144 {offsets = [0, 32], sizes = [2, 16], strides = [1, 1]} : vector<2x64xf32> to vector<2x16xf32>
    %158 = math.tanh %157 : vector<2x16xf32>
    %159 = vector.extract_strided_slice %144 {offsets = [0, 48], sizes = [2, 16], strides = [1, 1]} : vector<2x64xf32> to vector<2x16xf32>
    %160 = arith.negf %159 : vector<2x16xf32>
    %161 = math.exp %160 : vector<2x16xf32>
    %cst_53 = arith.constant 1.000000e+00 : f32
    %162 = vector.broadcast %cst_53 : f32 to vector<2x16xf32>
    %163 = arith.addf %162, %161 : vector<2x16xf32>
    %164 = arith.divf %162, %163 : vector<2x16xf32>
    %165 = arith.mulf %156, %137 : vector<2x16xf32>
    %166 = arith.mulf %150, %158 : vector<2x16xf32>
    %167 = arith.addf %165, %166 : vector<2x16xf32>
    %168 = math.tanh %167 : vector<2x16xf32>
    %169 = arith.mulf %164, %168 : vector<2x16xf32>
    %c0_54 = arith.constant 0 : index
    %c0_55 = arith.constant 0 : index
    %170 = vector.load %arg13[%c0_54, %c0_55] : memref<1x8xf32, #tpu.memory_space<vmem>>, vector<1x8xf32>
    %c0_56 = arith.constant 0 : index
    %c0_57 = arith.constant 0 : index
    %171 = vector.load %arg14[%c0_56, %c0_57] : memref<1x1xf32, #tpu.memory_space<vmem>>, vector<1x1xf32>
    %172 = vector.extract_strided_slice %79 {offsets = [0, 0], sizes = [2, 8], strides = [1, 1]} : vector<2x16xf32> to vector<2x8xf32>
    %173 = vector.extract_strided_slice %109 {offsets = [0, 0], sizes = [2, 8], strides = [1, 1]} : vector<2x16xf32> to vector<2x8xf32>
    %174 = vector.extract_strided_slice %139 {offsets = [0, 0], sizes = [2, 8], strides = [1, 1]} : vector<2x16xf32> to vector<2x8xf32>
    %175 = vector.extract_strided_slice %169 {offsets = [0, 0], sizes = [2, 8], strides = [1, 1]} : vector<2x16xf32> to vector<2x8xf32>
    %176 = vector.broadcast %170 : vector<1x8xf32> to vector<2x8xf32>
    %177 = arith.mulf %172, %176 : vector<2x8xf32>
    %cst_58 = arith.constant dense<0.000000e+00> : vector<2xf32>
    %178 = vector.multi_reduction <add>, %177, %cst_58 [1] : vector<2x8xf32> to vector<2xf32>
    %179 = vector.shape_cast %178 : vector<2xf32> to vector<2x1xf32>
    %180 = vector.broadcast %171 : vector<1x1xf32> to vector<2x1xf32>
    %181 = arith.addf %179, %180 : vector<2x1xf32>
    %182 = vector.broadcast %170 : vector<1x8xf32> to vector<2x8xf32>
    %183 = arith.mulf %173, %182 : vector<2x8xf32>
    %cst_59 = arith.constant dense<0.000000e+00> : vector<2xf32>
    %184 = vector.multi_reduction <add>, %183, %cst_59 [1] : vector<2x8xf32> to vector<2xf32>
    %185 = vector.shape_cast %184 : vector<2xf32> to vector<2x1xf32>
    %186 = vector.broadcast %171 : vector<1x1xf32> to vector<2x1xf32>
    %187 = arith.addf %185, %186 : vector<2x1xf32>
    %188 = vector.broadcast %170 : vector<1x8xf32> to vector<2x8xf32>
    %189 = arith.mulf %174, %188 : vector<2x8xf32>
    %cst_60 = arith.constant dense<0.000000e+00> : vector<2xf32>
    %190 = vector.multi_reduction <add>, %189, %cst_60 [1] : vector<2x8xf32> to vector<2xf32>
    %191 = vector.shape_cast %190 : vector<2xf32> to vector<2x1xf32>
    %192 = vector.broadcast %171 : vector<1x1xf32> to vector<2x1xf32>
    %193 = arith.addf %191, %192 : vector<2x1xf32>
    %194 = vector.broadcast %170 : vector<1x8xf32> to vector<2x8xf32>
    %195 = arith.mulf %175, %194 : vector<2x8xf32>
    %cst_61 = arith.constant dense<0.000000e+00> : vector<2xf32>
    %196 = vector.multi_reduction <add>, %195, %cst_61 [1] : vector<2x8xf32> to vector<2xf32>
    %197 = vector.shape_cast %196 : vector<2xf32> to vector<2x1xf32>
    %198 = vector.broadcast %171 : vector<1x1xf32> to vector<2x1xf32>
    %199 = arith.addf %197, %198 : vector<2x1xf32>
    %200 = arith.maximumf %181, %187 : vector<2x1xf32>
    %201 = arith.maximumf %200, %193 : vector<2x1xf32>
    %202 = arith.maximumf %201, %199 : vector<2x1xf32>
    %203 = arith.subf %181, %202 : vector<2x1xf32>
    %204 = math.exp %203 : vector<2x1xf32>
    %205 = arith.subf %187, %202 : vector<2x1xf32>
    %206 = math.exp %205 : vector<2x1xf32>
    %207 = arith.subf %193, %202 : vector<2x1xf32>
    %208 = math.exp %207 : vector<2x1xf32>
    %209 = arith.subf %199, %202 : vector<2x1xf32>
    %210 = math.exp %209 : vector<2x1xf32>
    %211 = arith.addf %204, %206 : vector<2x1xf32>
    %212 = arith.addf %211, %208 : vector<2x1xf32>
    %213 = arith.addf %212, %210 : vector<2x1xf32>
    %214 = tpu.reciprocal %213 {approx = true} : vector<2x1xf32> -> vector<2x1xf32>
    %215 = arith.mulf %204, %214 : vector<2x1xf32>
    %216 = vector.broadcast %215 : vector<2x1xf32> to vector<2x8xf32>
    %217 = arith.mulf %216, %172 : vector<2x8xf32>
    %218 = arith.mulf %206, %214 : vector<2x1xf32>
    %219 = vector.broadcast %218 : vector<2x1xf32> to vector<2x8xf32>
    %220 = arith.mulf %219, %173 : vector<2x8xf32>
    %221 = arith.addf %217, %220 : vector<2x8xf32>
    %222 = arith.mulf %208, %214 : vector<2x1xf32>
    %223 = vector.broadcast %222 : vector<2x1xf32> to vector<2x8xf32>
    %224 = arith.mulf %223, %174 : vector<2x8xf32>
    %225 = arith.addf %221, %224 : vector<2x8xf32>
    %226 = arith.mulf %210, %214 : vector<2x1xf32>
    %227 = vector.broadcast %226 : vector<2x1xf32> to vector<2x8xf32>
    %228 = arith.mulf %227, %175 : vector<2x8xf32>
    %229 = arith.addf %225, %228 : vector<2x8xf32>
    %c0_62 = arith.constant 0 : index
    %c0_63 = arith.constant 0 : index
    %230 = vector.load %arg15[%c0_62, %c0_63] : memref<1x8xf32, #tpu.memory_space<vmem>>, vector<1x8xf32>
    %c0_64 = arith.constant 0 : index
    %c0_65 = arith.constant 0 : index
    %231 = vector.load %arg16[%c0_64, %c0_65] : memref<1x1xf32, #tpu.memory_space<vmem>>, vector<1x1xf32>
    %232 = vector.extract_strided_slice %79 {offsets = [0, 8], sizes = [2, 8], strides = [1, 1]} : vector<2x16xf32> to vector<2x8xf32>
    %233 = vector.extract_strided_slice %109 {offsets = [0, 8], sizes = [2, 8], strides = [1, 1]} : vector<2x16xf32> to vector<2x8xf32>
    %234 = vector.extract_strided_slice %139 {offsets = [0, 8], sizes = [2, 8], strides = [1, 1]} : vector<2x16xf32> to vector<2x8xf32>
    %235 = vector.extract_strided_slice %169 {offsets = [0, 8], sizes = [2, 8], strides = [1, 1]} : vector<2x16xf32> to vector<2x8xf32>
    %236 = vector.broadcast %230 : vector<1x8xf32> to vector<2x8xf32>
    %237 = arith.mulf %232, %236 : vector<2x8xf32>
    %cst_66 = arith.constant dense<0.000000e+00> : vector<2xf32>
    %238 = vector.multi_reduction <add>, %237, %cst_66 [1] : vector<2x8xf32> to vector<2xf32>
    %239 = vector.shape_cast %238 : vector<2xf32> to vector<2x1xf32>
    %240 = vector.broadcast %231 : vector<1x1xf32> to vector<2x1xf32>
    %241 = arith.addf %239, %240 : vector<2x1xf32>
    %242 = vector.broadcast %230 : vector<1x8xf32> to vector<2x8xf32>
    %243 = arith.mulf %233, %242 : vector<2x8xf32>
    %cst_67 = arith.constant dense<0.000000e+00> : vector<2xf32>
    %244 = vector.multi_reduction <add>, %243, %cst_67 [1] : vector<2x8xf32> to vector<2xf32>
    %245 = vector.shape_cast %244 : vector<2xf32> to vector<2x1xf32>
    %246 = vector.broadcast %231 : vector<1x1xf32> to vector<2x1xf32>
    %247 = arith.addf %245, %246 : vector<2x1xf32>
    %248 = vector.broadcast %230 : vector<1x8xf32> to vector<2x8xf32>
    %249 = arith.mulf %234, %248 : vector<2x8xf32>
    %cst_68 = arith.constant dense<0.000000e+00> : vector<2xf32>
    %250 = vector.multi_reduction <add>, %249, %cst_68 [1] : vector<2x8xf32> to vector<2xf32>
    %251 = vector.shape_cast %250 : vector<2xf32> to vector<2x1xf32>
    %252 = vector.broadcast %231 : vector<1x1xf32> to vector<2x1xf32>
    %253 = arith.addf %251, %252 : vector<2x1xf32>
    %254 = vector.broadcast %230 : vector<1x8xf32> to vector<2x8xf32>
    %255 = arith.mulf %235, %254 : vector<2x8xf32>
    %cst_69 = arith.constant dense<0.000000e+00> : vector<2xf32>
    %256 = vector.multi_reduction <add>, %255, %cst_69 [1] : vector<2x8xf32> to vector<2xf32>
    %257 = vector.shape_cast %256 : vector<2xf32> to vector<2x1xf32>
    %258 = vector.broadcast %231 : vector<1x1xf32> to vector<2x1xf32>
    %259 = arith.addf %257, %258 : vector<2x1xf32>
    %260 = arith.maximumf %241, %247 : vector<2x1xf32>
    %261 = arith.maximumf %260, %253 : vector<2x1xf32>
    %262 = arith.maximumf %261, %259 : vector<2x1xf32>
    %263 = arith.subf %241, %262 : vector<2x1xf32>
    %264 = math.exp %263 : vector<2x1xf32>
    %265 = arith.subf %247, %262 : vector<2x1xf32>
    %266 = math.exp %265 : vector<2x1xf32>
    %267 = arith.subf %253, %262 : vector<2x1xf32>
    %268 = math.exp %267 : vector<2x1xf32>
    %269 = arith.subf %259, %262 : vector<2x1xf32>
    %270 = math.exp %269 : vector<2x1xf32>
    %271 = arith.addf %264, %266 : vector<2x1xf32>
    %272 = arith.addf %271, %268 : vector<2x1xf32>
    %273 = arith.addf %272, %270 : vector<2x1xf32>
    %274 = tpu.reciprocal %273 {approx = true} : vector<2x1xf32> -> vector<2x1xf32>
    %275 = arith.mulf %264, %274 : vector<2x1xf32>
    %276 = vector.broadcast %275 : vector<2x1xf32> to vector<2x8xf32>
    %277 = arith.mulf %276, %232 : vector<2x8xf32>
    %278 = arith.mulf %266, %274 : vector<2x1xf32>
    %279 = vector.broadcast %278 : vector<2x1xf32> to vector<2x8xf32>
    %280 = arith.mulf %279, %233 : vector<2x8xf32>
    %281 = arith.addf %277, %280 : vector<2x8xf32>
    %282 = arith.mulf %268, %274 : vector<2x1xf32>
    %283 = vector.broadcast %282 : vector<2x1xf32> to vector<2x8xf32>
    %284 = arith.mulf %283, %234 : vector<2x8xf32>
    %285 = arith.addf %281, %284 : vector<2x8xf32>
    %286 = arith.mulf %270, %274 : vector<2x1xf32>
    %287 = vector.broadcast %286 : vector<2x1xf32> to vector<2x8xf32>
    %288 = arith.mulf %287, %235 : vector<2x8xf32>
    %289 = arith.addf %285, %288 : vector<2x8xf32>
    %c0_70 = arith.constant 0 : index
    %c0_71 = arith.constant 0 : index
    %290 = vector.load %arg3[%c0_70, %c0_71] : memref<16x112xf32, #tpu.memory_space<vmem>>, vector<16x112xf32>
    %c0_72 = arith.constant 0 : index
    %c0_73 = arith.constant 0 : index
    %291 = vector.load %arg17[%c0_72, %c0_73] : memref<112x256xf32, #tpu.memory_space<vmem>>, vector<112x256xf32>
    %cst_74 = arith.constant dense<0.000000e+00> : vector<16x256xf32>
    %292 = tpu.matmul %290, %291, %cst_74 {dimension_numbers = #tpu.dot_dimension_numbers<[1], [0], [0], [1], [0, 0, 1, 1], [], []>} : vector<16x112xf32>, vector<112x256xf32>, vector<16x256xf32> -> vector<16x256xf32>
    %c0_75 = arith.constant 0 : index
    %c0_76 = arith.constant 0 : index
    %293 = vector.load %arg19[%c0_75, %c0_76] : memref<1x256xf32, #tpu.memory_space<vmem>>, vector<1x256xf32>
    %294 = vector.broadcast %293 : vector<1x256xf32> to vector<16x256xf32>
    %295 = arith.addf %292, %294 : vector<16x256xf32>
    %c0_77 = arith.constant 0 : index
    %c0_78 = arith.constant 0 : index
    %296 = vector.load %arg18[%c0_77, %c0_78] : memref<64x256xf32, #tpu.memory_space<vmem>>, vector<64x256xf32>
    %cst_79 = arith.constant 0.000000e+00 : f32
    %297 = vector.broadcast %cst_79 : f32 to vector<2x64xf32>
    %cst_80 = arith.constant 0.000000e+00 : f32
    %298 = vector.broadcast %cst_80 : f32 to vector<2x64xf32>
    %299 = vector.extract_strided_slice %295 {offsets = [0, 0], sizes = [2, 256], strides = [1, 1]} : vector<16x256xf32> to vector<2x256xf32>
    %cst_81 = arith.constant dense<0.000000e+00> : vector<2x256xf32>
    %300 = tpu.matmul %297, %296, %cst_81 {dimension_numbers = #tpu.dot_dimension_numbers<[1], [0], [0], [1], [0, 0, 1, 1], [], []>} : vector<2x64xf32>, vector<64x256xf32>, vector<2x256xf32> -> vector<2x256xf32>
    %301 = arith.addf %299, %300 : vector<2x256xf32>
    %302 = vector.extract_strided_slice %301 {offsets = [0, 0], sizes = [2, 64], strides = [1, 1]} : vector<2x256xf32> to vector<2x64xf32>
    %303 = arith.negf %302 : vector<2x64xf32>
    %304 = math.exp %303 : vector<2x64xf32>
    %cst_82 = arith.constant 1.000000e+00 : f32
    %305 = vector.broadcast %cst_82 : f32 to vector<2x64xf32>
    %306 = arith.addf %305, %304 : vector<2x64xf32>
    %307 = arith.divf %305, %306 : vector<2x64xf32>
    %308 = vector.extract_strided_slice %301 {offsets = [0, 64], sizes = [2, 64], strides = [1, 1]} : vector<2x256xf32> to vector<2x64xf32>
    %309 = arith.negf %308 : vector<2x64xf32>
    %310 = math.exp %309 : vector<2x64xf32>
    %cst_83 = arith.constant 1.000000e+00 : f32
    %311 = vector.broadcast %cst_83 : f32 to vector<2x64xf32>
    %312 = arith.addf %311, %310 : vector<2x64xf32>
    %313 = arith.divf %311, %312 : vector<2x64xf32>
    %314 = vector.extract_strided_slice %301 {offsets = [0, 128], sizes = [2, 64], strides = [1, 1]} : vector<2x256xf32> to vector<2x64xf32>
    %315 = math.tanh %314 : vector<2x64xf32>
    %316 = vector.extract_strided_slice %301 {offsets = [0, 192], sizes = [2, 64], strides = [1, 1]} : vector<2x256xf32> to vector<2x64xf32>
    %317 = arith.negf %316 : vector<2x64xf32>
    %318 = math.exp %317 : vector<2x64xf32>
    %cst_84 = arith.constant 1.000000e+00 : f32
    %319 = vector.broadcast %cst_84 : f32 to vector<2x64xf32>
    %320 = arith.addf %319, %318 : vector<2x64xf32>
    %321 = arith.divf %319, %320 : vector<2x64xf32>
    %322 = arith.mulf %313, %298 : vector<2x64xf32>
    %323 = arith.mulf %307, %315 : vector<2x64xf32>
    %324 = arith.addf %322, %323 : vector<2x64xf32>
    %325 = math.tanh %324 : vector<2x64xf32>
    %326 = arith.mulf %321, %325 : vector<2x64xf32>
    %327 = vector.extract_strided_slice %295 {offsets = [2, 0], sizes = [2, 256], strides = [1, 1]} : vector<16x256xf32> to vector<2x256xf32>
    %cst_85 = arith.constant dense<0.000000e+00> : vector<2x256xf32>
    %328 = tpu.matmul %326, %296, %cst_85 {dimension_numbers = #tpu.dot_dimension_numbers<[1], [0], [0], [1], [0, 0, 1, 1], [], []>} : vector<2x64xf32>, vector<64x256xf32>, vector<2x256xf32> -> vector<2x256xf32>
    %329 = arith.addf %327, %328 : vector<2x256xf32>
    %330 = vector.extract_strided_slice %329 {offsets = [0, 0], sizes = [2, 64], strides = [1, 1]} : vector<2x256xf32> to vector<2x64xf32>
    %331 = arith.negf %330 : vector<2x64xf32>
    %332 = math.exp %331 : vector<2x64xf32>
    %cst_86 = arith.constant 1.000000e+00 : f32
    %333 = vector.broadcast %cst_86 : f32 to vector<2x64xf32>
    %334 = arith.addf %333, %332 : vector<2x64xf32>
    %335 = arith.divf %333, %334 : vector<2x64xf32>
    %336 = vector.extract_strided_slice %329 {offsets = [0, 64], sizes = [2, 64], strides = [1, 1]} : vector<2x256xf32> to vector<2x64xf32>
    %337 = arith.negf %336 : vector<2x64xf32>
    %338 = math.exp %337 : vector<2x64xf32>
    %cst_87 = arith.constant 1.000000e+00 : f32
    %339 = vector.broadcast %cst_87 : f32 to vector<2x64xf32>
    %340 = arith.addf %339, %338 : vector<2x64xf32>
    %341 = arith.divf %339, %340 : vector<2x64xf32>
    %342 = vector.extract_strided_slice %329 {offsets = [0, 128], sizes = [2, 64], strides = [1, 1]} : vector<2x256xf32> to vector<2x64xf32>
    %343 = math.tanh %342 : vector<2x64xf32>
    %344 = vector.extract_strided_slice %329 {offsets = [0, 192], sizes = [2, 64], strides = [1, 1]} : vector<2x256xf32> to vector<2x64xf32>
    %345 = arith.negf %344 : vector<2x64xf32>
    %346 = math.exp %345 : vector<2x64xf32>
    %cst_88 = arith.constant 1.000000e+00 : f32
    %347 = vector.broadcast %cst_88 : f32 to vector<2x64xf32>
    %348 = arith.addf %347, %346 : vector<2x64xf32>
    %349 = arith.divf %347, %348 : vector<2x64xf32>
    %350 = arith.mulf %341, %324 : vector<2x64xf32>
    %351 = arith.mulf %335, %343 : vector<2x64xf32>
    %352 = arith.addf %350, %351 : vector<2x64xf32>
    %353 = math.tanh %352 : vector<2x64xf32>
    %354 = arith.mulf %349, %353 : vector<2x64xf32>
    %355 = vector.extract_strided_slice %295 {offsets = [4, 0], sizes = [2, 256], strides = [1, 1]} : vector<16x256xf32> to vector<2x256xf32>
    %cst_89 = arith.constant dense<0.000000e+00> : vector<2x256xf32>
    %356 = tpu.matmul %354, %296, %cst_89 {dimension_numbers = #tpu.dot_dimension_numbers<[1], [0], [0], [1], [0, 0, 1, 1], [], []>} : vector<2x64xf32>, vector<64x256xf32>, vector<2x256xf32> -> vector<2x256xf32>
    %357 = arith.addf %355, %356 : vector<2x256xf32>
    %358 = vector.extract_strided_slice %357 {offsets = [0, 0], sizes = [2, 64], strides = [1, 1]} : vector<2x256xf32> to vector<2x64xf32>
    %359 = arith.negf %358 : vector<2x64xf32>
    %360 = math.exp %359 : vector<2x64xf32>
    %cst_90 = arith.constant 1.000000e+00 : f32
    %361 = vector.broadcast %cst_90 : f32 to vector<2x64xf32>
    %362 = arith.addf %361, %360 : vector<2x64xf32>
    %363 = arith.divf %361, %362 : vector<2x64xf32>
    %364 = vector.extract_strided_slice %357 {offsets = [0, 64], sizes = [2, 64], strides = [1, 1]} : vector<2x256xf32> to vector<2x64xf32>
    %365 = arith.negf %364 : vector<2x64xf32>
    %366 = math.exp %365 : vector<2x64xf32>
    %cst_91 = arith.constant 1.000000e+00 : f32
    %367 = vector.broadcast %cst_91 : f32 to vector<2x64xf32>
    %368 = arith.addf %367, %366 : vector<2x64xf32>
    %369 = arith.divf %367, %368 : vector<2x64xf32>
    %370 = vector.extract_strided_slice %357 {offsets = [0, 128], sizes = [2, 64], strides = [1, 1]} : vector<2x256xf32> to vector<2x64xf32>
    %371 = math.tanh %370 : vector<2x64xf32>
    %372 = vector.extract_strided_slice %357 {offsets = [0, 192], sizes = [2, 64], strides = [1, 1]} : vector<2x256xf32> to vector<2x64xf32>
    %373 = arith.negf %372 : vector<2x64xf32>
    %374 = math.exp %373 : vector<2x64xf32>
    %cst_92 = arith.constant 1.000000e+00 : f32
    %375 = vector.broadcast %cst_92 : f32 to vector<2x64xf32>
    %376 = arith.addf %375, %374 : vector<2x64xf32>
    %377 = arith.divf %375, %376 : vector<2x64xf32>
    %378 = arith.mulf %369, %352 : vector<2x64xf32>
    %379 = arith.mulf %363, %371 : vector<2x64xf32>
    %380 = arith.addf %378, %379 : vector<2x64xf32>
    %381 = math.tanh %380 : vector<2x64xf32>
    %382 = arith.mulf %377, %381 : vector<2x64xf32>
    %383 = vector.extract_strided_slice %295 {offsets = [6, 0], sizes = [2, 256], strides = [1, 1]} : vector<16x256xf32> to vector<2x256xf32>
    %cst_93 = arith.constant dense<0.000000e+00> : vector<2x256xf32>
    %384 = tpu.matmul %382, %296, %cst_93 {dimension_numbers = #tpu.dot_dimension_numbers<[1], [0], [0], [1], [0, 0, 1, 1], [], []>} : vector<2x64xf32>, vector<64x256xf32>, vector<2x256xf32> -> vector<2x256xf32>
    %385 = arith.addf %383, %384 : vector<2x256xf32>
    %386 = vector.extract_strided_slice %385 {offsets = [0, 0], sizes = [2, 64], strides = [1, 1]} : vector<2x256xf32> to vector<2x64xf32>
    %387 = arith.negf %386 : vector<2x64xf32>
    %388 = math.exp %387 : vector<2x64xf32>
    %cst_94 = arith.constant 1.000000e+00 : f32
    %389 = vector.broadcast %cst_94 : f32 to vector<2x64xf32>
    %390 = arith.addf %389, %388 : vector<2x64xf32>
    %391 = arith.divf %389, %390 : vector<2x64xf32>
    %392 = vector.extract_strided_slice %385 {offsets = [0, 64], sizes = [2, 64], strides = [1, 1]} : vector<2x256xf32> to vector<2x64xf32>
    %393 = arith.negf %392 : vector<2x64xf32>
    %394 = math.exp %393 : vector<2x64xf32>
    %cst_95 = arith.constant 1.000000e+00 : f32
    %395 = vector.broadcast %cst_95 : f32 to vector<2x64xf32>
    %396 = arith.addf %395, %394 : vector<2x64xf32>
    %397 = arith.divf %395, %396 : vector<2x64xf32>
    %398 = vector.extract_strided_slice %385 {offsets = [0, 128], sizes = [2, 64], strides = [1, 1]} : vector<2x256xf32> to vector<2x64xf32>
    %399 = math.tanh %398 : vector<2x64xf32>
    %400 = vector.extract_strided_slice %385 {offsets = [0, 192], sizes = [2, 64], strides = [1, 1]} : vector<2x256xf32> to vector<2x64xf32>
    %401 = arith.negf %400 : vector<2x64xf32>
    %402 = math.exp %401 : vector<2x64xf32>
    %cst_96 = arith.constant 1.000000e+00 : f32
    %403 = vector.broadcast %cst_96 : f32 to vector<2x64xf32>
    %404 = arith.addf %403, %402 : vector<2x64xf32>
    %405 = arith.divf %403, %404 : vector<2x64xf32>
    %406 = arith.mulf %397, %380 : vector<2x64xf32>
    %407 = arith.mulf %391, %399 : vector<2x64xf32>
    %408 = arith.addf %406, %407 : vector<2x64xf32>
    %409 = math.tanh %408 : vector<2x64xf32>
    %410 = arith.mulf %405, %409 : vector<2x64xf32>
    %411 = vector.extract_strided_slice %295 {offsets = [8, 0], sizes = [2, 256], strides = [1, 1]} : vector<16x256xf32> to vector<2x256xf32>
    %cst_97 = arith.constant dense<0.000000e+00> : vector<2x256xf32>
    %412 = tpu.matmul %410, %296, %cst_97 {dimension_numbers = #tpu.dot_dimension_numbers<[1], [0], [0], [1], [0, 0, 1, 1], [], []>} : vector<2x64xf32>, vector<64x256xf32>, vector<2x256xf32> -> vector<2x256xf32>
    %413 = arith.addf %411, %412 : vector<2x256xf32>
    %414 = vector.extract_strided_slice %413 {offsets = [0, 0], sizes = [2, 64], strides = [1, 1]} : vector<2x256xf32> to vector<2x64xf32>
    %415 = arith.negf %414 : vector<2x64xf32>
    %416 = math.exp %415 : vector<2x64xf32>
    %cst_98 = arith.constant 1.000000e+00 : f32
    %417 = vector.broadcast %cst_98 : f32 to vector<2x64xf32>
    %418 = arith.addf %417, %416 : vector<2x64xf32>
    %419 = arith.divf %417, %418 : vector<2x64xf32>
    %420 = vector.extract_strided_slice %413 {offsets = [0, 64], sizes = [2, 64], strides = [1, 1]} : vector<2x256xf32> to vector<2x64xf32>
    %421 = arith.negf %420 : vector<2x64xf32>
    %422 = math.exp %421 : vector<2x64xf32>
    %cst_99 = arith.constant 1.000000e+00 : f32
    %423 = vector.broadcast %cst_99 : f32 to vector<2x64xf32>
    %424 = arith.addf %423, %422 : vector<2x64xf32>
    %425 = arith.divf %423, %424 : vector<2x64xf32>
    %426 = vector.extract_strided_slice %413 {offsets = [0, 128], sizes = [2, 64], strides = [1, 1]} : vector<2x256xf32> to vector<2x64xf32>
    %427 = math.tanh %426 : vector<2x64xf32>
    %428 = vector.extract_strided_slice %413 {offsets = [0, 192], sizes = [2, 64], strides = [1, 1]} : vector<2x256xf32> to vector<2x64xf32>
    %429 = arith.negf %428 : vector<2x64xf32>
    %430 = math.exp %429 : vector<2x64xf32>
    %cst_100 = arith.constant 1.000000e+00 : f32
    %431 = vector.broadcast %cst_100 : f32 to vector<2x64xf32>
    %432 = arith.addf %431, %430 : vector<2x64xf32>
    %433 = arith.divf %431, %432 : vector<2x64xf32>
    %434 = arith.mulf %425, %408 : vector<2x64xf32>
    %435 = arith.mulf %419, %427 : vector<2x64xf32>
    %436 = arith.addf %434, %435 : vector<2x64xf32>
    %437 = math.tanh %436 : vector<2x64xf32>
    %438 = arith.mulf %433, %437 : vector<2x64xf32>
    %439 = vector.extract_strided_slice %295 {offsets = [10, 0], sizes = [2, 256], strides = [1, 1]} : vector<16x256xf32> to vector<2x256xf32>
    %cst_101 = arith.constant dense<0.000000e+00> : vector<2x256xf32>
    %440 = tpu.matmul %438, %296, %cst_101 {dimension_numbers = #tpu.dot_dimension_numbers<[1], [0], [0], [1], [0, 0, 1, 1], [], []>} : vector<2x64xf32>, vector<64x256xf32>, vector<2x256xf32> -> vector<2x256xf32>
    %441 = arith.addf %439, %440 : vector<2x256xf32>
    %442 = vector.extract_strided_slice %441 {offsets = [0, 0], sizes = [2, 64], strides = [1, 1]} : vector<2x256xf32> to vector<2x64xf32>
    %443 = arith.negf %442 : vector<2x64xf32>
    %444 = math.exp %443 : vector<2x64xf32>
    %cst_102 = arith.constant 1.000000e+00 : f32
    %445 = vector.broadcast %cst_102 : f32 to vector<2x64xf32>
    %446 = arith.addf %445, %444 : vector<2x64xf32>
    %447 = arith.divf %445, %446 : vector<2x64xf32>
    %448 = vector.extract_strided_slice %441 {offsets = [0, 64], sizes = [2, 64], strides = [1, 1]} : vector<2x256xf32> to vector<2x64xf32>
    %449 = arith.negf %448 : vector<2x64xf32>
    %450 = math.exp %449 : vector<2x64xf32>
    %cst_103 = arith.constant 1.000000e+00 : f32
    %451 = vector.broadcast %cst_103 : f32 to vector<2x64xf32>
    %452 = arith.addf %451, %450 : vector<2x64xf32>
    %453 = arith.divf %451, %452 : vector<2x64xf32>
    %454 = vector.extract_strided_slice %441 {offsets = [0, 128], sizes = [2, 64], strides = [1, 1]} : vector<2x256xf32> to vector<2x64xf32>
    %455 = math.tanh %454 : vector<2x64xf32>
    %456 = vector.extract_strided_slice %441 {offsets = [0, 192], sizes = [2, 64], strides = [1, 1]} : vector<2x256xf32> to vector<2x64xf32>
    %457 = arith.negf %456 : vector<2x64xf32>
    %458 = math.exp %457 : vector<2x64xf32>
    %cst_104 = arith.constant 1.000000e+00 : f32
    %459 = vector.broadcast %cst_104 : f32 to vector<2x64xf32>
    %460 = arith.addf %459, %458 : vector<2x64xf32>
    %461 = arith.divf %459, %460 : vector<2x64xf32>
    %462 = arith.mulf %453, %436 : vector<2x64xf32>
    %463 = arith.mulf %447, %455 : vector<2x64xf32>
    %464 = arith.addf %462, %463 : vector<2x64xf32>
    %465 = math.tanh %464 : vector<2x64xf32>
    %466 = arith.mulf %461, %465 : vector<2x64xf32>
    %467 = vector.extract_strided_slice %295 {offsets = [12, 0], sizes = [2, 256], strides = [1, 1]} : vector<16x256xf32> to vector<2x256xf32>
    %cst_105 = arith.constant dense<0.000000e+00> : vector<2x256xf32>
    %468 = tpu.matmul %466, %296, %cst_105 {dimension_numbers = #tpu.dot_dimension_numbers<[1], [0], [0], [1], [0, 0, 1, 1], [], []>} : vector<2x64xf32>, vector<64x256xf32>, vector<2x256xf32> -> vector<2x256xf32>
    %469 = arith.addf %467, %468 : vector<2x256xf32>
    %470 = vector.extract_strided_slice %469 {offsets = [0, 0], sizes = [2, 64], strides = [1, 1]} : vector<2x256xf32> to vector<2x64xf32>
    %471 = arith.negf %470 : vector<2x64xf32>
    %472 = math.exp %471 : vector<2x64xf32>
    %cst_106 = arith.constant 1.000000e+00 : f32
    %473 = vector.broadcast %cst_106 : f32 to vector<2x64xf32>
    %474 = arith.addf %473, %472 : vector<2x64xf32>
    %475 = arith.divf %473, %474 : vector<2x64xf32>
    %476 = vector.extract_strided_slice %469 {offsets = [0, 64], sizes = [2, 64], strides = [1, 1]} : vector<2x256xf32> to vector<2x64xf32>
    %477 = arith.negf %476 : vector<2x64xf32>
    %478 = math.exp %477 : vector<2x64xf32>
    %cst_107 = arith.constant 1.000000e+00 : f32
    %479 = vector.broadcast %cst_107 : f32 to vector<2x64xf32>
    %480 = arith.addf %479, %478 : vector<2x64xf32>
    %481 = arith.divf %479, %480 : vector<2x64xf32>
    %482 = vector.extract_strided_slice %469 {offsets = [0, 128], sizes = [2, 64], strides = [1, 1]} : vector<2x256xf32> to vector<2x64xf32>
    %483 = math.tanh %482 : vector<2x64xf32>
    %484 = vector.extract_strided_slice %469 {offsets = [0, 192], sizes = [2, 64], strides = [1, 1]} : vector<2x256xf32> to vector<2x64xf32>
    %485 = arith.negf %484 : vector<2x64xf32>
    %486 = math.exp %485 : vector<2x64xf32>
    %cst_108 = arith.constant 1.000000e+00 : f32
    %487 = vector.broadcast %cst_108 : f32 to vector<2x64xf32>
    %488 = arith.addf %487, %486 : vector<2x64xf32>
    %489 = arith.divf %487, %488 : vector<2x64xf32>
    %490 = arith.mulf %481, %464 : vector<2x64xf32>
    %491 = arith.mulf %475, %483 : vector<2x64xf32>
    %492 = arith.addf %490, %491 : vector<2x64xf32>
    %493 = math.tanh %492 : vector<2x64xf32>
    %494 = arith.mulf %489, %493 : vector<2x64xf32>
    %495 = vector.extract_strided_slice %295 {offsets = [14, 0], sizes = [2, 256], strides = [1, 1]} : vector<16x256xf32> to vector<2x256xf32>
    %cst_109 = arith.constant dense<0.000000e+00> : vector<2x256xf32>
    %496 = tpu.matmul %494, %296, %cst_109 {dimension_numbers = #tpu.dot_dimension_numbers<[1], [0], [0], [1], [0, 0, 1, 1], [], []>} : vector<2x64xf32>, vector<64x256xf32>, vector<2x256xf32> -> vector<2x256xf32>
    %497 = arith.addf %495, %496 : vector<2x256xf32>
    %498 = vector.extract_strided_slice %497 {offsets = [0, 0], sizes = [2, 64], strides = [1, 1]} : vector<2x256xf32> to vector<2x64xf32>
    %499 = arith.negf %498 : vector<2x64xf32>
    %500 = math.exp %499 : vector<2x64xf32>
    %cst_110 = arith.constant 1.000000e+00 : f32
    %501 = vector.broadcast %cst_110 : f32 to vector<2x64xf32>
    %502 = arith.addf %501, %500 : vector<2x64xf32>
    %503 = arith.divf %501, %502 : vector<2x64xf32>
    %504 = vector.extract_strided_slice %497 {offsets = [0, 64], sizes = [2, 64], strides = [1, 1]} : vector<2x256xf32> to vector<2x64xf32>
    %505 = arith.negf %504 : vector<2x64xf32>
    %506 = math.exp %505 : vector<2x64xf32>
    %cst_111 = arith.constant 1.000000e+00 : f32
    %507 = vector.broadcast %cst_111 : f32 to vector<2x64xf32>
    %508 = arith.addf %507, %506 : vector<2x64xf32>
    %509 = arith.divf %507, %508 : vector<2x64xf32>
    %510 = vector.extract_strided_slice %497 {offsets = [0, 128], sizes = [2, 64], strides = [1, 1]} : vector<2x256xf32> to vector<2x64xf32>
    %511 = math.tanh %510 : vector<2x64xf32>
    %512 = vector.extract_strided_slice %497 {offsets = [0, 192], sizes = [2, 64], strides = [1, 1]} : vector<2x256xf32> to vector<2x64xf32>
    %513 = arith.negf %512 : vector<2x64xf32>
    %514 = math.exp %513 : vector<2x64xf32>
    %cst_112 = arith.constant 1.000000e+00 : f32
    %515 = vector.broadcast %cst_112 : f32 to vector<2x64xf32>
    %516 = arith.addf %515, %514 : vector<2x64xf32>
    %517 = arith.divf %515, %516 : vector<2x64xf32>
    %518 = arith.mulf %509, %492 : vector<2x64xf32>
    %519 = arith.mulf %503, %511 : vector<2x64xf32>
    %520 = arith.addf %518, %519 : vector<2x64xf32>
    %521 = math.tanh %520 : vector<2x64xf32>
    %522 = arith.mulf %517, %521 : vector<2x64xf32>
    %523 = vector.extract_strided_slice %326 {offsets = [0, 0], sizes = [2, 16], strides = [1, 1]} : vector<2x64xf32> to vector<2x16xf32>
    %524 = vector.extract_strided_slice %522 {offsets = [0, 16], sizes = [2, 16], strides = [1, 1]} : vector<2x64xf32> to vector<2x16xf32>
    %525 = tpu.concatenate %523, %524 in 1 : vector<2x16xf32>, vector<2x16xf32> -> vector<2x32xf32>
    %526 = vector.extract_strided_slice %354 {offsets = [0, 0], sizes = [2, 16], strides = [1, 1]} : vector<2x64xf32> to vector<2x16xf32>
    %527 = vector.extract_strided_slice %494 {offsets = [0, 16], sizes = [2, 16], strides = [1, 1]} : vector<2x64xf32> to vector<2x16xf32>
    %528 = tpu.concatenate %526, %527 in 1 : vector<2x16xf32>, vector<2x16xf32> -> vector<2x32xf32>
    %529 = vector.extract_strided_slice %382 {offsets = [0, 0], sizes = [2, 16], strides = [1, 1]} : vector<2x64xf32> to vector<2x16xf32>
    %530 = vector.extract_strided_slice %466 {offsets = [0, 16], sizes = [2, 16], strides = [1, 1]} : vector<2x64xf32> to vector<2x16xf32>
    %531 = tpu.concatenate %529, %530 in 1 : vector<2x16xf32>, vector<2x16xf32> -> vector<2x32xf32>
    %532 = vector.extract_strided_slice %410 {offsets = [0, 0], sizes = [2, 16], strides = [1, 1]} : vector<2x64xf32> to vector<2x16xf32>
    %533 = vector.extract_strided_slice %438 {offsets = [0, 16], sizes = [2, 16], strides = [1, 1]} : vector<2x64xf32> to vector<2x16xf32>
    %534 = tpu.concatenate %532, %533 in 1 : vector<2x16xf32>, vector<2x16xf32> -> vector<2x32xf32>
    %535 = vector.extract_strided_slice %438 {offsets = [0, 0], sizes = [2, 16], strides = [1, 1]} : vector<2x64xf32> to vector<2x16xf32>
    %536 = vector.extract_strided_slice %410 {offsets = [0, 16], sizes = [2, 16], strides = [1, 1]} : vector<2x64xf32> to vector<2x16xf32>
    %537 = tpu.concatenate %535, %536 in 1 : vector<2x16xf32>, vector<2x16xf32> -> vector<2x32xf32>
    %538 = vector.extract_strided_slice %466 {offsets = [0, 0], sizes = [2, 16], strides = [1, 1]} : vector<2x64xf32> to vector<2x16xf32>
    %539 = vector.extract_strided_slice %382 {offsets = [0, 16], sizes = [2, 16], strides = [1, 1]} : vector<2x64xf32> to vector<2x16xf32>
    %540 = tpu.concatenate %538, %539 in 1 : vector<2x16xf32>, vector<2x16xf32> -> vector<2x32xf32>
    %541 = vector.extract_strided_slice %494 {offsets = [0, 0], sizes = [2, 16], strides = [1, 1]} : vector<2x64xf32> to vector<2x16xf32>
    %542 = vector.extract_strided_slice %354 {offsets = [0, 16], sizes = [2, 16], strides = [1, 1]} : vector<2x64xf32> to vector<2x16xf32>
    %543 = tpu.concatenate %541, %542 in 1 : vector<2x16xf32>, vector<2x16xf32> -> vector<2x32xf32>
    %544 = vector.extract_strided_slice %522 {offsets = [0, 0], sizes = [2, 16], strides = [1, 1]} : vector<2x64xf32> to vector<2x16xf32>
    %545 = vector.extract_strided_slice %326 {offsets = [0, 16], sizes = [2, 16], strides = [1, 1]} : vector<2x64xf32> to vector<2x16xf32>
    %546 = tpu.concatenate %544, %545 in 1 : vector<2x16xf32>, vector<2x16xf32> -> vector<2x32xf32>
    %547 = vector.extract_strided_slice %326 {offsets = [0, 32], sizes = [2, 16], strides = [1, 1]} : vector<2x64xf32> to vector<2x16xf32>
    %548 = vector.extract_strided_slice %522 {offsets = [0, 48], sizes = [2, 16], strides = [1, 1]} : vector<2x64xf32> to vector<2x16xf32>
    %549 = tpu.concatenate %547, %548 in 1 : vector<2x16xf32>, vector<2x16xf32> -> vector<2x32xf32>
    %550 = vector.extract_strided_slice %354 {offsets = [0, 32], sizes = [2, 16], strides = [1, 1]} : vector<2x64xf32> to vector<2x16xf32>
    %551 = vector.extract_strided_slice %494 {offsets = [0, 48], sizes = [2, 16], strides = [1, 1]} : vector<2x64xf32> to vector<2x16xf32>
    %552 = tpu.concatenate %550, %551 in 1 : vector<2x16xf32>, vector<2x16xf32> -> vector<2x32xf32>
    %553 = vector.extract_strided_slice %382 {offsets = [0, 32], sizes = [2, 16], strides = [1, 1]} : vector<2x64xf32> to vector<2x16xf32>
    %554 = vector.extract_strided_slice %466 {offsets = [0, 48], sizes = [2, 16], strides = [1, 1]} : vector<2x64xf32> to vector<2x16xf32>
    %555 = tpu.concatenate %553, %554 in 1 : vector<2x16xf32>, vector<2x16xf32> -> vector<2x32xf32>
    %556 = vector.extract_strided_slice %410 {offsets = [0, 32], sizes = [2, 16], strides = [1, 1]} : vector<2x64xf32> to vector<2x16xf32>
    %557 = vector.extract_strided_slice %438 {offsets = [0, 48], sizes = [2, 16], strides = [1, 1]} : vector<2x64xf32> to vector<2x16xf32>
    %558 = tpu.concatenate %556, %557 in 1 : vector<2x16xf32>, vector<2x16xf32> -> vector<2x32xf32>
    %559 = vector.extract_strided_slice %438 {offsets = [0, 32], sizes = [2, 16], strides = [1, 1]} : vector<2x64xf32> to vector<2x16xf32>
    %560 = vector.extract_strided_slice %410 {offsets = [0, 48], sizes = [2, 16], strides = [1, 1]} : vector<2x64xf32> to vector<2x16xf32>
    %561 = tpu.concatenate %559, %560 in 1 : vector<2x16xf32>, vector<2x16xf32> -> vector<2x32xf32>
    %562 = vector.extract_strided_slice %466 {offsets = [0, 32], sizes = [2, 16], strides = [1, 1]} : vector<2x64xf32> to vector<2x16xf32>
    %563 = vector.extract_strided_slice %382 {offsets = [0, 48], sizes = [2, 16], strides = [1, 1]} : vector<2x64xf32> to vector<2x16xf32>
    %564 = tpu.concatenate %562, %563 in 1 : vector<2x16xf32>, vector<2x16xf32> -> vector<2x32xf32>
    %565 = vector.extract_strided_slice %494 {offsets = [0, 32], sizes = [2, 16], strides = [1, 1]} : vector<2x64xf32> to vector<2x16xf32>
    %566 = vector.extract_strided_slice %354 {offsets = [0, 48], sizes = [2, 16], strides = [1, 1]} : vector<2x64xf32> to vector<2x16xf32>
    %567 = tpu.concatenate %565, %566 in 1 : vector<2x16xf32>, vector<2x16xf32> -> vector<2x32xf32>
    %568 = vector.extract_strided_slice %522 {offsets = [0, 32], sizes = [2, 16], strides = [1, 1]} : vector<2x64xf32> to vector<2x16xf32>
    %569 = vector.extract_strided_slice %326 {offsets = [0, 48], sizes = [2, 16], strides = [1, 1]} : vector<2x64xf32> to vector<2x16xf32>
    %570 = tpu.concatenate %568, %569 in 1 : vector<2x16xf32>, vector<2x16xf32> -> vector<2x32xf32>
    %c0_113 = arith.constant 0 : index
    %c0_114 = arith.constant 0 : index
    %571 = vector.load %arg20[%c0_113, %c0_114] : memref<32x32xf32, #tpu.memory_space<vmem>>, vector<32x32xf32>
    %c0_115 = arith.constant 0 : index
    %c0_116 = arith.constant 0 : index
    %572 = vector.load %arg21[%c0_115, %c0_116] : memref<1x32xf32, #tpu.memory_space<vmem>>, vector<1x32xf32>
    %c0_117 = arith.constant 0 : index
    %c0_118 = arith.constant 0 : index
    %573 = vector.load %arg22[%c0_117, %c0_118] : memref<1x32xf32, #tpu.memory_space<vmem>>, vector<1x32xf32>
    %c0_119 = arith.constant 0 : index
    %c0_120 = arith.constant 0 : index
    %574 = vector.load %arg23[%c0_119, %c0_120] : memref<1x1xf32, #tpu.memory_space<vmem>>, vector<1x1xf32>
    %cst_121 = arith.constant dense<0.000000e+00> : vector<2x32xf32>
    %575 = tpu.matmul %525, %571, %cst_121 {dimension_numbers = #tpu.dot_dimension_numbers<[1], [0], [0], [1], [0, 0, 1, 1], [], []>} : vector<2x32xf32>, vector<32x32xf32>, vector<2x32xf32> -> vector<2x32xf32>
    %576 = vector.broadcast %572 : vector<1x32xf32> to vector<2x32xf32>
    %577 = arith.addf %575, %576 : vector<2x32xf32>
    %578 = math.tanh %577 : vector<2x32xf32>
    %579 = vector.broadcast %573 : vector<1x32xf32> to vector<2x32xf32>
    %580 = arith.mulf %578, %579 : vector<2x32xf32>
    %cst_122 = arith.constant dense<0.000000e+00> : vector<2xf32>
    %581 = vector.multi_reduction <add>, %580, %cst_122 [1] : vector<2x32xf32> to vector<2xf32>
    %582 = vector.shape_cast %581 : vector<2xf32> to vector<2x1xf32>
    %583 = vector.broadcast %574 : vector<1x1xf32> to vector<2x1xf32>
    %584 = arith.addf %582, %583 : vector<2x1xf32>
    %585 = vector.extract_strided_slice %0 {offsets = [0, 0], sizes = [2, 1], strides = [1, 1]} : vector<2x8xf32> to vector<2x1xf32>
    %cst_123 = arith.constant 1.000000e+00 : f32
    %586 = vector.broadcast %cst_123 : f32 to vector<2x1xf32>
    %587 = arith.subf %586, %585 : vector<2x1xf32>
    %cst_124 = arith.constant -1.000000e+04 : f32
    %588 = vector.broadcast %cst_124 : f32 to vector<2x1xf32>
    %589 = arith.mulf %588, %587 : vector<2x1xf32>
    %590 = arith.addf %584, %589 : vector<2x1xf32>
    %cst_125 = arith.constant dense<0.000000e+00> : vector<2x32xf32>
    %591 = tpu.matmul %528, %571, %cst_125 {dimension_numbers = #tpu.dot_dimension_numbers<[1], [0], [0], [1], [0, 0, 1, 1], [], []>} : vector<2x32xf32>, vector<32x32xf32>, vector<2x32xf32> -> vector<2x32xf32>
    %592 = vector.broadcast %572 : vector<1x32xf32> to vector<2x32xf32>
    %593 = arith.addf %591, %592 : vector<2x32xf32>
    %594 = math.tanh %593 : vector<2x32xf32>
    %595 = vector.broadcast %573 : vector<1x32xf32> to vector<2x32xf32>
    %596 = arith.mulf %594, %595 : vector<2x32xf32>
    %cst_126 = arith.constant dense<0.000000e+00> : vector<2xf32>
    %597 = vector.multi_reduction <add>, %596, %cst_126 [1] : vector<2x32xf32> to vector<2xf32>
    %598 = vector.shape_cast %597 : vector<2xf32> to vector<2x1xf32>
    %599 = vector.broadcast %574 : vector<1x1xf32> to vector<2x1xf32>
    %600 = arith.addf %598, %599 : vector<2x1xf32>
    %601 = vector.extract_strided_slice %0 {offsets = [0, 1], sizes = [2, 1], strides = [1, 1]} : vector<2x8xf32> to vector<2x1xf32>
    %cst_127 = arith.constant 1.000000e+00 : f32
    %602 = vector.broadcast %cst_127 : f32 to vector<2x1xf32>
    %603 = arith.subf %602, %601 : vector<2x1xf32>
    %cst_128 = arith.constant -1.000000e+04 : f32
    %604 = vector.broadcast %cst_128 : f32 to vector<2x1xf32>
    %605 = arith.mulf %604, %603 : vector<2x1xf32>
    %606 = arith.addf %600, %605 : vector<2x1xf32>
    %cst_129 = arith.constant dense<0.000000e+00> : vector<2x32xf32>
    %607 = tpu.matmul %531, %571, %cst_129 {dimension_numbers = #tpu.dot_dimension_numbers<[1], [0], [0], [1], [0, 0, 1, 1], [], []>} : vector<2x32xf32>, vector<32x32xf32>, vector<2x32xf32> -> vector<2x32xf32>
    %608 = vector.broadcast %572 : vector<1x32xf32> to vector<2x32xf32>
    %609 = arith.addf %607, %608 : vector<2x32xf32>
    %610 = math.tanh %609 : vector<2x32xf32>
    %611 = vector.broadcast %573 : vector<1x32xf32> to vector<2x32xf32>
    %612 = arith.mulf %610, %611 : vector<2x32xf32>
    %cst_130 = arith.constant dense<0.000000e+00> : vector<2xf32>
    %613 = vector.multi_reduction <add>, %612, %cst_130 [1] : vector<2x32xf32> to vector<2xf32>
    %614 = vector.shape_cast %613 : vector<2xf32> to vector<2x1xf32>
    %615 = vector.broadcast %574 : vector<1x1xf32> to vector<2x1xf32>
    %616 = arith.addf %614, %615 : vector<2x1xf32>
    %617 = vector.extract_strided_slice %0 {offsets = [0, 2], sizes = [2, 1], strides = [1, 1]} : vector<2x8xf32> to vector<2x1xf32>
    %cst_131 = arith.constant 1.000000e+00 : f32
    %618 = vector.broadcast %cst_131 : f32 to vector<2x1xf32>
    %619 = arith.subf %618, %617 : vector<2x1xf32>
    %cst_132 = arith.constant -1.000000e+04 : f32
    %620 = vector.broadcast %cst_132 : f32 to vector<2x1xf32>
    %621 = arith.mulf %620, %619 : vector<2x1xf32>
    %622 = arith.addf %616, %621 : vector<2x1xf32>
    %cst_133 = arith.constant dense<0.000000e+00> : vector<2x32xf32>
    %623 = tpu.matmul %534, %571, %cst_133 {dimension_numbers = #tpu.dot_dimension_numbers<[1], [0], [0], [1], [0, 0, 1, 1], [], []>} : vector<2x32xf32>, vector<32x32xf32>, vector<2x32xf32> -> vector<2x32xf32>
    %624 = vector.broadcast %572 : vector<1x32xf32> to vector<2x32xf32>
    %625 = arith.addf %623, %624 : vector<2x32xf32>
    %626 = math.tanh %625 : vector<2x32xf32>
    %627 = vector.broadcast %573 : vector<1x32xf32> to vector<2x32xf32>
    %628 = arith.mulf %626, %627 : vector<2x32xf32>
    %cst_134 = arith.constant dense<0.000000e+00> : vector<2xf32>
    %629 = vector.multi_reduction <add>, %628, %cst_134 [1] : vector<2x32xf32> to vector<2xf32>
    %630 = vector.shape_cast %629 : vector<2xf32> to vector<2x1xf32>
    %631 = vector.broadcast %574 : vector<1x1xf32> to vector<2x1xf32>
    %632 = arith.addf %630, %631 : vector<2x1xf32>
    %633 = vector.extract_strided_slice %0 {offsets = [0, 3], sizes = [2, 1], strides = [1, 1]} : vector<2x8xf32> to vector<2x1xf32>
    %cst_135 = arith.constant 1.000000e+00 : f32
    %634 = vector.broadcast %cst_135 : f32 to vector<2x1xf32>
    %635 = arith.subf %634, %633 : vector<2x1xf32>
    %cst_136 = arith.constant -1.000000e+04 : f32
    %636 = vector.broadcast %cst_136 : f32 to vector<2x1xf32>
    %637 = arith.mulf %636, %635 : vector<2x1xf32>
    %638 = arith.addf %632, %637 : vector<2x1xf32>
    %cst_137 = arith.constant dense<0.000000e+00> : vector<2x32xf32>
    %639 = tpu.matmul %537, %571, %cst_137 {dimension_numbers = #tpu.dot_dimension_numbers<[1], [0], [0], [1], [0, 0, 1, 1], [], []>} : vector<2x32xf32>, vector<32x32xf32>, vector<2x32xf32> -> vector<2x32xf32>
    %640 = vector.broadcast %572 : vector<1x32xf32> to vector<2x32xf32>
    %641 = arith.addf %639, %640 : vector<2x32xf32>
    %642 = math.tanh %641 : vector<2x32xf32>
    %643 = vector.broadcast %573 : vector<1x32xf32> to vector<2x32xf32>
    %644 = arith.mulf %642, %643 : vector<2x32xf32>
    %cst_138 = arith.constant dense<0.000000e+00> : vector<2xf32>
    %645 = vector.multi_reduction <add>, %644, %cst_138 [1] : vector<2x32xf32> to vector<2xf32>
    %646 = vector.shape_cast %645 : vector<2xf32> to vector<2x1xf32>
    %647 = vector.broadcast %574 : vector<1x1xf32> to vector<2x1xf32>
    %648 = arith.addf %646, %647 : vector<2x1xf32>
    %649 = vector.extract_strided_slice %0 {offsets = [0, 4], sizes = [2, 1], strides = [1, 1]} : vector<2x8xf32> to vector<2x1xf32>
    %cst_139 = arith.constant 1.000000e+00 : f32
    %650 = vector.broadcast %cst_139 : f32 to vector<2x1xf32>
    %651 = arith.subf %650, %649 : vector<2x1xf32>
    %cst_140 = arith.constant -1.000000e+04 : f32
    %652 = vector.broadcast %cst_140 : f32 to vector<2x1xf32>
    %653 = arith.mulf %652, %651 : vector<2x1xf32>
    %654 = arith.addf %648, %653 : vector<2x1xf32>
    %cst_141 = arith.constant dense<0.000000e+00> : vector<2x32xf32>
    %655 = tpu.matmul %540, %571, %cst_141 {dimension_numbers = #tpu.dot_dimension_numbers<[1], [0], [0], [1], [0, 0, 1, 1], [], []>} : vector<2x32xf32>, vector<32x32xf32>, vector<2x32xf32> -> vector<2x32xf32>
    %656 = vector.broadcast %572 : vector<1x32xf32> to vector<2x32xf32>
    %657 = arith.addf %655, %656 : vector<2x32xf32>
    %658 = math.tanh %657 : vector<2x32xf32>
    %659 = vector.broadcast %573 : vector<1x32xf32> to vector<2x32xf32>
    %660 = arith.mulf %658, %659 : vector<2x32xf32>
    %cst_142 = arith.constant dense<0.000000e+00> : vector<2xf32>
    %661 = vector.multi_reduction <add>, %660, %cst_142 [1] : vector<2x32xf32> to vector<2xf32>
    %662 = vector.shape_cast %661 : vector<2xf32> to vector<2x1xf32>
    %663 = vector.broadcast %574 : vector<1x1xf32> to vector<2x1xf32>
    %664 = arith.addf %662, %663 : vector<2x1xf32>
    %665 = vector.extract_strided_slice %0 {offsets = [0, 5], sizes = [2, 1], strides = [1, 1]} : vector<2x8xf32> to vector<2x1xf32>
    %cst_143 = arith.constant 1.000000e+00 : f32
    %666 = vector.broadcast %cst_143 : f32 to vector<2x1xf32>
    %667 = arith.subf %666, %665 : vector<2x1xf32>
    %cst_144 = arith.constant -1.000000e+04 : f32
    %668 = vector.broadcast %cst_144 : f32 to vector<2x1xf32>
    %669 = arith.mulf %668, %667 : vector<2x1xf32>
    %670 = arith.addf %664, %669 : vector<2x1xf32>
    %cst_145 = arith.constant dense<0.000000e+00> : vector<2x32xf32>
    %671 = tpu.matmul %543, %571, %cst_145 {dimension_numbers = #tpu.dot_dimension_numbers<[1], [0], [0], [1], [0, 0, 1, 1], [], []>} : vector<2x32xf32>, vector<32x32xf32>, vector<2x32xf32> -> vector<2x32xf32>
    %672 = vector.broadcast %572 : vector<1x32xf32> to vector<2x32xf32>
    %673 = arith.addf %671, %672 : vector<2x32xf32>
    %674 = math.tanh %673 : vector<2x32xf32>
    %675 = vector.broadcast %573 : vector<1x32xf32> to vector<2x32xf32>
    %676 = arith.mulf %674, %675 : vector<2x32xf32>
    %cst_146 = arith.constant dense<0.000000e+00> : vector<2xf32>
    %677 = vector.multi_reduction <add>, %676, %cst_146 [1] : vector<2x32xf32> to vector<2xf32>
    %678 = vector.shape_cast %677 : vector<2xf32> to vector<2x1xf32>
    %679 = vector.broadcast %574 : vector<1x1xf32> to vector<2x1xf32>
    %680 = arith.addf %678, %679 : vector<2x1xf32>
    %681 = vector.extract_strided_slice %0 {offsets = [0, 6], sizes = [2, 1], strides = [1, 1]} : vector<2x8xf32> to vector<2x1xf32>
    %cst_147 = arith.constant 1.000000e+00 : f32
    %682 = vector.broadcast %cst_147 : f32 to vector<2x1xf32>
    %683 = arith.subf %682, %681 : vector<2x1xf32>
    %cst_148 = arith.constant -1.000000e+04 : f32
    %684 = vector.broadcast %cst_148 : f32 to vector<2x1xf32>
    %685 = arith.mulf %684, %683 : vector<2x1xf32>
    %686 = arith.addf %680, %685 : vector<2x1xf32>
    %cst_149 = arith.constant dense<0.000000e+00> : vector<2x32xf32>
    %687 = tpu.matmul %546, %571, %cst_149 {dimension_numbers = #tpu.dot_dimension_numbers<[1], [0], [0], [1], [0, 0, 1, 1], [], []>} : vector<2x32xf32>, vector<32x32xf32>, vector<2x32xf32> -> vector<2x32xf32>
    %688 = vector.broadcast %572 : vector<1x32xf32> to vector<2x32xf32>
    %689 = arith.addf %687, %688 : vector<2x32xf32>
    %690 = math.tanh %689 : vector<2x32xf32>
    %691 = vector.broadcast %573 : vector<1x32xf32> to vector<2x32xf32>
    %692 = arith.mulf %690, %691 : vector<2x32xf32>
    %cst_150 = arith.constant dense<0.000000e+00> : vector<2xf32>
    %693 = vector.multi_reduction <add>, %692, %cst_150 [1] : vector<2x32xf32> to vector<2xf32>
    %694 = vector.shape_cast %693 : vector<2xf32> to vector<2x1xf32>
    %695 = vector.broadcast %574 : vector<1x1xf32> to vector<2x1xf32>
    %696 = arith.addf %694, %695 : vector<2x1xf32>
    %697 = vector.extract_strided_slice %0 {offsets = [0, 7], sizes = [2, 1], strides = [1, 1]} : vector<2x8xf32> to vector<2x1xf32>
    %cst_151 = arith.constant 1.000000e+00 : f32
    %698 = vector.broadcast %cst_151 : f32 to vector<2x1xf32>
    %699 = arith.subf %698, %697 : vector<2x1xf32>
    %cst_152 = arith.constant -1.000000e+04 : f32
    %700 = vector.broadcast %cst_152 : f32 to vector<2x1xf32>
    %701 = arith.mulf %700, %699 : vector<2x1xf32>
    %702 = arith.addf %696, %701 : vector<2x1xf32>
    %703 = arith.maximumf %590, %606 : vector<2x1xf32>
    %704 = arith.maximumf %703, %622 : vector<2x1xf32>
    %705 = arith.maximumf %704, %638 : vector<2x1xf32>
    %706 = arith.maximumf %705, %654 : vector<2x1xf32>
    %707 = arith.maximumf %706, %670 : vector<2x1xf32>
    %708 = arith.maximumf %707, %686 : vector<2x1xf32>
    %709 = arith.maximumf %708, %702 : vector<2x1xf32>
    %710 = arith.subf %590, %709 : vector<2x1xf32>
    %711 = math.exp %710 : vector<2x1xf32>
    %712 = arith.subf %606, %709 : vector<2x1xf32>
    %713 = math.exp %712 : vector<2x1xf32>
    %714 = arith.subf %622, %709 : vector<2x1xf32>
    %715 = math.exp %714 : vector<2x1xf32>
    %716 = arith.subf %638, %709 : vector<2x1xf32>
    %717 = math.exp %716 : vector<2x1xf32>
    %718 = arith.subf %654, %709 : vector<2x1xf32>
    %719 = math.exp %718 : vector<2x1xf32>
    %720 = arith.subf %670, %709 : vector<2x1xf32>
    %721 = math.exp %720 : vector<2x1xf32>
    %722 = arith.subf %686, %709 : vector<2x1xf32>
    %723 = math.exp %722 : vector<2x1xf32>
    %724 = arith.subf %702, %709 : vector<2x1xf32>
    %725 = math.exp %724 : vector<2x1xf32>
    %726 = arith.addf %711, %713 : vector<2x1xf32>
    %727 = arith.addf %726, %715 : vector<2x1xf32>
    %728 = arith.addf %727, %717 : vector<2x1xf32>
    %729 = arith.addf %728, %719 : vector<2x1xf32>
    %730 = arith.addf %729, %721 : vector<2x1xf32>
    %731 = arith.addf %730, %723 : vector<2x1xf32>
    %732 = arith.addf %731, %725 : vector<2x1xf32>
    %733 = tpu.reciprocal %732 {approx = true} : vector<2x1xf32> -> vector<2x1xf32>
    %734 = arith.mulf %711, %733 : vector<2x1xf32>
    %735 = vector.broadcast %734 : vector<2x1xf32> to vector<2x32xf32>
    %736 = arith.mulf %735, %525 : vector<2x32xf32>
    %737 = arith.mulf %713, %733 : vector<2x1xf32>
    %738 = vector.broadcast %737 : vector<2x1xf32> to vector<2x32xf32>
    %739 = arith.mulf %738, %528 : vector<2x32xf32>
    %740 = arith.addf %736, %739 : vector<2x32xf32>
    %741 = arith.mulf %715, %733 : vector<2x1xf32>
    %742 = vector.broadcast %741 : vector<2x1xf32> to vector<2x32xf32>
    %743 = arith.mulf %742, %531 : vector<2x32xf32>
    %744 = arith.addf %740, %743 : vector<2x32xf32>
    %745 = arith.mulf %717, %733 : vector<2x1xf32>
    %746 = vector.broadcast %745 : vector<2x1xf32> to vector<2x32xf32>
    %747 = arith.mulf %746, %534 : vector<2x32xf32>
    %748 = arith.addf %744, %747 : vector<2x32xf32>
    %749 = arith.mulf %719, %733 : vector<2x1xf32>
    %750 = vector.broadcast %749 : vector<2x1xf32> to vector<2x32xf32>
    %751 = arith.mulf %750, %537 : vector<2x32xf32>
    %752 = arith.addf %748, %751 : vector<2x32xf32>
    %753 = arith.mulf %721, %733 : vector<2x1xf32>
    %754 = vector.broadcast %753 : vector<2x1xf32> to vector<2x32xf32>
    %755 = arith.mulf %754, %540 : vector<2x32xf32>
    %756 = arith.addf %752, %755 : vector<2x32xf32>
    %757 = arith.mulf %723, %733 : vector<2x1xf32>
    %758 = vector.broadcast %757 : vector<2x1xf32> to vector<2x32xf32>
    %759 = arith.mulf %758, %543 : vector<2x32xf32>
    %760 = arith.addf %756, %759 : vector<2x32xf32>
    %761 = arith.mulf %725, %733 : vector<2x1xf32>
    %762 = vector.broadcast %761 : vector<2x1xf32> to vector<2x32xf32>
    %763 = arith.mulf %762, %546 : vector<2x32xf32>
    %764 = arith.addf %760, %763 : vector<2x32xf32>
    %c0_153 = arith.constant 0 : index
    %c0_154 = arith.constant 0 : index
    %765 = vector.load %arg24[%c0_153, %c0_154] : memref<32x32xf32, #tpu.memory_space<vmem>>, vector<32x32xf32>
    %c0_155 = arith.constant 0 : index
    %c0_156 = arith.constant 0 : index
    %766 = vector.load %arg25[%c0_155, %c0_156] : memref<1x32xf32, #tpu.memory_space<vmem>>, vector<1x32xf32>
    %c0_157 = arith.constant 0 : index
    %c0_158 = arith.constant 0 : index
    %767 = vector.load %arg26[%c0_157, %c0_158] : memref<1x32xf32, #tpu.memory_space<vmem>>, vector<1x32xf32>
    %c0_159 = arith.constant 0 : index
    %c0_160 = arith.constant 0 : index
    %768 = vector.load %arg27[%c0_159, %c0_160] : memref<1x1xf32, #tpu.memory_space<vmem>>, vector<1x1xf32>
    %cst_161 = arith.constant dense<0.000000e+00> : vector<2x32xf32>
    %769 = tpu.matmul %549, %765, %cst_161 {dimension_numbers = #tpu.dot_dimension_numbers<[1], [0], [0], [1], [0, 0, 1, 1], [], []>} : vector<2x32xf32>, vector<32x32xf32>, vector<2x32xf32> -> vector<2x32xf32>
    %770 = vector.broadcast %766 : vector<1x32xf32> to vector<2x32xf32>
    %771 = arith.addf %769, %770 : vector<2x32xf32>
    %772 = math.tanh %771 : vector<2x32xf32>
    %773 = vector.broadcast %767 : vector<1x32xf32> to vector<2x32xf32>
    %774 = arith.mulf %772, %773 : vector<2x32xf32>
    %cst_162 = arith.constant dense<0.000000e+00> : vector<2xf32>
    %775 = vector.multi_reduction <add>, %774, %cst_162 [1] : vector<2x32xf32> to vector<2xf32>
    %776 = vector.shape_cast %775 : vector<2xf32> to vector<2x1xf32>
    %777 = vector.broadcast %768 : vector<1x1xf32> to vector<2x1xf32>
    %778 = arith.addf %776, %777 : vector<2x1xf32>
    %cst_163 = arith.constant dense<0.000000e+00> : vector<2x32xf32>
    %779 = tpu.matmul %552, %765, %cst_163 {dimension_numbers = #tpu.dot_dimension_numbers<[1], [0], [0], [1], [0, 0, 1, 1], [], []>} : vector<2x32xf32>, vector<32x32xf32>, vector<2x32xf32> -> vector<2x32xf32>
    %780 = vector.broadcast %766 : vector<1x32xf32> to vector<2x32xf32>
    %781 = arith.addf %779, %780 : vector<2x32xf32>
    %782 = math.tanh %781 : vector<2x32xf32>
    %783 = vector.broadcast %767 : vector<1x32xf32> to vector<2x32xf32>
    %784 = arith.mulf %782, %783 : vector<2x32xf32>
    %cst_164 = arith.constant dense<0.000000e+00> : vector<2xf32>
    %785 = vector.multi_reduction <add>, %784, %cst_164 [1] : vector<2x32xf32> to vector<2xf32>
    %786 = vector.shape_cast %785 : vector<2xf32> to vector<2x1xf32>
    %787 = vector.broadcast %768 : vector<1x1xf32> to vector<2x1xf32>
    %788 = arith.addf %786, %787 : vector<2x1xf32>
    %cst_165 = arith.constant dense<0.000000e+00> : vector<2x32xf32>
    %789 = tpu.matmul %555, %765, %cst_165 {dimension_numbers = #tpu.dot_dimension_numbers<[1], [0], [0], [1], [0, 0, 1, 1], [], []>} : vector<2x32xf32>, vector<32x32xf32>, vector<2x32xf32> -> vector<2x32xf32>
    %790 = vector.broadcast %766 : vector<1x32xf32> to vector<2x32xf32>
    %791 = arith.addf %789, %790 : vector<2x32xf32>
    %792 = math.tanh %791 : vector<2x32xf32>
    %793 = vector.broadcast %767 : vector<1x32xf32> to vector<2x32xf32>
    %794 = arith.mulf %792, %793 : vector<2x32xf32>
    %cst_166 = arith.constant dense<0.000000e+00> : vector<2xf32>
    %795 = vector.multi_reduction <add>, %794, %cst_166 [1] : vector<2x32xf32> to vector<2xf32>
    %796 = vector.shape_cast %795 : vector<2xf32> to vector<2x1xf32>
    %797 = vector.broadcast %768 : vector<1x1xf32> to vector<2x1xf32>
    %798 = arith.addf %796, %797 : vector<2x1xf32>
    %cst_167 = arith.constant dense<0.000000e+00> : vector<2x32xf32>
    %799 = tpu.matmul %558, %765, %cst_167 {dimension_numbers = #tpu.dot_dimension_numbers<[1], [0], [0], [1], [0, 0, 1, 1], [], []>} : vector<2x32xf32>, vector<32x32xf32>, vector<2x32xf32> -> vector<2x32xf32>
    %800 = vector.broadcast %766 : vector<1x32xf32> to vector<2x32xf32>
    %801 = arith.addf %799, %800 : vector<2x32xf32>
    %802 = math.tanh %801 : vector<2x32xf32>
    %803 = vector.broadcast %767 : vector<1x32xf32> to vector<2x32xf32>
    %804 = arith.mulf %802, %803 : vector<2x32xf32>
    %cst_168 = arith.constant dense<0.000000e+00> : vector<2xf32>
    %805 = vector.multi_reduction <add>, %804, %cst_168 [1] : vector<2x32xf32> to vector<2xf32>
    %806 = vector.shape_cast %805 : vector<2xf32> to vector<2x1xf32>
    %807 = vector.broadcast %768 : vector<1x1xf32> to vector<2x1xf32>
    %808 = arith.addf %806, %807 : vector<2x1xf32>
    %cst_169 = arith.constant dense<0.000000e+00> : vector<2x32xf32>
    %809 = tpu.matmul %561, %765, %cst_169 {dimension_numbers = #tpu.dot_dimension_numbers<[1], [0], [0], [1], [0, 0, 1, 1], [], []>} : vector<2x32xf32>, vector<32x32xf32>, vector<2x32xf32> -> vector<2x32xf32>
    %810 = vector.broadcast %766 : vector<1x32xf32> to vector<2x32xf32>
    %811 = arith.addf %809, %810 : vector<2x32xf32>
    %812 = math.tanh %811 : vector<2x32xf32>
    %813 = vector.broadcast %767 : vector<1x32xf32> to vector<2x32xf32>
    %814 = arith.mulf %812, %813 : vector<2x32xf32>
    %cst_170 = arith.constant dense<0.000000e+00> : vector<2xf32>
    %815 = vector.multi_reduction <add>, %814, %cst_170 [1] : vector<2x32xf32> to vector<2xf32>
    %816 = vector.shape_cast %815 : vector<2xf32> to vector<2x1xf32>
    %817 = vector.broadcast %768 : vector<1x1xf32> to vector<2x1xf32>
    %818 = arith.addf %816, %817 : vector<2x1xf32>
    %cst_171 = arith.constant dense<0.000000e+00> : vector<2x32xf32>
    %819 = tpu.matmul %564, %765, %cst_171 {dimension_numbers = #tpu.dot_dimension_numbers<[1], [0], [0], [1], [0, 0, 1, 1], [], []>} : vector<2x32xf32>, vector<32x32xf32>, vector<2x32xf32> -> vector<2x32xf32>
    %820 = vector.broadcast %766 : vector<1x32xf32> to vector<2x32xf32>
    %821 = arith.addf %819, %820 : vector<2x32xf32>
    %822 = math.tanh %821 : vector<2x32xf32>
    %823 = vector.broadcast %767 : vector<1x32xf32> to vector<2x32xf32>
    %824 = arith.mulf %822, %823 : vector<2x32xf32>
    %cst_172 = arith.constant dense<0.000000e+00> : vector<2xf32>
    %825 = vector.multi_reduction <add>, %824, %cst_172 [1] : vector<2x32xf32> to vector<2xf32>
    %826 = vector.shape_cast %825 : vector<2xf32> to vector<2x1xf32>
    %827 = vector.broadcast %768 : vector<1x1xf32> to vector<2x1xf32>
    %828 = arith.addf %826, %827 : vector<2x1xf32>
    %cst_173 = arith.constant dense<0.000000e+00> : vector<2x32xf32>
    %829 = tpu.matmul %567, %765, %cst_173 {dimension_numbers = #tpu.dot_dimension_numbers<[1], [0], [0], [1], [0, 0, 1, 1], [], []>} : vector<2x32xf32>, vector<32x32xf32>, vector<2x32xf32> -> vector<2x32xf32>
    %830 = vector.broadcast %766 : vector<1x32xf32> to vector<2x32xf32>
    %831 = arith.addf %829, %830 : vector<2x32xf32>
    %832 = math.tanh %831 : vector<2x32xf32>
    %833 = vector.broadcast %767 : vector<1x32xf32> to vector<2x32xf32>
    %834 = arith.mulf %832, %833 : vector<2x32xf32>
    %cst_174 = arith.constant dense<0.000000e+00> : vector<2xf32>
    %835 = vector.multi_reduction <add>, %834, %cst_174 [1] : vector<2x32xf32> to vector<2xf32>
    %836 = vector.shape_cast %835 : vector<2xf32> to vector<2x1xf32>
    %837 = vector.broadcast %768 : vector<1x1xf32> to vector<2x1xf32>
    %838 = arith.addf %836, %837 : vector<2x1xf32>
    %cst_175 = arith.constant dense<0.000000e+00> : vector<2x32xf32>
    %839 = tpu.matmul %570, %765, %cst_175 {dimension_numbers = #tpu.dot_dimension_numbers<[1], [0], [0], [1], [0, 0, 1, 1], [], []>} : vector<2x32xf32>, vector<32x32xf32>, vector<2x32xf32> -> vector<2x32xf32>
    %840 = vector.broadcast %766 : vector<1x32xf32> to vector<2x32xf32>
    %841 = arith.addf %839, %840 : vector<2x32xf32>
    %842 = math.tanh %841 : vector<2x32xf32>
    %843 = vector.broadcast %767 : vector<1x32xf32> to vector<2x32xf32>
    %844 = arith.mulf %842, %843 : vector<2x32xf32>
    %cst_176 = arith.constant dense<0.000000e+00> : vector<2xf32>
    %845 = vector.multi_reduction <add>, %844, %cst_176 [1] : vector<2x32xf32> to vector<2xf32>
    %846 = vector.shape_cast %845 : vector<2xf32> to vector<2x1xf32>
    %847 = vector.broadcast %768 : vector<1x1xf32> to vector<2x1xf32>
    %848 = arith.addf %846, %847 : vector<2x1xf32>
    %849 = arith.maximumf %778, %788 : vector<2x1xf32>
    %850 = arith.maximumf %849, %798 : vector<2x1xf32>
    %851 = arith.maximumf %850, %808 : vector<2x1xf32>
    %852 = arith.maximumf %851, %818 : vector<2x1xf32>
    %853 = arith.maximumf %852, %828 : vector<2x1xf32>
    %854 = arith.maximumf %853, %838 : vector<2x1xf32>
    %855 = arith.maximumf %854, %848 : vector<2x1xf32>
    %856 = arith.subf %778, %855 : vector<2x1xf32>
    %857 = math.exp %856 : vector<2x1xf32>
    %858 = arith.subf %788, %855 : vector<2x1xf32>
    %859 = math.exp %858 : vector<2x1xf32>
    %860 = arith.subf %798, %855 : vector<2x1xf32>
    %861 = math.exp %860 : vector<2x1xf32>
    %862 = arith.subf %808, %855 : vector<2x1xf32>
    %863 = math.exp %862 : vector<2x1xf32>
    %864 = arith.subf %818, %855 : vector<2x1xf32>
    %865 = math.exp %864 : vector<2x1xf32>
    %866 = arith.subf %828, %855 : vector<2x1xf32>
    %867 = math.exp %866 : vector<2x1xf32>
    %868 = arith.subf %838, %855 : vector<2x1xf32>
    %869 = math.exp %868 : vector<2x1xf32>
    %870 = arith.subf %848, %855 : vector<2x1xf32>
    %871 = math.exp %870 : vector<2x1xf32>
    %872 = arith.addf %857, %859 : vector<2x1xf32>
    %873 = arith.addf %872, %861 : vector<2x1xf32>
    %874 = arith.addf %873, %863 : vector<2x1xf32>
    %875 = arith.addf %874, %865 : vector<2x1xf32>
    %876 = arith.addf %875, %867 : vector<2x1xf32>
    %877 = arith.addf %876, %869 : vector<2x1xf32>
    %878 = arith.addf %877, %871 : vector<2x1xf32>
    %879 = tpu.reciprocal %878 {approx = true} : vector<2x1xf32> -> vector<2x1xf32>
    %880 = arith.mulf %857, %879 : vector<2x1xf32>
    %881 = vector.broadcast %880 : vector<2x1xf32> to vector<2x32xf32>
    %882 = arith.mulf %881, %549 : vector<2x32xf32>
    %883 = arith.mulf %859, %879 : vector<2x1xf32>
    %884 = vector.broadcast %883 : vector<2x1xf32> to vector<2x32xf32>
    %885 = arith.mulf %884, %552 : vector<2x32xf32>
    %886 = arith.addf %882, %885 : vector<2x32xf32>
    %887 = arith.mulf %861, %879 : vector<2x1xf32>
    %888 = vector.broadcast %887 : vector<2x1xf32> to vector<2x32xf32>
    %889 = arith.mulf %888, %555 : vector<2x32xf32>
    %890 = arith.addf %886, %889 : vector<2x32xf32>
    %891 = arith.mulf %863, %879 : vector<2x1xf32>
    %892 = vector.broadcast %891 : vector<2x1xf32> to vector<2x32xf32>
    %893 = arith.mulf %892, %558 : vector<2x32xf32>
    %894 = arith.addf %890, %893 : vector<2x32xf32>
    %895 = arith.mulf %865, %879 : vector<2x1xf32>
    %896 = vector.broadcast %895 : vector<2x1xf32> to vector<2x32xf32>
    %897 = arith.mulf %896, %561 : vector<2x32xf32>
    %898 = arith.addf %894, %897 : vector<2x32xf32>
    %899 = arith.mulf %867, %879 : vector<2x1xf32>
    %900 = vector.broadcast %899 : vector<2x1xf32> to vector<2x32xf32>
    %901 = arith.mulf %900, %564 : vector<2x32xf32>
    %902 = arith.addf %898, %901 : vector<2x32xf32>
    %903 = arith.mulf %869, %879 : vector<2x1xf32>
    %904 = vector.broadcast %903 : vector<2x1xf32> to vector<2x32xf32>
    %905 = arith.mulf %904, %567 : vector<2x32xf32>
    %906 = arith.addf %902, %905 : vector<2x32xf32>
    %907 = arith.mulf %871, %879 : vector<2x1xf32>
    %908 = vector.broadcast %907 : vector<2x1xf32> to vector<2x32xf32>
    %909 = arith.mulf %908, %570 : vector<2x32xf32>
    %910 = arith.addf %906, %909 : vector<2x32xf32>
    %911 = tpu.concatenate %764, %910 in 1 : vector<2x32xf32>, vector<2x32xf32> -> vector<2x64xf32>
    %c0_177 = arith.constant 0 : index
    %c0_178 = arith.constant 0 : index
    %912 = vector.load %arg28[%c0_177, %c0_178] : memref<64x64xf32, #tpu.memory_space<vmem>>, vector<64x64xf32>
    %cst_179 = arith.constant dense<0.000000e+00> : vector<2x64xf32>
    %913 = tpu.matmul %911, %912, %cst_179 {dimension_numbers = #tpu.dot_dimension_numbers<[1], [0], [0], [1], [0, 0, 1, 1], [], []>} : vector<2x64xf32>, vector<64x64xf32>, vector<2x64xf32> -> vector<2x64xf32>
    %c0_180 = arith.constant 0 : index
    %c0_181 = arith.constant 0 : index
    %914 = vector.load %arg29[%c0_180, %c0_181] : memref<1x64xf32, #tpu.memory_space<vmem>>, vector<1x64xf32>
    %915 = vector.broadcast %914 : vector<1x64xf32> to vector<2x64xf32>
    %916 = arith.addf %913, %915 : vector<2x64xf32>
    %cst_182 = arith.constant 0.000000e+00 : f32
    %917 = vector.broadcast %cst_182 : f32 to vector<2x64xf32>
    %918 = arith.maximumf %916, %917 : vector<2x64xf32>
    %c0_183 = arith.constant 0 : index
    %c0_184 = arith.constant 0 : index
    %919 = vector.load %arg30[%c0_183, %c0_184] : memref<64x16xf32, #tpu.memory_space<vmem>>, vector<64x16xf32>
    %cst_185 = arith.constant dense<0.000000e+00> : vector<2x16xf32>
    %920 = tpu.matmul %918, %919, %cst_185 {dimension_numbers = #tpu.dot_dimension_numbers<[1], [0], [0], [1], [0, 0, 1, 1], [], []>} : vector<2x64xf32>, vector<64x16xf32>, vector<2x16xf32> -> vector<2x16xf32>
    %c0_186 = arith.constant 0 : index
    %c0_187 = arith.constant 0 : index
    %921 = vector.load %arg31[%c0_186, %c0_187] : memref<1x16xf32, #tpu.memory_space<vmem>>, vector<1x16xf32>
    %922 = vector.broadcast %921 : vector<1x16xf32> to vector<2x16xf32>
    %923 = arith.addf %920, %922 : vector<2x16xf32>
    %cst_188 = arith.constant 0.000000e+00 : f32
    %924 = vector.broadcast %cst_188 : f32 to vector<2x16xf32>
    %925 = arith.maximumf %923, %924 : vector<2x16xf32>
    %926 = tpu.concatenate %925, %229, %289 in 1 : vector<2x16xf32>, vector<2x8xf32>, vector<2x8xf32> -> vector<2x32xf32>
    %c0_189 = arith.constant 0 : index
    %c0_190 = arith.constant 0 : index
    %927 = vector.load %arg32[%c0_189, %c0_190] : memref<32x2xf32, #tpu.memory_space<vmem>>, vector<32x2xf32>
    %cst_191 = arith.constant dense<0.000000e+00> : vector<2x2xf32>
    %928 = tpu.matmul %926, %927, %cst_191 {dimension_numbers = #tpu.dot_dimension_numbers<[1], [0], [0], [1], [0, 0, 1, 1], [], []>} : vector<2x32xf32>, vector<32x2xf32>, vector<2x2xf32> -> vector<2x2xf32>
    %c0_192 = arith.constant 0 : index
    %c0_193 = arith.constant 0 : index
    %929 = vector.load %arg33[%c0_192, %c0_193] : memref<1x2xf32, #tpu.memory_space<vmem>>, vector<1x2xf32>
    %930 = vector.broadcast %929 : vector<1x2xf32> to vector<2x2xf32>
    %931 = arith.addf %928, %930 : vector<2x2xf32>
    %c0_194 = arith.constant 0 : index
    %c0_195 = arith.constant 0 : index
    %932 = vector.load %arg34[%c0_194, %c0_195] : memref<2x2xf32, #tpu.memory_space<vmem>>, vector<2x2xf32>
    tpu.vector_store %arg34[%c0_194, %c0_195], %931 {strides = array<i32>} : memref<2x2xf32, #tpu.memory_space<vmem>>, vector<2x2xf32>,
    return
  }
  func.func @transform_0(%arg0: i32) -> (i32, i32) {
    %c0_i32 = arith.constant 0 : i32
    %c0_i32_0 = arith.constant 0 : i32
    %c0_i32_1 = arith.constant 0 : i32
    return %c0_i32, %c0_i32_0 : i32, i32
  }
  func.func @transform_1(%arg0: i32) -> (i32, i32) {
    %c0_i32 = arith.constant 0 : i32
    %c0_i32_0 = arith.constant 0 : i32
    %c0_i32_1 = arith.constant 0 : i32
    return %c0_i32, %c0_i32_0 : i32, i32
  }
  func.func @transform_2(%arg0: i32) -> (i32, i32) {
    %c0_i32 = arith.constant 0 : i32
    %c0_i32_0 = arith.constant 0 : i32
    %c0_i32_1 = arith.constant 0 : i32
    return %c0_i32, %c0_i32_0 : i32, i32
  }
  func.func @transform_3(%arg0: i32) -> (i32, i32) {
    %c0_i32 = arith.constant 0 : i32
    %c0_i32_0 = arith.constant 0 : i32
    %c0_i32_1 = arith.constant 0 : i32
    return %c0_i32, %c0_i32_0 : i32, i32
  }
  func.func @transform_4(%arg0: i32) -> (i32, i32) {
    %c0_i32 = arith.constant 0 : i32
    %c0_i32_0 = arith.constant 0 : i32
    %c0_i32_1 = arith.constant 0 : i32
    return %c0_i32, %c0_i32_0 : i32, i32
  }
  func.func @transform_5(%arg0: i32) -> (i32, i32) {
    %c0_i32 = arith.constant 0 : i32
    %c0_i32_0 = arith.constant 0 : i32
    %c0_i32_1 = arith.constant 0 : i32
    return %c0_i32, %c0_i32_0 : i32, i32
  }
  func.func @transform_6(%arg0: i32) -> (i32, i32) {
    %c0_i32 = arith.constant 0 : i32
    %c0_i32_0 = arith.constant 0 : i32
    %c0_i32_1 = arith.constant 0 : i32
    return %c0_i32, %c0_i32_0 : i32, i32
  }
  func.func @transform_7(%arg0: i32) -> (i32, i32) {
    %c0_i32 = arith.constant 0 : i32
    %c0_i32_0 = arith.constant 0 : i32
    %c0_i32_1 = arith.constant 0 : i32
    return %c0_i32, %c0_i32_0 : i32, i32
  }
  func.func @transform_8(%arg0: i32) -> (i32, i32) {
    %c0_i32 = arith.constant 0 : i32
    %c0_i32_0 = arith.constant 0 : i32
    %c0_i32_1 = arith.constant 0 : i32
    return %c0_i32, %c0_i32_0 : i32, i32
  }
  func.func @transform_9(%arg0: i32) -> (i32, i32) {
    %c0_i32 = arith.constant 0 : i32
    %c0_i32_0 = arith.constant 0 : i32
    %c0_i32_1 = arith.constant 0 : i32
    return %c0_i32, %c0_i32_0 : i32, i32
  }
  func.func @transform_10(%arg0: i32) -> (i32, i32) {
    %c0_i32 = arith.constant 0 : i32
    %c0_i32_0 = arith.constant 0 : i32
    %c0_i32_1 = arith.constant 0 : i32
    return %c0_i32, %c0_i32_0 : i32, i32
  }
  func.func @transform_11(%arg0: i32) -> (i32, i32) {
    %c0_i32 = arith.constant 0 : i32
    %c0_i32_0 = arith.constant 0 : i32
    %c0_i32_1 = arith.constant 0 : i32
    return %c0_i32, %c0_i32_0 : i32, i32
  }
  func.func @transform_12(%arg0: i32) -> (i32, i32) {
    %c0_i32 = arith.constant 0 : i32
    %c0_i32_0 = arith.constant 0 : i32
    %c0_i32_1 = arith.constant 0 : i32
    return %c0_i32, %c0_i32_0 : i32, i32
  }
  func.func @transform_13(%arg0: i32) -> (i32, i32) {
    %c0_i32 = arith.constant 0 : i32
    %c0_i32_0 = arith.constant 0 : i32
    %c0_i32_1 = arith.constant 0 : i32
    return %c0_i32, %c0_i32_0 : i32, i32
  }
  func.func @transform_14(%arg0: i32) -> (i32, i32) {
    %c0_i32 = arith.constant 0 : i32
    %c0_i32_0 = arith.constant 0 : i32
    %c0_i32_1 = arith.constant 0 : i32
    return %c0_i32, %c0_i32_0 : i32, i32
  }
  func.func @transform_15(%arg0: i32) -> (i32, i32) {
    %c0_i32 = arith.constant 0 : i32
    %c0_i32_0 = arith.constant 0 : i32
    %c0_i32_1 = arith.constant 0 : i32
    return %c0_i32, %c0_i32_0 : i32, i32
  }
  func.func @transform_16(%arg0: i32) -> (i32, i32) {
    %c0_i32 = arith.constant 0 : i32
    %c0_i32_0 = arith.constant 0 : i32
    %c0_i32_1 = arith.constant 0 : i32
    return %c0_i32, %c0_i32_0 : i32, i32
  }
  func.func @transform_17(%arg0: i32) -> (i32, i32) {
    %c0_i32 = arith.constant 0 : i32
    %c0_i32_0 = arith.constant 0 : i32
    %c0_i32_1 = arith.constant 0 : i32
    return %c0_i32, %c0_i32_0 : i32, i32
  }
  func.func @transform_18(%arg0: i32) -> (i32, i32) {
    %c0_i32 = arith.constant 0 : i32
    %c0_i32_0 = arith.constant 0 : i32
    %c0_i32_1 = arith.constant 0 : i32
    return %c0_i32, %c0_i32_0 : i32, i32
  }
  func.func @transform_19(%arg0: i32) -> (i32, i32) {
    %c0_i32 = arith.constant 0 : i32
    %c0_i32_0 = arith.constant 0 : i32
    %c0_i32_1 = arith.constant 0 : i32
    return %c0_i32, %c0_i32_0 : i32, i32
  }
  func.func @transform_20(%arg0: i32) -> (i32, i32) {
    %c0_i32 = arith.constant 0 : i32
    %c0_i32_0 = arith.constant 0 : i32
    %c0_i32_1 = arith.constant 0 : i32
    return %c0_i32, %c0_i32_0 : i32, i32
  }
  func.func @transform_21(%arg0: i32) -> (i32, i32) {
    %c0_i32 = arith.constant 0 : i32
    %c0_i32_0 = arith.constant 0 : i32
    %c0_i32_1 = arith.constant 0 : i32
    return %c0_i32, %c0_i32_0 : i32, i32
  }
  func.func @transform_22(%arg0: i32) -> (i32, i32) {
    %c0_i32 = arith.constant 0 : i32
    %c0_i32_0 = arith.constant 0 : i32
    %c0_i32_1 = arith.constant 0 : i32
    return %c0_i32, %c0_i32_0 : i32, i32
  }
  func.func @transform_23(%arg0: i32) -> (i32, i32) {
    %c0_i32 = arith.constant 0 : i32
    %c0_i32_0 = arith.constant 0 : i32
    %c0_i32_1 = arith.constant 0 : i32
    return %c0_i32, %c0_i32_0 : i32, i32
  }
  func.func @transform_24(%arg0: i32) -> (i32, i32) {
    %c0_i32 = arith.constant 0 : i32
    %c0_i32_0 = arith.constant 0 : i32
    %c0_i32_1 = arith.constant 0 : i32
    return %c0_i32, %c0_i32_0 : i32, i32
  }
  func.func @transform_25(%arg0: i32) -> (i32, i32) {
    %c0_i32 = arith.constant 0 : i32
    %c0_i32_0 = arith.constant 0 : i32
    %c0_i32_1 = arith.constant 0 : i32
    return %c0_i32, %c0_i32_0 : i32, i32
  }
  func.func @transform_26(%arg0: i32) -> (i32, i32) {
    %c0_i32 = arith.constant 0 : i32
    %c0_i32_0 = arith.constant 0 : i32
    %c0_i32_1 = arith.constant 0 : i32
    return %c0_i32, %c0_i32_0 : i32, i32
  }
  func.func @transform_27(%arg0: i32) -> (i32, i32) {
    %c0_i32 = arith.constant 0 : i32
    %c0_i32_0 = arith.constant 0 : i32
    %c0_i32_1 = arith.constant 0 : i32
    return %c0_i32, %c0_i32_0 : i32, i32
  }
  func.func @transform_28(%arg0: i32) -> (i32, i32) {
    %c0_i32 = arith.constant 0 : i32
    %c0_i32_0 = arith.constant 0 : i32
    %c0_i32_1 = arith.constant 0 : i32
    return %c0_i32, %c0_i32_0 : i32, i32
  }
  func.func @transform_29(%arg0: i32) -> (i32, i32) {
    %c0_i32 = arith.constant 0 : i32
    %c0_i32_0 = arith.constant 0 : i32
    %c0_i32_1 = arith.constant 0 : i32
    return %c0_i32, %c0_i32_0 : i32, i32
  }
  func.func @transform_30(%arg0: i32) -> (i32, i32) {
    %c0_i32 = arith.constant 0 : i32
    %c0_i32_0 = arith.constant 0 : i32
    %c0_i32_1 = arith.constant 0 : i32
    return %c0_i32, %c0_i32_0 : i32, i32
  }
  func.func @transform_31(%arg0: i32) -> (i32, i32) {
    %c0_i32 = arith.constant 0 : i32
    %c0_i32_0 = arith.constant 0 : i32
    %c0_i32_1 = arith.constant 0 : i32
    return %c0_i32, %c0_i32_0 : i32, i32
  }
  func.func @transform_32(%arg0: i32) -> (i32, i32) {
    %c0_i32 = arith.constant 0 : i32
    %c0_i32_0 = arith.constant 0 : i32
    %c0_i32_1 = arith.constant 0 : i32
    return %c0_i32, %c0_i32_0 : i32, i32
  }
  func.func @transform_33(%arg0: i32) -> (i32, i32) {
    %c0_i32 = arith.constant 0 : i32
    %c0_i32_0 = arith.constant 0 : i32
    %c0_i32_1 = arith.constant 0 : i32
    return %c0_i32, %c0_i32_0 : i32, i32
  }
}

</mosaic_0001>

<llo_original>
// kernel: classifier_forward.1
$region0: #{classifier_forward.1}
  #allocation0 [shape = 'u32[]', space=smem, size = 0x4, offset = 0x4, fixed_abs, tag = 'smem constant byte address 0x4 - core index']
  #allocation1 [shape = 'u32[144,128]{1,0:T(1,128)}', space=vmem, size = 0x12000, scoped, tag = 'internal scratch']
  #allocation2 [shape = 'f32[1,1]{1,0:T(1,128)S(1)}', space=vmem, size = 0x200, scoped, tag = 'scoped memory for classifier_forward.1']
  #allocation3 [shape = 'f32[1,1]{1,0:T(1,128)S(1)}', space=vmem, size = 0x200, scoped, tag = 'scoped memory for classifier_forward.1']
  #allocation4 [shape = 'f32[1,1]{1,0:T(1,128)S(1)}', space=vmem, size = 0x200, scoped, tag = 'scoped memory for classifier_forward.1']
  #allocation5 [shape = 'f32[1,1]{1,0:T(1,128)S(1)}', space=vmem, size = 0x200, scoped, tag = 'scoped memory for classifier_forward.1']
  %s0 = inlined_call_operand.smem [shape: u32[34], index: -1, kind: input, shape index: {}]
  %s1 = sld [smem:[%s0]]
  %s2 = scalar_lea.smem %s0, 1
  %s3 = sld [smem:[%s2]]
  %s4 = scalar_lea.smem %s0, 2
  %s5 = sld [smem:[%s4]]
  %s6 = scalar_lea.smem %s0, 3
  %s7 = sld [smem:[%s6]]
  %s8 = scalar_lea.smem %s0, 4
  %s9 = sld [smem:[%s8]]
  %s10 = scalar_lea.smem %s0, 5
  %s11 = sld [smem:[%s10]]
  %s12 = scalar_lea.smem %s0, 6
  %s13 = sld [smem:[%s12]]
  %s14 = scalar_lea.smem %s0, 7
  %s15 = sld [smem:[%s14]]
  %s16 = scalar_lea.smem %s0, 8
  %s17 = sld [smem:[%s16]]
  %s18 = scalar_lea.smem %s0, 9
  %s19 = sld [smem:[%s18]]
  %s20 = scalar_lea.smem %s0, 10
  %s21 = sld [smem:[%s20]]
  %s22 = scalar_lea.smem %s0, 11
  %s23 = sld [smem:[%s22]]
  %s24 = scalar_lea.smem %s0, 12
  %s25 = sld [smem:[%s24]]
  %s26 = scalar_lea.smem %s0, 13
  %s27 = sld [smem:[%s26]]
  %s28 = scalar_lea.smem %s0, 14
  %s29 = sld [smem:[%s28]]
  %s30 = scalar_lea.smem %s0, 15
  %s31 = sld [smem:[%s30]]
  %s32 = scalar_lea.smem %s0, 16
  %s33 = sld [smem:[%s32]]
  %s34 = scalar_lea.smem %s0, 17
  %s35 = sld [smem:[%s34]]
  %s36 = scalar_lea.smem %s0, 18
  %s37 = sld [smem:[%s36]]
  %s38 = scalar_lea.smem %s0, 19
  %s39 = sld [smem:[%s38]]
  %s40 = scalar_lea.smem %s0, 20
  %s41 = sld [smem:[%s40]]
  %s42 = scalar_lea.smem %s0, 21
  %s43 = sld [smem:[%s42]]
  %s44 = scalar_lea.smem %s0, 22
  %s45 = sld [smem:[%s44]]
  %s46 = scalar_lea.smem %s0, 23
  %s47 = sld [smem:[%s46]]
  %s48 = scalar_lea.smem %s0, 24
  %s49 = sld [smem:[%s48]]
  %s50 = scalar_lea.smem %s0, 25
  %s51 = sld [smem:[%s50]]
  %s52 = scalar_lea.smem %s0, 26
  %s53 = sld [smem:[%s52]]
  %s54 = scalar_lea.smem %s0, 27
  %s55 = sld [smem:[%s54]]
  %s56 = scalar_lea.smem %s0, 28
  %s57 = sld [smem:[%s56]]
  %s58 = scalar_lea.smem %s0, 29
  %s59 = sld [smem:[%s58]]
  %s60 = scalar_lea.smem %s0, 30
  %s61 = sld [smem:[%s60]]
  %s62 = scalar_lea.smem %s0, 31
  %s63 = sld [smem:[%s62]]
  %s64 = scalar_lea.smem %s0, 32
  %s65 = sld [smem:[%s64]]
  %s66 = scalar_lea.smem %s0, 33
  %s67 = sld [smem:[%s66]]
  %s68 = sld [smem:[#allocation0]]
  $region142: #{classifier_forward.1} parent=0
    _
  %s70 = ssub.s32 1, %s68
  %s71 = scalar_select 0, %s70, %s68
  %v72 = vstv %s27
  %73 = vst [vmem:[#allocation2] sm:$0x1] %v72
  %v74 = vstv %s31
  %75 = vst [vmem:[#allocation3] sm:$0x1] %v74
  %v76 = vstv %s45
  %77 = vst [vmem:[#allocation4] sm:$0x1] %v76
  %v78 = vstv %s53
  %79 = vst [vmem:[#allocation5] sm:$0x1] %v78
  $region1: #{classifier_forward.1} parent=0
    #allocation6 [shape = 'u8[1024]{0}', space=vmem, size = 0x400, scoped, tag = 'output window, operand 0, single buffered']
    #allocation7 [shape = 's32[1]{0}', space=sflag, size = 0x4, scoped, tag = 'scoped memory for classifier_forward.1']
    %80 = vsyncpa [#allocation7], 0
    // Predicated region
    $region2: #{classifier_forward.1} parent=1 // pred_check
      _
    $region3: #{classifier_forward.1} parent=1 // pred_check_branch
      %82 = sbr.rel (0) target = $region5
    $region4: #{classifier_forward.1} parent=1 // pred_region
      _
    $region5: #{classifier_forward.1} parent=1 // pred_fallthru
      _
    // Predicated region
    $region6: #{classifier_forward.1} parent=1 // pred_check
      _
    $region7: #{classifier_forward.1} parent=1 // pred_check_branch
      %84 = sbr.rel (0) target = $region9
    $region8: #{classifier_forward.1} parent=1 // pred_region
      _
    $region9: #{classifier_forward.1} parent=1 // pred_fallthru
      _
    // Predicated region
    $region10: #{classifier_forward.1} parent=1 // pred_check
      _
    $region11: #{classifier_forward.1} parent=1 // pred_check_branch
      %86 = sbr.rel (0) target = $region13
    $region12: #{classifier_forward.1} parent=1 // pred_region
      _
    $region13: #{classifier_forward.1} parent=1 // pred_fallthru
      _
    // Predicated region
    $region14: #{classifier_forward.1} parent=1 // pred_check
      _
    $region15: #{classifier_forward.1} parent=1 // pred_check_branch
      %88 = sbr.rel (0) target = $region17
    $region16: #{classifier_forward.1} parent=1 // pred_region
      _
    $region17: #{classifier_forward.1} parent=1 // pred_fallthru
      _
    // Predicated region
    $region18: #{classifier_forward.1} parent=1 // pred_check
      _
    $region19: #{classifier_forward.1} parent=1 // pred_check_branch
      %90 = sbr.rel (0) target = $region21
    $region20: #{classifier_forward.1} parent=1 // pred_region
      _
    $region21: #{classifier_forward.1} parent=1 // pred_fallthru
      _
    // Predicated region
    $region22: #{classifier_forward.1} parent=1 // pred_check
      _
    $region23: #{classifier_forward.1} parent=1 // pred_check_branch
      %92 = sbr.rel (0) target = $region25
    $region24: #{classifier_forward.1} parent=1 // pred_region
      _
    $region25: #{classifier_forward.1} parent=1 // pred_fallthru
      _
    // Predicated region
    $region26: #{classifier_forward.1} parent=1 // pred_check
      _
    $region27: #{classifier_forward.1} parent=1 // pred_check_branch
      %94 = sbr.rel (0) target = $region29
    $region28: #{classifier_forward.1} parent=1 // pred_region
      _
    $region29: #{classifier_forward.1} parent=1 // pred_fallthru
      _
    // Predicated region
    $region30: #{classifier_forward.1} parent=1 // pred_check
      _
    $region31: #{classifier_forward.1} parent=1 // pred_check_branch
      %96 = sbr.rel (0) target = $region33
    $region32: #{classifier_forward.1} parent=1 // pred_region
      _
    $region33: #{classifier_forward.1} parent=1 // pred_fallthru
      _
    // Predicated region
    $region34: #{classifier_forward.1} parent=1 // pred_check
      _
    $region35: #{classifier_forward.1} parent=1 // pred_check_branch
      %98 = sbr.rel (0) target = $region37
    $region36: #{classifier_forward.1} parent=1 // pred_region
      _
    $region37: #{classifier_forward.1} parent=1 // pred_fallthru
      _
    // Predicated region
    $region38: #{classifier_forward.1} parent=1 // pred_check
      _
    $region39: #{classifier_forward.1} parent=1 // pred_check_branch
      %100 = sbr.rel (0) target = $region41
    $region40: #{classifier_forward.1} parent=1 // pred_region
      _
    $region41: #{classifier_forward.1} parent=1 // pred_fallthru
      _
    // Predicated region
    $region42: #{classifier_forward.1} parent=1 // pred_check
      _
    $region43: #{classifier_forward.1} parent=1 // pred_check_branch
      %102 = sbr.rel (0) target = $region45
    $region44: #{classifier_forward.1} parent=1 // pred_region
      _
    $region45: #{classifier_forward.1} parent=1 // pred_fallthru
      _
    // Predicated region
    $region46: #{classifier_forward.1} parent=1 // pred_check
      _
    $region47: #{classifier_forward.1} parent=1 // pred_check_branch
      %104 = sbr.rel (0) target = $region49
    $region48: #{classifier_forward.1} parent=1 // pred_region
      _
    $region49: #{classifier_forward.1} parent=1 // pred_fallthru
      _
    // Predicated region
    $region50: #{classifier_forward.1} parent=1 // pred_check
      _
    $region51: #{classifier_forward.1} parent=1 // pred_check_branch
      %106 = sbr.rel (0) target = $region53
    $region52: #{classifier_forward.1} parent=1 // pred_region
      _
    $region53: #{classifier_forward.1} parent=1 // pred_fallthru
      _
    // Predicated region
    $region54: #{classifier_forward.1} parent=1 // pred_check
      _
    $region55: #{classifier_forward.1} parent=1 // pred_check_branch
      %108 = sbr.rel (0) target = $region57
    $region56: #{classifier_forward.1} parent=1 // pred_region
      _
    $region57: #{classifier_forward.1} parent=1 // pred_fallthru
      _
    // Predicated region
    $region58: #{classifier_forward.1} parent=1 // pred_check
      _
    $region59: #{classifier_forward.1} parent=1 // pred_check_branch
      %110 = sbr.rel (0) target = $region61
    $region60: #{classifier_forward.1} parent=1 // pred_region
      _
    $region61: #{classifier_forward.1} parent=1 // pred_fallthru
      _
    // Predicated region
    $region62: #{classifier_forward.1} parent=1 // pred_check
      _
    $region63: #{classifier_forward.1} parent=1 // pred_check_branch
      %112 = sbr.rel (0) target = $region65
    $region64: #{classifier_forward.1} parent=1 // pred_region
      _
    $region65: #{classifier_forward.1} parent=1 // pred_fallthru
      _
    // Predicated region
    $region66: #{classifier_forward.1} parent=1 // pred_check
      _
    $region67: #{classifier_forward.1} parent=1 // pred_check_branch
      %114 = sbr.rel (0) target = $region69
    $region68: #{classifier_forward.1} parent=1 // pred_region
      _
    $region69: #{classifier_forward.1} parent=1 // pred_fallthru
      _
    // Predicated region
    $region70: #{classifier_forward.1} parent=1 // pred_check
      _
    $region71: #{classifier_forward.1} parent=1 // pred_check_branch
      %116 = sbr.rel (0) target = $region73
    $region72: #{classifier_forward.1} parent=1 // pred_region
      _
    $region73: #{classifier_forward.1} parent=1 // pred_fallthru
      _
    // Predicated region
    $region74: #{classifier_forward.1} parent=1 // pred_check
      _
    $region75: #{classifier_forward.1} parent=1 // pred_check_branch
      %118 = sbr.rel (0) target = $region77
    $region76: #{classifier_forward.1} parent=1 // pred_region
      _
    $region77: #{classifier_forward.1} parent=1 // pred_fallthru
      _
    // Predicated region
    $region78: #{classifier_forward.1} parent=1 // pred_check
      _
    $region79: #{classifier_forward.1} parent=1 // pred_check_branch
      %120 = sbr.rel (0) target = $region81
    $region80: #{classifier_forward.1} parent=1 // pred_region
      _
    $region81: #{classifier_forward.1} parent=1 // pred_fallthru
      _
    // Predicated region
    $region82: #{classifier_forward.1} parent=1 // pred_check
      _
    $region83: #{classifier_forward.1} parent=1 // pred_check_branch
      %122 = sbr.rel (0) target = $region85
    $region84: #{classifier_forward.1} parent=1 // pred_region
      _
    $region85: #{classifier_forward.1} parent=1 // pred_fallthru
      _
    // Predicated region
    $region86: #{classifier_forward.1} parent=1 // pred_check
      _
    $region87: #{classifier_forward.1} parent=1 // pred_check_branch
      %124 = sbr.rel (0) target = $region89
    $region88: #{classifier_forward.1} parent=1 // pred_region
      _
    $region89: #{classifier_forward.1} parent=1 // pred_fallthru
      _
    // Predicated region
    $region90: #{classifier_forward.1} parent=1 // pred_check
      _
    $region91: #{classifier_forward.1} parent=1 // pred_check_branch
      %126 = sbr.rel (0) target = $region93
    $region92: #{classifier_forward.1} parent=1 // pred_region
      _
    $region93: #{classifier_forward.1} parent=1 // pred_fallthru
      _
    // Predicated region
    $region94: #{classifier_forward.1} parent=1 // pred_check
      _
    $region95: #{classifier_forward.1} parent=1 // pred_check_branch
      %128 = sbr.rel (0) target = $region97
    $region96: #{classifier_forward.1} parent=1 // pred_region
      _
    $region97: #{classifier_forward.1} parent=1 // pred_fallthru
      _
    // Predicated region
    $region98: #{classifier_forward.1} parent=1 // pred_check
      _
    $region99: #{classifier_forward.1} parent=1 // pred_check_branch
      %130 = sbr.rel (0) target = $region101
    $region100: #{classifier_forward.1} parent=1 // pred_region
      _
    $region101: #{classifier_forward.1} parent=1 // pred_fallthru
      _
    // Predicated region
    $region102: #{classifier_forward.1} parent=1 // pred_check
      _
    $region103: #{classifier_forward.1} parent=1 // pred_check_branch
      %132 = sbr.rel (0) target = $region105
    $region104: #{classifier_forward.1} parent=1 // pred_region
      _
    $region105: #{classifier_forward.1} parent=1 // pred_fallthru
      _
    // Predicated region
    $region106: #{classifier_forward.1} parent=1 // pred_check
      _
    $region107: #{classifier_forward.1} parent=1 // pred_check_branch
      %134 = sbr.rel (0) target = $region109
    $region108: #{classifier_forward.1} parent=1 // pred_region
      _
    $region109: #{classifier_forward.1} parent=1 // pred_fallthru
      _
    // Predicated region
    $region110: #{classifier_forward.1} parent=1 // pred_check
      _
    $region111: #{classifier_forward.1} parent=1 // pred_check_branch
      %136 = sbr.rel (0) target = $region113
    $region112: #{classifier_forward.1} parent=1 // pred_region
      _
    $region113: #{classifier_forward.1} parent=1 // pred_fallthru
      _
    // Predicated region
    $region114: #{classifier_forward.1} parent=1 // pred_check
      _
    $region115: #{classifier_forward.1} parent=1 // pred_check_branch
      %138 = sbr.rel (0) target = $region117
    $region116: #{classifier_forward.1} parent=1 // pred_region
      _
    $region117: #{classifier_forward.1} parent=1 // pred_fallthru
      _
    // Predicated region
    $region118: #{classifier_forward.1} parent=1 // pred_check
      _
    $region119: #{classifier_forward.1} parent=1 // pred_check_branch
      %140 = sbr.rel (0) target = $region121
    $region120: #{classifier_forward.1} parent=1 // pred_region
      _
    $region121: #{classifier_forward.1} parent=1 // pred_fallthru
      _
    // Predicated region
    $region122: #{classifier_forward.1} parent=1 // pred_check
      _
    $region123: #{classifier_forward.1} parent=1 // pred_check_branch
      %142 = sbr.rel (0) target = $region125
    $region124: #{classifier_forward.1} parent=1 // pred_region
      _
    $region125: #{classifier_forward.1} parent=1 // pred_fallthru
      _
    // Predicated region
    $region126: #{classifier_forward.1} parent=1 // pred_check
      _
    $region127: #{classifier_forward.1} parent=1 // pred_check_branch
      %144 = sbr.rel (0) target = $region129
    $region128: #{classifier_forward.1} parent=1 // pred_region
      _
    $region129: #{classifier_forward.1} parent=1 // pred_fallthru
      _
    // Predicated region
    $region130: #{classifier_forward.1} parent=1 // pred_check
      _
    $region131: #{classifier_forward.1} parent=1 // pred_check_branch
      %146 = sbr.rel (0) target = $region133
    $region132: #{classifier_forward.1} parent=1 // pred_region
      _
    $region133: #{classifier_forward.1} parent=1 // pred_fallthru
      _
    %v147 = vld [vmem:[%s7] sm:$0x3]
    %v148 = vld [vmem:[%s1] sm:$0xff]
    %v149 = vld [vmem:[%s1 + $0x8] sm:$0xff]
    %v150 = vld [vmem:[%s1 + $0x10] sm:$0xff]
    %v151 = vld [vmem:[%s1 + $0x18] sm:$0xff]
    %v152 = vld [vmem:[%s9] sm:$0xff]
    %v153 = vld [vmem:[%s9 + $0x8] sm:$0xff]
    %v154 = vld [vmem:[%s9 + $0x10] sm:$0xff]
    %v155 = vld [vmem:[%s9 + $0x18] sm:$0xff]
    %v156 = vld [vmem:[%s9 + $0x20] sm:$0xff]
    %v157 = vld [vmem:[%s9 + $0x28] sm:$0xff]
    %v158 = vld [vmem:[%s9 + $0x30] sm:$0xff]
    %v159 = vld [vmem:[%s9 + $0x38] sm:$0xff]
    %v160 = vld [vmem:[%s9 + $0x40] sm:$0xff]
    %v161 = vld [vmem:[%s9 + $0x48] sm:$0xff]
    %v162 = vld [vmem:[%s9 + $0x50] sm:$0xff]
    %v163 = vld [vmem:[%s9 + $0x58] sm:$0xff]
    %v164 = vld [vmem:[%s9 + $0x60] sm:$0xff]
    %v165 = vld [vmem:[%s9 + $0x68] sm:$0xff]
    %v166 = vld [vmem:[%s9 + $0x70] sm:$0xff]
    %v167 = vld [vmem:[%s9 + $0x78] sm:$0xff]
    %v168 = vld [vmem:[%s9 + $0x80] sm:$0xff]
    %v169 = vld [vmem:[%s9 + $0x88] sm:$0xff]
    %v170 = vld [vmem:[%s9 + $0x90] sm:$0xff]
    %v171 = vld [vmem:[%s9 + $0x98] sm:$0xff]
    %v172 = vld [vmem:[%s11] sm:$0x1]
    %v174 = vlaneseq
    %v175 = vshrl.u32 %v174, 7
    %v176 = vsub.s32 0, %v175
    %v177 = vrot.slane %v172, %v176
    %vm179 = vcmask 261120
    %v181 = vsel %vm179, %v149, 0
    %v184 = vsel %vm179, %v151, 0
    %186 = vmatprep.subr.mxu0 0.0
    %187 = vmatpush1.msra.mxu0 %v152
    %188 = vmatprep.subr.mxu0 0.0
    %189 = vmatpush1.msra.mxu0 %v153
    %190 = vmatprep.subr.mxu0 0.0
    %191 = vmatpush1.msra.mxu0 %v154
    %192 = vmatprep.subr.mxu0 0.0
    %193 = vmatpush1.msra.mxu0 %v155
    %194 = vmatprep.subr.mxu0 0.0
    %195 = vmatpush1.msra.mxu0 %v156
    %196 = vmatprep.subr.mxu0 0.0
    %197 = vmatpush1.msra.mxu0 %v157
    %198 = vmatprep.subr.mxu0 0.0
    %199 = vmatpush1.msra.mxu0 %v158
    %200 = vmatprep.subr.mxu0 0.0
    %201 = vmatpush1.msra.mxu0 %v159
    %202 = vmatprep.subr.mxu0 0.0
    %203 = vmatpush1.msra.mxu0 %v160
    %204 = vmatprep.subr.mxu0 0.0
    %205 = vmatpush1.msra.mxu0 %v161
    %206 = vmatprep.subr.mxu0 0.0
    %207 = vmatpush1.msra.mxu0 %v162
    %208 = vmatprep.subr.mxu0 0.0
    %209 = vmatpush1.msra.mxu0 %v163
    %210 = vmatprep.subr.mxu0 0.0
    %211 = vmatpush1.msra.mxu0 %v164
    %212 = vmatprep.subr.mxu0 0.0
    %213 = vmatpush1.msra.mxu0 %v165
    %214 = vmatprep.subr.mxu0 0.0
    %215 = vmatpush1.msra.mxu0 %v166
    %216 = vmatprep.subr.mxu0 0.0
    %217 = vmatpush1.msra.mxu0 %v167
    %218 = vmatprep.subr.mxu0 0.0
    %219 = vmatpush1.msra.mxu0 %v168
    %220 = vmatprep.subr.mxu0 0.0
    %221 = vmatpush1.msra.mxu0 %v169
    %222 = vmatprep.subr.mxu0 0.0
    %223 = vmatpush1.msra.mxu0 %v170
    %224 = vmatprep.subr.mxu0 0.0
    %225 = vmatpush1.msra.mxu0 %v171
    %226 = vmatprep.subr.mxu0 0.0
    %227 = vmatpush1.msra.mxu0 0.0
    %228 = vmatprep.subr.mxu0 0.0
    %229 = vmatpush1.msra.mxu0 0.0
    %230 = vmatprep.subr.mxu0 0.0
    %231 = vmatpush1.msra.mxu0 0.0
    %232 = vmatprep.subr.mxu0 0.0
    %233 = vmatpush1.msra.mxu0 0.0
    %234 = vmatprep.subr.mxu0 0.0
    %235 = vmatpush1.msra.mxu0 0.0
    %236 = vmatprep.subr.mxu0 0.0
    %237 = vmatpush1.msra.mxu0 0.0
    %238 = vmatprep.subr.mxu0 0.0
    %239 = vmatpush1.msra.mxu0 0.0
    %240 = vmatprep.subr.mxu0 0.0
    %241 = vmatpush1.msra.mxu0 0.0
    %242 = vmatprep.subr.mxu0 0.0
    %243 = vmatpush1.msra.mxu0 0.0
    %244 = vmatprep.subr.mxu0 0.0
    %245 = vmatpush1.msra.mxu0 0.0
    %246 = vmatprep.subr.mxu0 0.0
    %247 = vmatpush1.msra.mxu0 0.0
    %248 = vmatprep.subr.mxu0 0.0
    %249 = vmatpush1.msra.mxu0 0.0
    %250 = vmatprep.mubr.f32.mxu0 %v181
    %251 = vmatmul.mubr.f32.gmra.mrb[0].mxu0 %v148
    %v252 = vpop.f32.mrb[0].mxu0
    %v253 = vadd.f32 %v177, %v252
    %v254 = vpop.f32.mrb[0].mxu0
    %255 = vmatprep.mubr.f32.mxu0 %v184
    %256 = vmatmul.mubr.f32.gmra.mrb[0].mxu0 %v150
    %v257 = vpop.f32.mrb[0].mxu0
    %v258 = vadd.f32 %v177, %v257
    %v259 = vpop.f32.mrb[0].mxu0
    %260 = vdwg.mxu0
    %v261 = vsel %vm179, %v253, -inf
    %v262 = vrot.slane %v261, 4
    %v263 = vmax.f32 %v261, %v262
    %v264 = vrot.slane %v263, 2
    %v265 = vmax.f32 %v263, %v264
    %v266 = vrot.slane %v265, 1
    %v267 = vmax.f32 %v265, %v266
    %v268 = vsel %vm179, %v258, -inf
    %v269 = vrot.slane %v268, 4
    %v270 = vmax.f32 %v268, %v269
    %v271 = vrot.slane %v270, 2
    %v272 = vmax.f32 %v270, %v271
    %v273 = vrot.slane %v272, 1
    %v274 = vmax.f32 %v272, %v273
    %vm275 = vcmask 1040384
    %v276 = vsel %vm275, %v267, %v274
    %v277 = vmax.f32 %v276, 0.0
    %v278 = vld [vmem:[%s3] sm:$0xff]
    %v279 = vld [vmem:[%s3 + $0x8] sm:$0xff]
    %v280 = vld [vmem:[%s13] sm:$0xff]
    %v281 = vld [vmem:[%s13 + $0x8] sm:$0xff]
    %v282 = vld [vmem:[%s13 + $0x10] sm:$0xff]
    %v283 = vld [vmem:[%s13 + $0x18] sm:$0xff]
    %v284 = vld [vmem:[%s13 + $0x20] sm:$0xff]
    %v285 = vld [vmem:[%s13 + $0x28] sm:$0xff]
    %v286 = vld [vmem:[%s13 + $0x30] sm:$0xff]
    %v287 = vld [vmem:[%s13 + $0x38] sm:$0xff]
    %v288 = vld [vmem:[%s13 + $0x40] sm:$0xff]
    %v289 = vld [vmem:[%s13 + $0x48] sm:$0xff]
    %v290 = vld [vmem:[%s13 + $0x50] sm:$0xff]
    %v291 = vld [vmem:[%s13 + $0x58] sm:$0xff]
    %v292 = vld [vmem:[%s13 + $0x60] sm:$0xff]
    %v293 = vld [vmem:[%s13 + $0x68] sm:$0xff]
    %v294 = vld [vmem:[%s13 + $0x70] sm:$0xff]
    %v295 = vld [vmem:[%s15] sm:$0x1]
    %v297 = vlaneseq
    %v298 = vshrl.u32 %v297, 7
    %v299 = vsub.s32 0, %v298
    %v300 = vrot.slane %v295, %v299
    %vm302 = vcmask 982016
    %v304 = vsel %vm302, %v278, 0
    %v307 = vsel %vm302, %v279, 0
    %309 = vmatprep.subr.mxu0 0.0
    %310 = vmatpush1.msra.mxu0 %v280
    %311 = vmatprep.subr.mxu0 0.0
    %312 = vmatpush1.msra.mxu0 %v281
    %313 = vmatprep.subr.mxu0 0.0
    %314 = vmatpush1.msra.mxu0 %v282
    %315 = vmatprep.subr.mxu0 0.0
    %316 = vmatpush1.msra.mxu0 %v283
    %317 = vmatprep.subr.mxu0 0.0
    %318 = vmatpush1.msra.mxu0 %v284
    %319 = vmatprep.subr.mxu0 0.0
    %320 = vmatpush1.msra.mxu0 %v285
    %321 = vmatprep.subr.mxu0 0.0
    %322 = vmatpush1.msra.mxu0 %v286
    %323 = vmatprep.subr.mxu0 0.0
    %324 = vmatpush1.msra.mxu0 %v287
    %325 = vmatprep.subr.mxu0 0.0
    %326 = vmatpush1.msra.mxu0 %v288
    %327 = vmatprep.subr.mxu0 0.0
    %328 = vmatpush1.msra.mxu0 %v289
    %329 = vmatprep.subr.mxu0 0.0
    %330 = vmatpush1.msra.mxu0 %v290
    %331 = vmatprep.subr.mxu0 0.0
    %332 = vmatpush1.msra.mxu0 %v291
    %333 = vmatprep.subr.mxu0 0.0
    %334 = vmatpush1.msra.mxu0 %v292
    %335 = vmatprep.subr.mxu0 0.0
    %336 = vmatpush1.msra.mxu0 %v293
    %337 = vmatprep.subr.mxu0 0.0
    %338 = vmatpush1.msra.mxu0 %v294
    %339 = vmatprep.subr.mxu0 0.0
    %340 = vmatpush1.msra.mxu0 0.0
    %341 = vmatprep.subr.mxu0 0.0
    %342 = vmatpush1.msra.mxu0 0.0
    %343 = vmatprep.subr.mxu0 0.0
    %344 = vmatpush1.msra.mxu0 0.0
    %345 = vmatprep.subr.mxu0 0.0
    %346 = vmatpush1.msra.mxu0 0.0
    %347 = vmatprep.subr.mxu0 0.0
    %348 = vmatpush1.msra.mxu0 0.0
    %349 = vmatprep.subr.mxu0 0.0
    %350 = vmatpush1.msra.mxu0 0.0
    %351 = vmatprep.subr.mxu0 0.0
    %352 = vmatpush1.msra.mxu0 0.0
    %353 = vmatprep.subr.mxu0 0.0
    %354 = vmatpush1.msra.mxu0 0.0
    %355 = vmatprep.subr.mxu0 0.0
    %356 = vmatpush1.msra.mxu0 0.0
    %357 = vmatprep.subr.mxu0 0.0
    %358 = vmatpush1.msra.mxu0 0.0
    %359 = vmatprep.subr.mxu0 0.0
    %360 = vmatpush1.msra.mxu0 0.0
    %361 = vmatprep.subr.mxu0 0.0
    %362 = vmatpush1.msra.mxu0 0.0
    %363 = vmatprep.subr.mxu0 0.0
    %364 = vmatpush1.msra.mxu0 0.0
    %365 = vmatprep.subr.mxu0 0.0
    %366 = vmatpush1.msra.mxu0 0.0
    %367 = vmatprep.subr.mxu0 0.0
    %368 = vmatpush1.msra.mxu0 0.0
    %369 = vmatprep.subr.mxu0 0.0
    %370 = vmatpush1.msra.mxu0 0.0
    %371 = vmatprep.subr.mxu0 0.0
    %372 = vmatpush1.msra.mxu0 0.0
    %373 = vmatprep.mubr.f32.mxu0 0.0
    %374 = vmatmul.mubr.f32.gmra.mrb[0].mxu0 %v304
    %v375 = vpop.f32.mrb[0].mxu0
    %v376 = vadd.f32 %v300, %v375
    %v377 = vpop.f32.mrb[0].mxu0
    %378 = vmatprep.mubr.f32.mxu0 0.0
    %379 = vmatmul.mubr.f32.gmra.mrb[0].mxu0 %v307
    %v380 = vpop.f32.mrb[0].mxu0
    %v381 = vadd.f32 %v300, %v380
    %v382 = vpop.f32.mrb[0].mxu0
    %383 = vdwg.mxu0
    %v384 = vsel %vm179, %v376, -inf
    %v385 = vrot.slane %v384, 4
    %v386 = vmax.f32 %v384, %v385
    %v387 = vrot.slane %v386, 2
    %v388 = vmax.f32 %v386, %v387
    %v389 = vrot.slane %v388, 1
    %v390 = vmax.f32 %v388, %v389
    %v391 = vsel %vm179, %v381, -inf
    %v392 = vrot.slane %v391, 4
    %v393 = vmax.f32 %v391, %v392
    %v394 = vrot.slane %v393, 2
    %v395 = vmax.f32 %v393, %v394
    %v396 = vrot.slane %v395, 1
    %v397 = vmax.f32 %v395, %v396
    %v398 = vsel %vm275, %v390, %v397
    %v399 = vmax.f32 %v398, 0.0
    %v400 = vmax.f32 %v172, 0.0
    %v401 = vmax.f32 %v295, 0.0
    %v403 = vrot.slane %v277, 7
    %v405 = vsel %vm275, %v400, %v403
    %v407 = vrot.slane %v399, 7
    %v409 = vsel %vm275, %v401, %v407
    %v410 = vld [vmem:[%s17] sm:$0xff]
    %v411 = vld [vmem:[%s17 + $0x8] sm:$0xff]
    %v412 = vld [vmem:[%s17 + $0x10] sm:$0xff]
    %v413 = vld [vmem:[%s17 + $0x18] sm:$0xff]
    %v414 = vld [vmem:[%s19] sm:$0xff]
    %v415 = vld [vmem:[%s19 + $0x8] sm:$0xff]
    %v416 = vld [vmem:[%s19 + $0x10] sm:$0xff]
    %v417 = vld [vmem:[%s19 + $0x18] sm:$0xff]
    %v419 = vsel %vm179, %v409, 0
    %421 = vmatprep.subr.mxu0 0.0
    %422 = vmatpush1.msra.mxu0 %v414
    %423 = vmatprep.subr.mxu0 0.0
    %424 = vmatpush1.msra.mxu0 %v415
    %425 = vmatprep.subr.mxu0 0.0
    %426 = vmatpush1.msra.mxu0 %v416
    %427 = vmatprep.subr.mxu0 0.0
    %428 = vmatpush1.msra.mxu0 %v417
    %429 = vmatprep.subr.mxu0 0.0
    %430 = vmatpush1.msra.mxu0 0.0
    %431 = vmatprep.subr.mxu0 0.0
    %432 = vmatpush1.msra.mxu0 0.0
    %433 = vmatprep.subr.mxu0 0.0
    %434 = vmatpush1.msra.mxu0 0.0
    %435 = vmatprep.subr.mxu0 0.0
    %436 = vmatpush1.msra.mxu0 0.0
    %437 = vmatprep.subr.mxu0 0.0
    %438 = vmatpush1.msra.mxu0 0.0
    %439 = vmatprep.subr.mxu0 0.0
    %440 = vmatpush1.msra.mxu0 0.0
    %441 = vmatprep.subr.mxu0 0.0
    %442 = vmatpush1.msra.mxu0 0.0
    %443 = vmatprep.subr.mxu0 0.0
    %444 = vmatpush1.msra.mxu0 0.0
    %445 = vmatprep.subr.mxu0 0.0
    %446 = vmatpush1.msra.mxu0 0.0
    %447 = vmatprep.subr.mxu0 0.0
    %448 = vmatpush1.msra.mxu0 0.0
    %449 = vmatprep.subr.mxu0 0.0
    %450 = vmatpush1.msra.mxu0 0.0
    %451 = vmatprep.subr.mxu0 0.0
    %452 = vmatpush1.msra.mxu0 0.0
    %453 = vmatprep.subr.mxu0 0.0
    %454 = vmatpush1.msra.mxu0 0.0
    %455 = vmatprep.subr.mxu0 0.0
    %456 = vmatpush1.msra.mxu0 0.0
    %457 = vmatprep.subr.mxu0 0.0
    %458 = vmatpush1.msra.mxu0 0.0
    %459 = vmatprep.subr.mxu0 0.0
    %460 = vmatpush1.msra.mxu0 0.0
    %461 = vmatprep.subr.mxu0 0.0
    %462 = vmatpush1.msra.mxu0 0.0
    %463 = vmatprep.subr.mxu0 0.0
    %464 = vmatpush1.msra.mxu0 0.0
    %465 = vmatprep.subr.mxu0 0.0
    %466 = vmatpush1.msra.mxu0 0.0
    %467 = vmatprep.subr.mxu0 0.0
    %468 = vmatpush1.msra.mxu0 0.0
    %469 = vmatprep.subr.mxu0 0.0
    %470 = vmatpush1.msra.mxu0 0.0
    %471 = vmatprep.subr.mxu0 0.0
    %472 = vmatpush1.msra.mxu0 0.0
    %473 = vmatprep.subr.mxu0 0.0
    %474 = vmatpush1.msra.mxu0 0.0
    %475 = vmatprep.subr.mxu0 0.0
    %476 = vmatpush1.msra.mxu0 0.0
    %477 = vmatprep.subr.mxu0 0.0
    %478 = vmatpush1.msra.mxu0 0.0
    %479 = vmatprep.subr.mxu0 0.0
    %480 = vmatpush1.msra.mxu0 0.0
    %481 = vmatprep.subr.mxu0 0.0
    %482 = vmatpush1.msra.mxu0 0.0
    %483 = vmatprep.subr.mxu0 0.0
    %484 = vmatpush1.msra.mxu0 0.0
    %485 = vmatprep.mubr.f32.mxu0 0.0
    %486 = vmatmul.mubr.f32.gmra.mrb[0].mxu0 %v419
    %v487 = vpop.f32.mrb[0].mxu0
    %v488 = vadd.f32 0.0, %v487
    %v489 = vpop.f32.mrb[0].mxu0
    %490 = vdwg.mxu0
    %v492 = vsel %vm179, %v405, 0
    %494 = vmatprep.subr.mxu0 0.0
    %495 = vmatpush1.msra.mxu0 %v410
    %496 = vmatprep.subr.mxu0 0.0
    %497 = vmatpush1.msra.mxu0 %v411
    %498 = vmatprep.subr.mxu0 0.0
    %499 = vmatpush1.msra.mxu0 %v412
    %500 = vmatprep.subr.mxu0 0.0
    %501 = vmatpush1.msra.mxu0 %v413
    %502 = vmatprep.subr.mxu0 0.0
    %503 = vmatpush1.msra.mxu0 0.0
    %504 = vmatprep.subr.mxu0 0.0
    %505 = vmatpush1.msra.mxu0 0.0
    %506 = vmatprep.subr.mxu0 0.0
    %507 = vmatpush1.msra.mxu0 0.0
    %508 = vmatprep.subr.mxu0 0.0
    %509 = vmatpush1.msra.mxu0 0.0
    %510 = vmatprep.subr.mxu0 0.0
    %511 = vmatpush1.msra.mxu0 0.0
    %512 = vmatprep.subr.mxu0 0.0
    %513 = vmatpush1.msra.mxu0 0.0
    %514 = vmatprep.subr.mxu0 0.0
    %515 = vmatpush1.msra.mxu0 0.0
    %516 = vmatprep.subr.mxu0 0.0
    %517 = vmatpush1.msra.mxu0 0.0
    %518 = vmatprep.subr.mxu0 0.0
    %519 = vmatpush1.msra.mxu0 0.0
    %520 = vmatprep.subr.mxu0 0.0
    %521 = vmatpush1.msra.mxu0 0.0
    %522 = vmatprep.subr.mxu0 0.0
    %523 = vmatpush1.msra.mxu0 0.0
    %524 = vmatprep.subr.mxu0 0.0
    %525 = vmatpush1.msra.mxu0 0.0
    %526 = vmatprep.subr.mxu0 0.0
    %527 = vmatpush1.msra.mxu0 0.0
    %528 = vmatprep.subr.mxu0 0.0
    %529 = vmatpush1.msra.mxu0 0.0
    %530 = vmatprep.subr.mxu0 0.0
    %531 = vmatpush1.msra.mxu0 0.0
    %532 = vmatprep.subr.mxu0 0.0
    %533 = vmatpush1.msra.mxu0 0.0
    %534 = vmatprep.subr.mxu0 0.0
    %535 = vmatpush1.msra.mxu0 0.0
    %536 = vmatprep.subr.mxu0 0.0
    %537 = vmatpush1.msra.mxu0 0.0
    %538 = vmatprep.subr.mxu0 0.0
    %539 = vmatpush1.msra.mxu0 0.0
    %540 = vmatprep.subr.mxu0 0.0
    %541 = vmatpush1.msra.mxu0 0.0
    %542 = vmatprep.subr.mxu0 0.0
    %543 = vmatpush1.msra.mxu0 0.0
    %544 = vmatprep.subr.mxu0 0.0
    %545 = vmatpush1.msra.mxu0 0.0
    %546 = vmatprep.subr.mxu0 0.0
    %547 = vmatpush1.msra.mxu0 0.0
    %548 = vmatprep.subr.mxu0 0.0
    %549 = vmatpush1.msra.mxu0 0.0
    %550 = vmatprep.subr.mxu0 0.0
    %551 = vmatpush1.msra.mxu0 0.0
    %552 = vmatprep.subr.mxu0 0.0
    %553 = vmatpush1.msra.mxu0 0.0
    %554 = vmatprep.subr.mxu0 0.0
    %555 = vmatpush1.msra.mxu0 0.0
    %556 = vmatprep.subr.mxu0 0.0
    %557 = vmatpush1.msra.mxu0 0.0
    %558 = vmatprep.mubr.f32.mxu0 0.0
    %559 = vmatmul.mubr.f32.gmra.mrb[0].mxu0 %v492
    %v560 = vpop.f32.mrb[0].mxu0
    %v561 = vadd.f32 %v488, %v560
    %v562 = vpop.f32.mrb[0].mxu0
    %563 = vdwg.mxu0
    %v564 = vld [vmem:[%s23] sm:$0x1]
    %v566 = vlaneseq
    %v567 = vshrl.u32 %v566, 7
    %v568 = vsub.s32 0, %v567
    %v569 = vrot.slane %v564, %v568
    %v571 = vadd.f32 %v561, %v569
    %v572 = vld [vmem:[%s21] sm:$0xff]
    %v573 = vld [vmem:[%s21 + $0x8] sm:$0xff]
    %v575 = vrot.slane %v571, 7
    %v577 = vsel %vm275, %v571, %v575
    %vm578 = vcmask 130048
    %v580 = vsel %vm578, 0.0, 0
    %582 = vmatprep.subr.mxu0 0.0
    %583 = vmatpush1.msra.mxu0 %v572
    %584 = vmatprep.subr.mxu0 0.0
    %585 = vmatpush1.msra.mxu0 %v573
    %586 = vmatprep.subr.mxu0 0.0
    %587 = vmatpush1.msra.mxu0 0.0
    %588 = vmatprep.subr.mxu0 0.0
    %589 = vmatpush1.msra.mxu0 0.0
    %590 = vmatprep.subr.mxu0 0.0
    %591 = vmatpush1.msra.mxu0 0.0
    %592 = vmatprep.subr.mxu0 0.0
    %593 = vmatpush1.msra.mxu0 0.0
    %594 = vmatprep.subr.mxu0 0.0
    %595 = vmatpush1.msra.mxu0 0.0
    %596 = vmatprep.subr.mxu0 0.0
    %597 = vmatpush1.msra.mxu0 0.0
    %598 = vmatprep.subr.mxu0 0.0
    %599 = vmatpush1.msra.mxu0 0.0
    %600 = vmatprep.subr.mxu0 0.0
    %601 = vmatpush1.msra.mxu0 0.0
    %602 = vmatprep.subr.mxu0 0.0
    %603 = vmatpush1.msra.mxu0 0.0
    %604 = vmatprep.subr.mxu0 0.0
    %605 = vmatpush1.msra.mxu0 0.0
    %606 = vmatprep.subr.mxu0 0.0
    %607 = vmatpush1.msra.mxu0 0.0
    %608 = vmatprep.subr.mxu0 0.0
    %609 = vmatpush1.msra.mxu0 0.0
    %610 = vmatprep.subr.mxu0 0.0
    %611 = vmatpush1.msra.mxu0 0.0
    %612 = vmatprep.subr.mxu0 0.0
    %613 = vmatpush1.msra.mxu0 0.0
    %614 = vmatprep.subr.mxu0 0.0
    %615 = vmatpush1.msra.mxu0 0.0
    %616 = vmatprep.subr.mxu0 0.0
    %617 = vmatpush1.msra.mxu0 0.0
    %618 = vmatprep.subr.mxu0 0.0
    %619 = vmatpush1.msra.mxu0 0.0
    %620 = vmatprep.subr.mxu0 0.0
    %621 = vmatpush1.msra.mxu0 0.0
    %622 = vmatprep.subr.mxu0 0.0
    %623 = vmatpush1.msra.mxu0 0.0
    %624 = vmatprep.subr.mxu0 0.0
    %625 = vmatpush1.msra.mxu0 0.0
    %626 = vmatprep.subr.mxu0 0.0
    %627 = vmatpush1.msra.mxu0 0.0
    %628 = vmatprep.subr.mxu0 0.0
    %629 = vmatpush1.msra.mxu0 0.0
    %630 = vmatprep.subr.mxu0 0.0
    %631 = vmatpush1.msra.mxu0 0.0
    %632 = vmatprep.subr.mxu0 0.0
    %633 = vmatpush1.msra.mxu0 0.0
    %634 = vmatprep.subr.mxu0 0.0
    %635 = vmatpush1.msra.mxu0 0.0
    %636 = vmatprep.subr.mxu0 0.0
    %637 = vmatpush1.msra.mxu0 0.0
    %638 = vmatprep.subr.mxu0 0.0
    %639 = vmatpush1.msra.mxu0 0.0
    %640 = vmatprep.subr.mxu0 0.0
    %641 = vmatpush1.msra.mxu0 0.0
    %642 = vmatprep.subr.mxu0 0.0
    %643 = vmatpush1.msra.mxu0 0.0
    %644 = vmatprep.subr.mxu0 0.0
    %645 = vmatpush1.msra.mxu0 0.0
    %646 = vmatprep.mubr.f32.mxu0 0.0
    %647 = vmatmul.mubr.f32.gmra.mrb[0].mxu0 %v580
    %v648 = vpop.f32.mrb[0].mxu0
    %v649 = vadd.f32 0.0, %v648
    %v650 = vpop.f32.mrb[0].mxu0
    %651 = vdwg.mxu0
    %v652 = vadd.f32 %v577, %v649
    %v653 = vxor.u32 %v652, 2147483648
    %v654 = vmul.f32 %v653, 1.442695
    %v655 = vpow.pop %v654
    %v656 = vadd.f32 %v655, 1.0
    %v657 = vrcp.pop %v656
    %v658 = vmul.f32 1.0, %v657
    %v659 = vtanh.pop %v652
    %v660 = vmul.f32 %v658, 0.0
    %662 = vrot.lane.b32.xlu0 %v659, 96
    %v663 = vpop.permute.xlu0 %662
    %v665 = vmul.f32 %v658, %v663
    %667 = vrot.lane.b32.xlu0 %v665, 16
    %v668 = vpop.permute.xlu0 %667
    %v670 = vadd.f32 %v660, %v668
    %v671 = vtanh.pop %v670
    %673 = vrot.lane.b32.xlu0 %v671, 32
    %v674 = vpop.permute.xlu0 %673
    %v676 = vmul.f32 %v658, %v674
    %678 = vrot.lane.b32.xlu0 %v676, 80
    %v679 = vpop.permute.xlu0 %678
    %v680 = vsel %vm578, %v679, 0
    %682 = vmatprep.subr.mxu0 0.0
    %683 = vmatpush1.msra.mxu0 %v572
    %684 = vmatprep.subr.mxu0 0.0
    %685 = vmatpush1.msra.mxu0 %v573
    %686 = vmatprep.subr.mxu0 0.0
    %687 = vmatpush1.msra.mxu0 0.0
    %688 = vmatprep.subr.mxu0 0.0
    %689 = vmatpush1.msra.mxu0 0.0
    %690 = vmatprep.subr.mxu0 0.0
    %691 = vmatpush1.msra.mxu0 0.0
    %692 = vmatprep.subr.mxu0 0.0
    %693 = vmatpush1.msra.mxu0 0.0
    %694 = vmatprep.subr.mxu0 0.0
    %695 = vmatpush1.msra.mxu0 0.0
    %696 = vmatprep.subr.mxu0 0.0
    %697 = vmatpush1.msra.mxu0 0.0
    %698 = vmatprep.subr.mxu0 0.0
    %699 = vmatpush1.msra.mxu0 0.0
    %700 = vmatprep.subr.mxu0 0.0
    %701 = vmatpush1.msra.mxu0 0.0
    %702 = vmatprep.subr.mxu0 0.0
    %703 = vmatpush1.msra.mxu0 0.0
    %704 = vmatprep.subr.mxu0 0.0
    %705 = vmatpush1.msra.mxu0 0.0
    %706 = vmatprep.subr.mxu0 0.0
    %707 = vmatpush1.msra.mxu0 0.0
    %708 = vmatprep.subr.mxu0 0.0
    %709 = vmatpush1.msra.mxu0 0.0
    %710 = vmatprep.subr.mxu0 0.0
    %711 = vmatpush1.msra.mxu0 0.0
    %712 = vmatprep.subr.mxu0 0.0
    %713 = vmatpush1.msra.mxu0 0.0
    %714 = vmatprep.subr.mxu0 0.0
    %715 = vmatpush1.msra.mxu0 0.0
    %716 = vmatprep.subr.mxu0 0.0
    %717 = vmatpush1.msra.mxu0 0.0
    %718 = vmatprep.subr.mxu0 0.0
    %719 = vmatpush1.msra.mxu0 0.0
    %720 = vmatprep.subr.mxu0 0.0
    %721 = vmatpush1.msra.mxu0 0.0
    %722 = vmatprep.subr.mxu0 0.0
    %723 = vmatpush1.msra.mxu0 0.0
    %724 = vmatprep.subr.mxu0 0.0
    %725 = vmatpush1.msra.mxu0 0.0
    %726 = vmatprep.subr.mxu0 0.0
    %727 = vmatpush1.msra.mxu0 0.0
    %728 = vmatprep.subr.mxu0 0.0
    %729 = vmatpush1.msra.mxu0 0.0
    %730 = vmatprep.subr.mxu0 0.0
    %731 = vmatpush1.msra.mxu0 0.0
    %732 = vmatprep.subr.mxu0 0.0
    %733 = vmatpush1.msra.mxu0 0.0
    %734 = vmatprep.subr.mxu0 0.0
    %735 = vmatpush1.msra.mxu0 0.0
    %736 = vmatprep.subr.mxu0 0.0
    %737 = vmatpush1.msra.mxu0 0.0
    %738 = vmatprep.subr.mxu0 0.0
    %739 = vmatpush1.msra.mxu0 0.0
    %740 = vmatprep.subr.mxu0 0.0
    %741 = vmatpush1.msra.mxu0 0.0
    %742 = vmatprep.subr.mxu0 0.0
    %743 = vmatpush1.msra.mxu0 0.0
    %744 = vmatprep.subr.mxu0 0.0
    %745 = vmatpush1.msra.mxu0 0.0
    %746 = vmatprep.mubr.f32.mxu0 0.0
    %747 = vmatmul.mubr.f32.gmra.mrb[0].mxu0 %v680
    %v748 = vpop.f32.mrb[0].mxu0
    %v749 = vadd.f32 0.0, %v748
    %v750 = vpop.f32.mrb[0].mxu0
    %751 = vdwg.mxu0
    %v752 = vadd.f32 %v577, %v749
    %v753 = vxor.u32 %v752, 2147483648
    %v754 = vmul.f32 %v753, 1.442695
    %v755 = vpow.pop %v754
    %v756 = vadd.f32 %v755, 1.0
    %v757 = vrcp.pop %v756
    %v758 = vmul.f32 1.0, %v757
    %v759 = vtanh.pop %v752
    %v760 = vmul.f32 %v758, %v670
    %762 = vrot.lane.b32.xlu0 %v759, 96
    %v763 = vpop.permute.xlu0 %762
    %v765 = vmul.f32 %v758, %v763
    %767 = vrot.lane.b32.xlu0 %v765, 16
    %v768 = vpop.permute.xlu0 %767
    %v770 = vadd.f32 %v760, %v768
    %v771 = vtanh.pop %v770
    %773 = vrot.lane.b32.xlu0 %v771, 32
    %v774 = vpop.permute.xlu0 %773
    %v776 = vmul.f32 %v758, %v774
    %778 = vrot.lane.b32.xlu0 %v776, 80
    %v779 = vpop.permute.xlu0 %778
    %v780 = vsel %vm578, %v779, 0
    %782 = vmatprep.subr.mxu0 0.0
    %783 = vmatpush1.msra.mxu0 %v572
    %784 = vmatprep.subr.mxu0 0.0
    %785 = vmatpush1.msra.mxu0 %v573
    %786 = vmatprep.subr.mxu0 0.0
    %787 = vmatpush1.msra.mxu0 0.0
    %788 = vmatprep.subr.mxu0 0.0
    %789 = vmatpush1.msra.mxu0 0.0
    %790 = vmatprep.subr.mxu0 0.0
    %791 = vmatpush1.msra.mxu0 0.0
    %792 = vmatprep.subr.mxu0 0.0
    %793 = vmatpush1.msra.mxu0 0.0
    %794 = vmatprep.subr.mxu0 0.0
    %795 = vmatpush1.msra.mxu0 0.0
    %796 = vmatprep.subr.mxu0 0.0
    %797 = vmatpush1.msra.mxu0 0.0
    %798 = vmatprep.subr.mxu0 0.0
    %799 = vmatpush1.msra.mxu0 0.0
    %800 = vmatprep.subr.mxu0 0.0
    %801 = vmatpush1.msra.mxu0 0.0
    %802 = vmatprep.subr.mxu0 0.0
    %803 = vmatpush1.msra.mxu0 0.0
    %804 = vmatprep.subr.mxu0 0.0
    %805 = vmatpush1.msra.mxu0 0.0
    %806 = vmatprep.subr.mxu0 0.0
    %807 = vmatpush1.msra.mxu0 0.0
    %808 = vmatprep.subr.mxu0 0.0
    %809 = vmatpush1.msra.mxu0 0.0
    %810 = vmatprep.subr.mxu0 0.0
    %811 = vmatpush1.msra.mxu0 0.0
    %812 = vmatprep.subr.mxu0 0.0
    %813 = vmatpush1.msra.mxu0 0.0
    %814 = vmatprep.subr.mxu0 0.0
    %815 = vmatpush1.msra.mxu0 0.0
    %816 = vmatprep.subr.mxu0 0.0
    %817 = vmatpush1.msra.mxu0 0.0
    %818 = vmatprep.subr.mxu0 0.0
    %819 = vmatpush1.msra.mxu0 0.0
    %820 = vmatprep.subr.mxu0 0.0
    %821 = vmatpush1.msra.mxu0 0.0
    %822 = vmatprep.subr.mxu0 0.0
    %823 = vmatpush1.msra.mxu0 0.0
    %824 = vmatprep.subr.mxu0 0.0
    %825 = vmatpush1.msra.mxu0 0.0
    %826 = vmatprep.subr.mxu0 0.0
    %827 = vmatpush1.msra.mxu0 0.0
    %828 = vmatprep.subr.mxu0 0.0
    %829 = vmatpush1.msra.mxu0 0.0
    %830 = vmatprep.subr.mxu0 0.0
    %831 = vmatpush1.msra.mxu0 0.0
    %832 = vmatprep.subr.mxu0 0.0
    %833 = vmatpush1.msra.mxu0 0.0
    %834 = vmatprep.subr.mxu0 0.0
    %835 = vmatpush1.msra.mxu0 0.0
    %836 = vmatprep.subr.mxu0 0.0
    %837 = vmatpush1.msra.mxu0 0.0
    %838 = vmatprep.subr.mxu0 0.0
    %839 = vmatpush1.msra.mxu0 0.0
    %840 = vmatprep.subr.mxu0 0.0
    %841 = vmatpush1.msra.mxu0 0.0
    %842 = vmatprep.subr.mxu0 0.0
    %843 = vmatpush1.msra.mxu0 0.0
    %844 = vmatprep.subr.mxu0 0.0
    %845 = vmatpush1.msra.mxu0 0.0
    %846 = vmatprep.mubr.f32.mxu0 0.0
    %847 = vmatmul.mubr.f32.gmra.mrb[0].mxu0 %v780
    %v848 = vpop.f32.mrb[0].mxu0
    %v849 = vadd.f32 0.0, %v848
    %v850 = vpop.f32.mrb[0].mxu0
    %851 = vdwg.mxu0
    %v852 = vadd.f32 %v571, %v849
    %v853 = vxor.u32 %v852, 2147483648
    %v854 = vmul.f32 %v853, 1.442695
    %v855 = vpow.pop %v854
    %v856 = vadd.f32 %v855, 1.0
    %v857 = vrcp.pop %v856
    %v858 = vmul.f32 1.0, %v857
    %v859 = vtanh.pop %v852
    %v860 = vmul.f32 %v858, %v770
    %862 = vrot.lane.b32.xlu0 %v859, 96
    %v863 = vpop.permute.xlu0 %862
    %v865 = vmul.f32 %v858, %v863
    %867 = vrot.lane.b32.xlu0 %v865, 16
    %v868 = vpop.permute.xlu0 %867
    %v870 = vadd.f32 %v860, %v868
    %v871 = vtanh.pop %v870
    %873 = vrot.lane.b32.xlu0 %v871, 32
    %v874 = vpop.permute.xlu0 %873
    %v876 = vmul.f32 %v858, %v874
    %v877 = vrot.slane %v571, 1
    %880 = vrot.lane.b32.xlu0 %v876, 80
    %v881 = vpop.permute.xlu0 %880
    %v882 = vsel %vm578, %v881, 0
    %884 = vmatprep.subr.mxu0 0.0
    %885 = vmatpush1.msra.mxu0 %v572
    %886 = vmatprep.subr.mxu0 0.0
    %887 = vmatpush1.msra.mxu0 %v573
    %888 = vmatprep.subr.mxu0 0.0
    %889 = vmatpush1.msra.mxu0 0.0
    %890 = vmatprep.subr.mxu0 0.0
    %891 = vmatpush1.msra.mxu0 0.0
    %892 = vmatprep.subr.mxu0 0.0
    %893 = vmatpush1.msra.mxu0 0.0
    %894 = vmatprep.subr.mxu0 0.0
    %895 = vmatpush1.msra.mxu0 0.0
    %896 = vmatprep.subr.mxu0 0.0
    %897 = vmatpush1.msra.mxu0 0.0
    %898 = vmatprep.subr.mxu0 0.0
    %899 = vmatpush1.msra.mxu0 0.0
    %900 = vmatprep.subr.mxu0 0.0
    %901 = vmatpush1.msra.mxu0 0.0
    %902 = vmatprep.subr.mxu0 0.0
    %903 = vmatpush1.msra.mxu0 0.0
    %904 = vmatprep.subr.mxu0 0.0
    %905 = vmatpush1.msra.mxu0 0.0
    %906 = vmatprep.subr.mxu0 0.0
    %907 = vmatpush1.msra.mxu0 0.0
    %908 = vmatprep.subr.mxu0 0.0
    %909 = vmatpush1.msra.mxu0 0.0
    %910 = vmatprep.subr.mxu0 0.0
    %911 = vmatpush1.msra.mxu0 0.0
    %912 = vmatprep.subr.mxu0 0.0
    %913 = vmatpush1.msra.mxu0 0.0
    %914 = vmatprep.subr.mxu0 0.0
    %915 = vmatpush1.msra.mxu0 0.0
    %916 = vmatprep.subr.mxu0 0.0
    %917 = vmatpush1.msra.mxu0 0.0
    %918 = vmatprep.subr.mxu0 0.0
    %919 = vmatpush1.msra.mxu0 0.0
    %920 = vmatprep.subr.mxu0 0.0
    %921 = vmatpush1.msra.mxu0 0.0
    %922 = vmatprep.subr.mxu0 0.0
    %923 = vmatpush1.msra.mxu0 0.0
    %924 = vmatprep.subr.mxu0 0.0
    %925 = vmatpush1.msra.mxu0 0.0
    %926 = vmatprep.subr.mxu0 0.0
    %927 = vmatpush1.msra.mxu0 0.0
    %928 = vmatprep.subr.mxu0 0.0
    %929 = vmatpush1.msra.mxu0 0.0
    %930 = vmatprep.subr.mxu0 0.0
    %931 = vmatpush1.msra.mxu0 0.0
    %932 = vmatprep.subr.mxu0 0.0
    %933 = vmatpush1.msra.mxu0 0.0
    %934 = vmatprep.subr.mxu0 0.0
    %935 = vmatpush1.msra.mxu0 0.0
    %936 = vmatprep.subr.mxu0 0.0
    %937 = vmatpush1.msra.mxu0 0.0
    %938 = vmatprep.subr.mxu0 0.0
    %939 = vmatpush1.msra.mxu0 0.0
    %940 = vmatprep.subr.mxu0 0.0
    %941 = vmatpush1.msra.mxu0 0.0
    %942 = vmatprep.subr.mxu0 0.0
    %943 = vmatpush1.msra.mxu0 0.0
    %944 = vmatprep.subr.mxu0 0.0
    %945 = vmatpush1.msra.mxu0 0.0
    %946 = vmatprep.subr.mxu0 0.0
    %947 = vmatpush1.msra.mxu0 0.0
    %948 = vmatprep.mubr.f32.mxu0 0.0
    %949 = vmatmul.mubr.f32.gmra.mrb[0].mxu0 %v882
    %v950 = vpop.f32.mrb[0].mxu0
    %v951 = vadd.f32 0.0, %v950
    %v952 = vpop.f32.mrb[0].mxu0
    %953 = vdwg.mxu0
    %v954 = vadd.f32 %v877, %v951
    %v955 = vxor.u32 %v954, 2147483648
    %v956 = vmul.f32 %v955, 1.442695
    %v957 = vpow.pop %v956
    %v958 = vadd.f32 %v957, 1.0
    %v959 = vrcp.pop %v958
    %v960 = vmul.f32 1.0, %v959
    %v961 = vtanh.pop %v954
    %v962 = vmul.f32 %v960, %v870
    %964 = vrot.lane.b32.xlu0 %v961, 96
    %v965 = vpop.permute.xlu0 %964
    %v967 = vmul.f32 %v960, %v965
    %969 = vrot.lane.b32.xlu0 %v967, 16
    %v970 = vpop.permute.xlu0 %969
    %v972 = vadd.f32 %v962, %v970
    %v973 = vtanh.pop %v972
    %975 = vrot.lane.b32.xlu0 %v973, 32
    %v976 = vpop.permute.xlu0 %975
    %v978 = vmul.f32 %v960, %v976
    %v979 = vld [vmem:[%s25] sm:$0x1]
    %v980 = vld [vmem:[#allocation2] sm:$0x1]
    %v982 = vlaneseq
    %v983 = vshrl.u32 %v982, 7
    %v984 = vsub.s32 0, %v983
    %v985 = vrot.slane %v979, %v984
    %986 = vrot.lane.b32.xlu0 %v985, 48
    %v987 = vpop.permute.xlu0 %986
    %v989 = vmul.f32 %v676, %v987
    %991 = vrot.lane.b32.xlu0 %v989, 80
    %v992 = vpop.permute.xlu0 %991
    %vm994 = vcmask 58368
    %v995 = vsel %vm994, %v992, 0.0
    %996 = vadd.xlane.f32.xlu0 %v995
    %v997 = vpop.xlane.xlu0 %996
    %v999 = vlaneseq
    %v1000 = vshrl.u32 %v999, 7
    %v1001 = vsub.s32 0, %v1000
    %v1002 = vrot.slane %v980, %v1001
    %v1004 = vadd.f32 %v997, %v1002
    %v1005 = vmul.f32 %v776, %v987
    %1007 = vrot.lane.b32.xlu0 %v1005, 80
    %v1008 = vpop.permute.xlu0 %1007
    %v1010 = vsel %vm994, %v1008, 0.0
    %1011 = vadd.xlane.f32.xlu0 %v1010
    %v1012 = vpop.xlane.xlu0 %1011
    %v1013 = vadd.f32 %v1012, %v1002
    %v1014 = vmul.f32 %v876, %v987
    %1016 = vrot.lane.b32.xlu0 %v1014, 80
    %v1017 = vpop.permute.xlu0 %1016
    %v1019 = vsel %vm994, %v1017, 0.0
    %1020 = vadd.xlane.f32.xlu0 %v1019
    %v1021 = vpop.xlane.xlu0 %1020
    %v1022 = vadd.f32 %v1021, %v1002
    %v1023 = vmul.f32 %v978, %v987
    %1025 = vrot.lane.b32.xlu0 %v1023, 80
    %v1026 = vpop.permute.xlu0 %1025
    %v1028 = vsel %vm994, %v1026, 0.0
    %1029 = vadd.xlane.f32.xlu0 %v1028
    %v1030 = vpop.xlane.xlu0 %1029
    %v1031 = vadd.f32 %v1030, %v1002
    %v1032 = vmax.f32 %v1004, %v1013
    %v1033 = vmax.f32 %v1032, %v1022
    %v1034 = vmax.f32 %v1033, %v1031
    %v1035 = vsub.f32 %v1004, %v1034
    %v1036 = vmul.f32 %v1035, 1.442695
    %v1037 = vpow.pop %v1036
    %v1038 = vsub.f32 %v1013, %v1034
    %v1039 = vmul.f32 %v1038, 1.442695
    %v1040 = vpow.pop %v1039
    %v1041 = vsub.f32 %v1022, %v1034
    %v1042 = vmul.f32 %v1041, 1.442695
    %v1043 = vpow.pop %v1042
    %v1044 = vsub.f32 %v1031, %v1034
    %v1045 = vmul.f32 %v1044, 1.442695
    %v1046 = vpow.pop %v1045
    %v1047 = vadd.f32 %v1037, %v1040
    %v1048 = vadd.f32 %v1047, %v1043
    %v1049 = vadd.f32 %v1048, %v1046
    %v1050 = vrcp.pop %v1049
    %v1051 = vmul.f32 %v1037, %v1050
    %1053 = vset.pattern.permute.xlu0 0
    %1054 = vperm.xlu0 %1053, %v1051
    %v1055 = vpop.permute.xlu0 %1054
    %v1057 = vmul.f32 %v1055, %v676
    %v1058 = vmul.f32 %v1040, %v1050
    %1060 = vset.pattern.permute.xlu0 0
    %1061 = vperm.xlu0 %1060, %v1058
    %v1062 = vpop.permute.xlu0 %1061
    %v1064 = vmul.f32 %v1062, %v776
    %v1065 = vadd.f32 %v1057, %v1064
    %v1066 = vmul.f32 %v1043, %v1050
    %1068 = vset.pattern.permute.xlu0 0
    %1069 = vperm.xlu0 %1068, %v1066
    %v1070 = vpop.permute.xlu0 %1069
    %v1072 = vmul.f32 %v1070, %v876
    %v1073 = vadd.f32 %v1065, %v1072
    %v1074 = vmul.f32 %v1046, %v1050
    %1076 = vset.pattern.permute.xlu0 0
    %1077 = vperm.xlu0 %1076, %v1074
    %v1078 = vpop.permute.xlu0 %1077
    %v1080 = vmul.f32 %v1078, %v978
    %v1081 = vadd.f32 %v1073, %v1080
    %v1082 = vld [vmem:[%s29] sm:$0x1]
    %v1083 = vld [vmem:[#allocation3] sm:$0x1]
    %v1085 = vlaneseq
    %v1086 = vshrl.u32 %v1085, 7
    %v1087 = vsub.s32 0, %v1086
    %v1088 = vrot.slane %v1082, %v1087
    %1089 = vrot.lane.b32.xlu0 %v1088, 56
    %v1090 = vpop.permute.xlu0 %1089
    %v1092 = vmul.f32 %v676, %v1090
    %1094 = vrot.lane.b32.xlu0 %v1092, 72
    %v1095 = vpop.permute.xlu0 %1094
    %v1097 = vsel %vm994, %v1095, 0.0
    %1098 = vadd.xlane.f32.xlu0 %v1097
    %v1099 = vpop.xlane.xlu0 %1098
    %v1101 = vlaneseq
    %v1102 = vshrl.u32 %v1101, 7
    %v1103 = vsub.s32 0, %v1102
    %v1104 = vrot.slane %v1083, %v1103
    %v1106 = vadd.f32 %v1099, %v1104
    %v1107 = vmul.f32 %v776, %v1090
    %1109 = vrot.lane.b32.xlu0 %v1107, 72
    %v1110 = vpop.permute.xlu0 %1109
    %v1112 = vsel %vm994, %v1110, 0.0
    %1113 = vadd.xlane.f32.xlu0 %v1112
    %v1114 = vpop.xlane.xlu0 %1113
    %v1115 = vadd.f32 %v1114, %v1104
    %v1116 = vmul.f32 %v876, %v1090
    %1118 = vrot.lane.b32.xlu0 %v1116, 72
    %v1119 = vpop.permute.xlu0 %1118
    %v1121 = vsel %vm994, %v1119, 0.0
    %1122 = vadd.xlane.f32.xlu0 %v1121
    %v1123 = vpop.xlane.xlu0 %1122
    %v1124 = vadd.f32 %v1123, %v1104
    %v1125 = vmul.f32 %v978, %v1090
    %1127 = vrot.lane.b32.xlu0 %v1125, 72
    %v1128 = vpop.permute.xlu0 %1127
    %v1130 = vsel %vm994, %v1128, 0.0
    %1131 = vadd.xlane.f32.xlu0 %v1130
    %v1132 = vpop.xlane.xlu0 %1131
    %v1133 = vadd.f32 %v1132, %v1104
    %v1134 = vmax.f32 %v1106, %v1115
    %v1135 = vmax.f32 %v1134, %v1124
    %v1136 = vmax.f32 %v1135, %v1133
    %v1137 = vsub.f32 %v1106, %v1136
    %v1138 = vmul.f32 %v1137, 1.442695
    %v1139 = vpow.pop %v1138
    %v1140 = vsub.f32 %v1115, %v1136
    %v1141 = vmul.f32 %v1140, 1.442695
    %v1142 = vpow.pop %v1141
    %v1143 = vsub.f32 %v1124, %v1136
    %v1144 = vmul.f32 %v1143, 1.442695
    %v1145 = vpow.pop %v1144
    %v1146 = vsub.f32 %v1133, %v1136
    %v1147 = vmul.f32 %v1146, 1.442695
    %v1148 = vpow.pop %v1147
    %v1149 = vadd.f32 %v1139, %v1142
    %v1150 = vadd.f32 %v1149, %v1145
    %v1151 = vadd.f32 %v1150, %v1148
    %v1152 = vrcp.pop %v1151
    %v1153 = vmul.f32 %v1139, %v1152
    %1155 = vset.pattern.permute.xlu0 0
    %1156 = vperm.xlu0 %1155, %v1153
    %v1157 = vpop.permute.xlu0 %1156
    %v1159 = vmul.f32 %v1157, %v676
    %v1160 = vmul.f32 %v1142, %v1152
    %1162 = vset.pattern.permute.xlu0 0
    %1163 = vperm.xlu0 %1162, %v1160
    %v1164 = vpop.permute.xlu0 %1163
    %v1166 = vmul.f32 %v1164, %v776
    %v1167 = vadd.f32 %v1159, %v1166
    %v1168 = vmul.f32 %v1145, %v1152
    %1170 = vset.pattern.permute.xlu0 0
    %1171 = vperm.xlu0 %1170, %v1168
    %v1172 = vpop.permute.xlu0 %1171
    %v1174 = vmul.f32 %v1172, %v876
    %v1175 = vadd.f32 %v1167, %v1174
    %v1176 = vmul.f32 %v1148, %v1152
    %1178 = vset.pattern.permute.xlu0 0
    %1179 = vperm.xlu0 %1178, %v1176
    %v1180 = vpop.permute.xlu0 %1179
    %v1182 = vmul.f32 %v1180, %v978
    %v1183 = vadd.f32 %v1175, %v1182
    %v1184 = vld [vmem:[%s5] sm:$0xff]
    %v1185 = vld [vmem:[%s5 + $0x8] sm:$0xff]
    %v1186 = vld [vmem:[%s33] sm:$0xff]
    %v1187 = vld [vmem:[%s33 + $0x8] sm:$0xff]
    %v1188 = vld [vmem:[%s33 + $0x10] sm:$0xff]
    %v1189 = vld [vmem:[%s33 + $0x18] sm:$0xff]
    %v1190 = vld [vmem:[%s33 + $0x20] sm:$0xff]
    %v1191 = vld [vmem:[%s33 + $0x28] sm:$0xff]
    %v1192 = vld [vmem:[%s33 + $0x30] sm:$0xff]
    %v1193 = vld [vmem:[%s33 + $0x38] sm:$0xff]
    %v1194 = vld [vmem:[%s33 + $0x40] sm:$0xff]
    %v1195 = vld [vmem:[%s33 + $0x48] sm:$0xff]
    %v1196 = vld [vmem:[%s33 + $0x50] sm:$0xff]
    %v1197 = vld [vmem:[%s33 + $0x58] sm:$0xff]
    %v1198 = vld [vmem:[%s33 + $0x60] sm:$0xff]
    %v1199 = vld [vmem:[%s33 + $0x68] sm:$0xff]
    %v1200 = vld [vmem:[%s33 + $0x70] sm:$0xff]
    %v1201 = vld [vmem:[%s33 + $0x78] sm:$0xff]
    %v1202 = vld [vmem:[%s33 + $0x80] sm:$0xff]
    %v1203 = vld [vmem:[%s33 + $0x88] sm:$0xff]
    %v1204 = vld [vmem:[%s33 + $0x90] sm:$0xff]
    %v1205 = vld [vmem:[%s33 + $0x98] sm:$0xff]
    %v1206 = vld [vmem:[%s33 + $0xa0] sm:$0xff]
    %v1207 = vld [vmem:[%s33 + $0xa8] sm:$0xff]
    %v1208 = vld [vmem:[%s33 + $0xb0] sm:$0xff]
    %v1209 = vld [vmem:[%s33 + $0xb8] sm:$0xff]
    %v1210 = vld [vmem:[%s33 + $0xc0] sm:$0xff]
    %v1211 = vld [vmem:[%s33 + $0xc8] sm:$0xff]
    %v1212 = vld [vmem:[%s33 + $0xd0] sm:$0xff]
    %v1213 = vld [vmem:[%s33 + $0xd8] sm:$0xff]
    %v1214 = vld [vmem:[%s37] sm:$0x3]
    %v1216 = vlaneseq
    %v1217 = vshrl.u32 %v1216, 7
    %v1218 = vsub.s32 0, %v1217
    %v1219 = vrot.slane %v1214, %v1218
    %v1220 = vlaneseq
    %v1221 = vshrl.u32 %v1220, 7
    %v1222 = vsub.s32 1, %v1221
    %v1223 = vrot.slane %v1214, %v1222
    %vm1226 = vcmask 916480
    %v1228 = vsel %vm1226, %v1184, 0
    %v1231 = vsel %vm1226, %v1185, 0
    %1233 = vmatprep.subr.mxu0 %v1187
    %1234 = vmatpush1.msra.mxu0 %v1186
    %1235 = vmatprep.subr.mxu0 %v1189
    %1236 = vmatpush1.msra.mxu0 %v1188
    %1237 = vmatprep.subr.mxu0 %v1191
    %1238 = vmatpush1.msra.mxu0 %v1190
    %1239 = vmatprep.subr.mxu0 %v1193
    %1240 = vmatpush1.msra.mxu0 %v1192
    %1241 = vmatprep.subr.mxu0 %v1195
    %1242 = vmatpush1.msra.mxu0 %v1194
    %1243 = vmatprep.subr.mxu0 %v1197
    %1244 = vmatpush1.msra.mxu0 %v1196
    %1245 = vmatprep.subr.mxu0 %v1199
    %1246 = vmatpush1.msra.mxu0 %v1198
    %1247 = vmatprep.subr.mxu0 %v1201
    %1248 = vmatpush1.msra.mxu0 %v1200
    %1249 = vmatprep.subr.mxu0 %v1203
    %1250 = vmatpush1.msra.mxu0 %v1202
    %1251 = vmatprep.subr.mxu0 %v1205
    %1252 = vmatpush1.msra.mxu0 %v1204
    %1253 = vmatprep.subr.mxu0 %v1207
    %1254 = vmatpush1.msra.mxu0 %v1206
    %1255 = vmatprep.subr.mxu0 %v1209
    %1256 = vmatpush1.msra.mxu0 %v1208
    %1257 = vmatprep.subr.mxu0 %v1211
    %1258 = vmatpush1.msra.mxu0 %v1210
    %1259 = vmatprep.subr.mxu0 %v1213
    %1260 = vmatpush1.msra.mxu0 %v1212
    %1261 = vmatprep.subr.mxu0 0.0
    %1262 = vmatpush1.msra.mxu0 0.0
    %1263 = vmatprep.subr.mxu0 0.0
    %1264 = vmatpush1.msra.mxu0 0.0
    %1265 = vmatprep.subr.mxu0 0.0
    %1266 = vmatpush1.msra.mxu0 0.0
    %1267 = vmatprep.subr.mxu0 0.0
    %1268 = vmatpush1.msra.mxu0 0.0
    %1269 = vmatprep.subr.mxu0 0.0
    %1270 = vmatpush1.msra.mxu0 0.0
    %1271 = vmatprep.subr.mxu0 0.0
    %1272 = vmatpush1.msra.mxu0 0.0
    %1273 = vmatprep.subr.mxu0 0.0
    %1274 = vmatpush1.msra.mxu0 0.0
    %1275 = vmatprep.subr.mxu0 0.0
    %1276 = vmatpush1.msra.mxu0 0.0
    %1277 = vmatprep.subr.mxu0 0.0
    %1278 = vmatpush1.msra.mxu0 0.0
    %1279 = vmatprep.subr.mxu0 0.0
    %1280 = vmatpush1.msra.mxu0 0.0
    %1281 = vmatprep.subr.mxu0 0.0
    %1282 = vmatpush1.msra.mxu0 0.0
    %1283 = vmatprep.subr.mxu0 0.0
    %1284 = vmatpush1.msra.mxu0 0.0
    %1285 = vmatprep.subr.mxu0 0.0
    %1286 = vmatpush1.msra.mxu0 0.0
    %1287 = vmatprep.subr.mxu0 0.0
    %1288 = vmatpush1.msra.mxu0 0.0
    %1289 = vmatprep.subr.mxu0 0.0
    %1290 = vmatpush1.msra.mxu0 0.0
    %1291 = vmatprep.subr.mxu0 0.0
    %1292 = vmatpush1.msra.mxu0 0.0
    %1293 = vmatprep.subr.mxu0 0.0
    %1294 = vmatpush1.msra.mxu0 0.0
    %1295 = vmatprep.subr.mxu0 0.0
    %1296 = vmatpush1.msra.mxu0 0.0
    %1297 = vmatprep.mubr.f32.mxu0 0.0
    %1298 = vmatmul.mubr.f32.gmra.mrb[0].mxu0 %v1228
    %v1299 = vpop.f32.mrb[0].mxu0
    %v1300 = vadd.f32 %v1219, %v1299
    %v1301 = vpop.f32.mrb[0].mxu0
    %v1302 = vadd.f32 %v1223, %v1301
    %1303 = vmatprep.mubr.f32.mxu0 0.0
    %1304 = vmatmul.mubr.f32.gmra.mrb[0].mxu0 %v1231
    %v1305 = vpop.f32.mrb[0].mxu0
    %v1306 = vadd.f32 %v1219, %v1305
    %v1307 = vpop.f32.mrb[0].mxu0
    %v1308 = vadd.f32 %v1223, %v1307
    %1309 = vdwg.mxu0
    %v1310 = vld [vmem:[%s35] sm:$0xff]
    %v1311 = vld [vmem:[%s35 + $0x8] sm:$0xff]
    %v1312 = vld [vmem:[%s35 + $0x10] sm:$0xff]
    %v1313 = vld [vmem:[%s35 + $0x18] sm:$0xff]
    %v1314 = vld [vmem:[%s35 + $0x20] sm:$0xff]
    %v1315 = vld [vmem:[%s35 + $0x28] sm:$0xff]
    %v1316 = vld [vmem:[%s35 + $0x30] sm:$0xff]
    %v1317 = vld [vmem:[%s35 + $0x38] sm:$0xff]
    %v1318 = vld [vmem:[%s35 + $0x40] sm:$0xff]
    %v1319 = vld [vmem:[%s35 + $0x48] sm:$0xff]
    %v1320 = vld [vmem:[%s35 + $0x50] sm:$0xff]
    %v1321 = vld [vmem:[%s35 + $0x58] sm:$0xff]
    %v1322 = vld [vmem:[%s35 + $0x60] sm:$0xff]
    %v1323 = vld [vmem:[%s35 + $0x68] sm:$0xff]
    %v1324 = vld [vmem:[%s35 + $0x70] sm:$0xff]
    %v1325 = vld [vmem:[%s35 + $0x78] sm:$0xff]
    %vm1326 = vcmask 523264
    %v1327 = vsel %vm1326, 0.0, 0
    %1329 = vmatprep.subr.mxu0 %v1311
    %1330 = vmatpush1.msra.mxu0 %v1310
    %1331 = vmatprep.subr.mxu0 %v1313
    %1332 = vmatpush1.msra.mxu0 %v1312
    %1333 = vmatprep.subr.mxu0 %v1315
    %1334 = vmatpush1.msra.mxu0 %v1314
    %1335 = vmatprep.subr.mxu0 %v1317
    %1336 = vmatpush1.msra.mxu0 %v1316
    %1337 = vmatprep.subr.mxu0 %v1319
    %1338 = vmatpush1.msra.mxu0 %v1318
    %1339 = vmatprep.subr.mxu0 %v1321
    %1340 = vmatpush1.msra.mxu0 %v1320
    %1341 = vmatprep.subr.mxu0 %v1323
    %1342 = vmatpush1.msra.mxu0 %v1322
    %1343 = vmatprep.subr.mxu0 %v1325
    %1344 = vmatpush1.msra.mxu0 %v1324
    %1345 = vmatprep.subr.mxu0 0.0
    %1346 = vmatpush1.msra.mxu0 0.0
    %1347 = vmatprep.subr.mxu0 0.0
    %1348 = vmatpush1.msra.mxu0 0.0
    %1349 = vmatprep.subr.mxu0 0.0
    %1350 = vmatpush1.msra.mxu0 0.0
    %1351 = vmatprep.subr.mxu0 0.0
    %1352 = vmatpush1.msra.mxu0 0.0
    %1353 = vmatprep.subr.mxu0 0.0
    %1354 = vmatpush1.msra.mxu0 0.0
    %1355 = vmatprep.subr.mxu0 0.0
    %1356 = vmatpush1.msra.mxu0 0.0
    %1357 = vmatprep.subr.mxu0 0.0
    %1358 = vmatpush1.msra.mxu0 0.0
    %1359 = vmatprep.subr.mxu0 0.0
    %1360 = vmatpush1.msra.mxu0 0.0
    %1361 = vmatprep.subr.mxu0 0.0
    %1362 = vmatpush1.msra.mxu0 0.0
    %1363 = vmatprep.subr.mxu0 0.0
    %1364 = vmatpush1.msra.mxu0 0.0
    %1365 = vmatprep.subr.mxu0 0.0
    %1366 = vmatpush1.msra.mxu0 0.0
    %1367 = vmatprep.subr.mxu0 0.0
    %1368 = vmatpush1.msra.mxu0 0.0
    %1369 = vmatprep.subr.mxu0 0.0
    %1370 = vmatpush1.msra.mxu0 0.0
    %1371 = vmatprep.subr.mxu0 0.0
    %1372 = vmatpush1.msra.mxu0 0.0
    %1373 = vmatprep.subr.mxu0 0.0
    %1374 = vmatpush1.msra.mxu0 0.0
    %1375 = vmatprep.subr.mxu0 0.0
    %1376 = vmatpush1.msra.mxu0 0.0
    %1377 = vmatprep.subr.mxu0 0.0
    %1378 = vmatpush1.msra.mxu0 0.0
    %1379 = vmatprep.subr.mxu0 0.0
    %1380 = vmatpush1.msra.mxu0 0.0
    %1381 = vmatprep.subr.mxu0 0.0
    %1382 = vmatpush1.msra.mxu0 0.0
    %1383 = vmatprep.subr.mxu0 0.0
    %1384 = vmatpush1.msra.mxu0 0.0
    %1385 = vmatprep.subr.mxu0 0.0
    %1386 = vmatpush1.msra.mxu0 0.0
    %1387 = vmatprep.subr.mxu0 0.0
    %1388 = vmatpush1.msra.mxu0 0.0
    %1389 = vmatprep.subr.mxu0 0.0
    %1390 = vmatpush1.msra.mxu0 0.0
    %1391 = vmatprep.subr.mxu0 0.0
    %1392 = vmatpush1.msra.mxu0 0.0
    %1393 = vmatprep.mubr.f32.mxu0 0.0
    %1394 = vmatmul.mubr.f32.gmra.mrb[0].mxu0 %v1327
    %v1395 = vpop.f32.mrb[0].mxu0
    %v1396 = vadd.f32 0.0, %v1395
    %v1397 = vpop.f32.mrb[0].mxu0
    %v1398 = vadd.f32 0.0, %v1397
    %1399 = vdwg.mxu0
    %v1400 = vadd.f32 %v1300, %v1396
    %v1401 = vadd.f32 %v1302, %v1398
    %v1402 = vxor.u32 %v1400, 2147483648
    %v1403 = vmul.f32 %v1402, 1.442695
    %v1404 = vpow.pop %v1403
    %v1405 = vadd.f32 %v1404, 1.0
    %v1406 = vrcp.pop %v1405
    %v1407 = vmul.f32 1.0, %v1406
    %v1408 = vtanh.pop %v1401
    %v1409 = vxor.u32 %v1401, 2147483648
    %v1410 = vmul.f32 %v1409, 1.442695
    %v1411 = vpow.pop %v1410
    %v1412 = vadd.f32 %v1411, 1.0
    %v1413 = vrcp.pop %v1412
    %v1414 = vmul.f32 1.0, %v1413
    %v1415 = vmul.f32 %v1407, 0.0
    %v1416 = vmul.f32 %v1407, %v1408
    %1418 = vrot.lane.b32.xlu0 %v1416, 64
    %v1419 = vpop.permute.xlu0 %1418
    %v1421 = vadd.f32 %v1415, %v1419
    %v1422 = vtanh.pop %v1421
    %v1423 = vmul.f32 %v1414, %v1422
    %1425 = vrot.lane.b32.xlu0 %v1423, 64
    %v1426 = vpop.permute.xlu0 %1425
    %v1427 = vsel %vm1326, %v1426, 0
    %1429 = vmatprep.subr.mxu0 %v1311
    %1430 = vmatpush1.msra.mxu0 %v1310
    %1431 = vmatprep.subr.mxu0 %v1313
    %1432 = vmatpush1.msra.mxu0 %v1312
    %1433 = vmatprep.subr.mxu0 %v1315
    %1434 = vmatpush1.msra.mxu0 %v1314
    %1435 = vmatprep.subr.mxu0 %v1317
    %1436 = vmatpush1.msra.mxu0 %v1316
    %1437 = vmatprep.subr.mxu0 %v1319
    %1438 = vmatpush1.msra.mxu0 %v1318
    %1439 = vmatprep.subr.mxu0 %v1321
    %1440 = vmatpush1.msra.mxu0 %v1320
    %1441 = vmatprep.subr.mxu0 %v1323
    %1442 = vmatpush1.msra.mxu0 %v1322
    %1443 = vmatprep.subr.mxu0 %v1325
    %1444 = vmatpush1.msra.mxu0 %v1324
    %1445 = vmatprep.subr.mxu0 0.0
    %1446 = vmatpush1.msra.mxu0 0.0
    %1447 = vmatprep.subr.mxu0 0.0
    %1448 = vmatpush1.msra.mxu0 0.0
    %1449 = vmatprep.subr.mxu0 0.0
    %1450 = vmatpush1.msra.mxu0 0.0
    %1451 = vmatprep.subr.mxu0 0.0
    %1452 = vmatpush1.msra.mxu0 0.0
    %1453 = vmatprep.subr.mxu0 0.0
    %1454 = vmatpush1.msra.mxu0 0.0
    %1455 = vmatprep.subr.mxu0 0.0
    %1456 = vmatpush1.msra.mxu0 0.0
    %1457 = vmatprep.subr.mxu0 0.0
    %1458 = vmatpush1.msra.mxu0 0.0
    %1459 = vmatprep.subr.mxu0 0.0
    %1460 = vmatpush1.msra.mxu0 0.0
    %1461 = vmatprep.subr.mxu0 0.0
    %1462 = vmatpush1.msra.mxu0 0.0
    %1463 = vmatprep.subr.mxu0 0.0
    %1464 = vmatpush1.msra.mxu0 0.0
    %1465 = vmatprep.subr.mxu0 0.0
    %1466 = vmatpush1.msra.mxu0 0.0
    %1467 = vmatprep.subr.mxu0 0.0
    %1468 = vmatpush1.msra.mxu0 0.0
    %1469 = vmatprep.subr.mxu0 0.0
    %1470 = vmatpush1.msra.mxu0 0.0
    %1471 = vmatprep.subr.mxu0 0.0
    %1472 = vmatpush1.msra.mxu0 0.0
    %1473 = vmatprep.subr.mxu0 0.0
    %1474 = vmatpush1.msra.mxu0 0.0
    %1475 = vmatprep.subr.mxu0 0.0
    %1476 = vmatpush1.msra.mxu0 0.0
    %1477 = vmatprep.subr.mxu0 0.0
    %1478 = vmatpush1.msra.mxu0 0.0
    %1479 = vmatprep.subr.mxu0 0.0
    %1480 = vmatpush1.msra.mxu0 0.0
    %1481 = vmatprep.subr.mxu0 0.0
    %1482 = vmatpush1.msra.mxu0 0.0
    %1483 = vmatprep.subr.mxu0 0.0
    %1484 = vmatpush1.msra.mxu0 0.0
    %1485 = vmatprep.subr.mxu0 0.0
    %1486 = vmatpush1.msra.mxu0 0.0
    %1487 = vmatprep.subr.mxu0 0.0
    %1488 = vmatpush1.msra.mxu0 0.0
    %1489 = vmatprep.subr.mxu0 0.0
    %1490 = vmatpush1.msra.mxu0 0.0
    %1491 = vmatprep.subr.mxu0 0.0
    %1492 = vmatpush1.msra.mxu0 0.0
    %1493 = vmatprep.mubr.f32.mxu0 0.0
    %1494 = vmatmul.mubr.f32.gmra.mrb[0].mxu0 %v1427
    %v1495 = vpop.f32.mrb[0].mxu0
    %v1496 = vadd.f32 0.0, %v1495
    %v1497 = vpop.f32.mrb[0].mxu0
    %v1498 = vadd.f32 0.0, %v1497
    %1499 = vdwg.mxu0
    %v1502 = vrot.slane %v1496, 6
    %v1503 = vrot.slane %v1498, 6
    %v1506 = vadd.f32 %v1300, %v1502
    %v1507 = vadd.f32 %v1302, %v1503
    %v1508 = vxor.u32 %v1506, 2147483648
    %v1509 = vmul.f32 %v1508, 1.442695
    %v1510 = vpow.pop %v1509
    %v1511 = vadd.f32 %v1510, 1.0
    %v1512 = vrcp.pop %v1511
    %v1513 = vmul.f32 1.0, %v1512
    %v1514 = vtanh.pop %v1507
    %v1515 = vxor.u32 %v1507, 2147483648
    %v1516 = vmul.f32 %v1515, 1.442695
    %v1517 = vpow.pop %v1516
    %v1518 = vadd.f32 %v1517, 1.0
    %v1519 = vrcp.pop %v1518
    %v1520 = vmul.f32 1.0, %v1519
    %v1522 = vrot.slane %v1421, 6
    %v1524 = vmul.f32 %v1513, %v1522
    %v1525 = vmul.f32 %v1513, %v1514
    %1527 = vrot.lane.b32.xlu0 %v1525, 64
    %v1528 = vpop.permute.xlu0 %1527
    %v1530 = vadd.f32 %v1524, %v1528
    %v1531 = vtanh.pop %v1530
    %v1532 = vmul.f32 %v1520, %v1531
    %v1534 = vrot.slane %v1532, 2
    %1535 = vrot.lane.b32.xlu0 %v1534, 64
    %v1536 = vpop.permute.xlu0 %1535
    %v1537 = vsel %vm1326, %v1536, 0
    %1539 = vmatprep.subr.mxu0 %v1311
    %1540 = vmatpush1.msra.mxu0 %v1310
    %1541 = vmatprep.subr.mxu0 %v1313
    %1542 = vmatpush1.msra.mxu0 %v1312
    %1543 = vmatprep.subr.mxu0 %v1315
    %1544 = vmatpush1.msra.mxu0 %v1314
    %1545 = vmatprep.subr.mxu0 %v1317
    %1546 = vmatpush1.msra.mxu0 %v1316
    %1547 = vmatprep.subr.mxu0 %v1319
    %1548 = vmatpush1.msra.mxu0 %v1318
    %1549 = vmatprep.subr.mxu0 %v1321
    %1550 = vmatpush1.msra.mxu0 %v1320
    %1551 = vmatprep.subr.mxu0 %v1323
    %1552 = vmatpush1.msra.mxu0 %v1322
    %1553 = vmatprep.subr.mxu0 %v1325
    %1554 = vmatpush1.msra.mxu0 %v1324
    %1555 = vmatprep.subr.mxu0 0.0
    %1556 = vmatpush1.msra.mxu0 0.0
    %1557 = vmatprep.subr.mxu0 0.0
    %1558 = vmatpush1.msra.mxu0 0.0
    %1559 = vmatprep.subr.mxu0 0.0
    %1560 = vmatpush1.msra.mxu0 0.0
    %1561 = vmatprep.subr.mxu0 0.0
    %1562 = vmatpush1.msra.mxu0 0.0
    %1563 = vmatprep.subr.mxu0 0.0
    %1564 = vmatpush1.msra.mxu0 0.0
    %1565 = vmatprep.subr.mxu0 0.0
    %1566 = vmatpush1.msra.mxu0 0.0
    %1567 = vmatprep.subr.mxu0 0.0
    %1568 = vmatpush1.msra.mxu0 0.0
    %1569 = vmatprep.subr.mxu0 0.0
    %1570 = vmatpush1.msra.mxu0 0.0
    %1571 = vmatprep.subr.mxu0 0.0
    %1572 = vmatpush1.msra.mxu0 0.0
    %1573 = vmatprep.subr.mxu0 0.0
    %1574 = vmatpush1.msra.mxu0 0.0
    %1575 = vmatprep.subr.mxu0 0.0
    %1576 = vmatpush1.msra.mxu0 0.0
    %1577 = vmatprep.subr.mxu0 0.0
    %1578 = vmatpush1.msra.mxu0 0.0
    %1579 = vmatprep.subr.mxu0 0.0
    %1580 = vmatpush1.msra.mxu0 0.0
    %1581 = vmatprep.subr.mxu0 0.0
    %1582 = vmatpush1.msra.mxu0 0.0
    %1583 = vmatprep.subr.mxu0 0.0
    %1584 = vmatpush1.msra.mxu0 0.0
    %1585 = vmatprep.subr.mxu0 0.0
    %1586 = vmatpush1.msra.mxu0 0.0
    %1587 = vmatprep.subr.mxu0 0.0
    %1588 = vmatpush1.msra.mxu0 0.0
    %1589 = vmatprep.subr.mxu0 0.0
    %1590 = vmatpush1.msra.mxu0 0.0
    %1591 = vmatprep.subr.mxu0 0.0
    %1592 = vmatpush1.msra.mxu0 0.0
    %1593 = vmatprep.subr.mxu0 0.0
    %1594 = vmatpush1.msra.mxu0 0.0
    %1595 = vmatprep.subr.mxu0 0.0
    %1596 = vmatpush1.msra.mxu0 0.0
    %1597 = vmatprep.subr.mxu0 0.0
    %1598 = vmatpush1.msra.mxu0 0.0
    %1599 = vmatprep.subr.mxu0 0.0
    %1600 = vmatpush1.msra.mxu0 0.0
    %1601 = vmatprep.subr.mxu0 0.0
    %1602 = vmatpush1.msra.mxu0 0.0
    %1603 = vmatprep.mubr.f32.mxu0 0.0
    %1604 = vmatmul.mubr.f32.gmra.mrb[0].mxu0 %v1537
    %v1605 = vpop.f32.mrb[0].mxu0
    %v1606 = vadd.f32 0.0, %v1605
    %v1607 = vpop.f32.mrb[0].mxu0
    %v1608 = vadd.f32 0.0, %v1607
    %1609 = vdwg.mxu0
    %v1612 = vrot.slane %v1606, 4
    %v1613 = vrot.slane %v1608, 4
    %v1616 = vadd.f32 %v1300, %v1612
    %v1617 = vadd.f32 %v1302, %v1613
    %v1618 = vxor.u32 %v1616, 2147483648
    %v1619 = vmul.f32 %v1618, 1.442695
    %v1620 = vpow.pop %v1619
    %v1621 = vadd.f32 %v1620, 1.0
    %v1622 = vrcp.pop %v1621
    %v1623 = vmul.f32 1.0, %v1622
    %v1624 = vtanh.pop %v1617
    %v1625 = vxor.u32 %v1617, 2147483648
    %v1626 = vmul.f32 %v1625, 1.442695
    %v1627 = vpow.pop %v1626
    %v1628 = vadd.f32 %v1627, 1.0
    %v1629 = vrcp.pop %v1628
    %v1630 = vmul.f32 1.0, %v1629
    %v1632 = vrot.slane %v1530, 6
    %v1634 = vmul.f32 %v1623, %v1632
    %v1635 = vmul.f32 %v1623, %v1624
    %1637 = vrot.lane.b32.xlu0 %v1635, 64
    %v1638 = vpop.permute.xlu0 %1637
    %v1640 = vadd.f32 %v1634, %v1638
    %v1641 = vtanh.pop %v1640
    %v1642 = vmul.f32 %v1630, %v1641
    %v1644 = vrot.slane %v1642, 4
    %1645 = vrot.lane.b32.xlu0 %v1644, 64
    %v1646 = vpop.permute.xlu0 %1645
    %v1647 = vsel %vm1326, %v1646, 0
    %1649 = vmatprep.subr.mxu0 %v1311
    %1650 = vmatpush1.msra.mxu0 %v1310
    %1651 = vmatprep.subr.mxu0 %v1313
    %1652 = vmatpush1.msra.mxu0 %v1312
    %1653 = vmatprep.subr.mxu0 %v1315
    %1654 = vmatpush1.msra.mxu0 %v1314
    %1655 = vmatprep.subr.mxu0 %v1317
    %1656 = vmatpush1.msra.mxu0 %v1316
    %1657 = vmatprep.subr.mxu0 %v1319
    %1658 = vmatpush1.msra.mxu0 %v1318
    %1659 = vmatprep.subr.mxu0 %v1321
    %1660 = vmatpush1.msra.mxu0 %v1320
    %1661 = vmatprep.subr.mxu0 %v1323
    %1662 = vmatpush1.msra.mxu0 %v1322
    %1663 = vmatprep.subr.mxu0 %v1325
    %1664 = vmatpush1.msra.mxu0 %v1324
    %1665 = vmatprep.subr.mxu0 0.0
    %1666 = vmatpush1.msra.mxu0 0.0
    %1667 = vmatprep.subr.mxu0 0.0
    %1668 = vmatpush1.msra.mxu0 0.0
    %1669 = vmatprep.subr.mxu0 0.0
    %1670 = vmatpush1.msra.mxu0 0.0
    %1671 = vmatprep.subr.mxu0 0.0
    %1672 = vmatpush1.msra.mxu0 0.0
    %1673 = vmatprep.subr.mxu0 0.0
    %1674 = vmatpush1.msra.mxu0 0.0
    %1675 = vmatprep.subr.mxu0 0.0
    %1676 = vmatpush1.msra.mxu0 0.0
    %1677 = vmatprep.subr.mxu0 0.0
    %1678 = vmatpush1.msra.mxu0 0.0
    %1679 = vmatprep.subr.mxu0 0.0
    %1680 = vmatpush1.msra.mxu0 0.0
    %1681 = vmatprep.subr.mxu0 0.0
    %1682 = vmatpush1.msra.mxu0 0.0
    %1683 = vmatprep.subr.mxu0 0.0
    %1684 = vmatpush1.msra.mxu0 0.0
    %1685 = vmatprep.subr.mxu0 0.0
    %1686 = vmatpush1.msra.mxu0 0.0
    %1687 = vmatprep.subr.mxu0 0.0
    %1688 = vmatpush1.msra.mxu0 0.0
    %1689 = vmatprep.subr.mxu0 0.0
    %1690 = vmatpush1.msra.mxu0 0.0
    %1691 = vmatprep.subr.mxu0 0.0
    %1692 = vmatpush1.msra.mxu0 0.0
    %1693 = vmatprep.subr.mxu0 0.0
    %1694 = vmatpush1.msra.mxu0 0.0
    %1695 = vmatprep.subr.mxu0 0.0
    %1696 = vmatpush1.msra.mxu0 0.0
    %1697 = vmatprep.subr.mxu0 0.0
    %1698 = vmatpush1.msra.mxu0 0.0
    %1699 = vmatprep.subr.mxu0 0.0
    %1700 = vmatpush1.msra.mxu0 0.0
    %1701 = vmatprep.subr.mxu0 0.0
    %1702 = vmatpush1.msra.mxu0 0.0
    %1703 = vmatprep.subr.mxu0 0.0
    %1704 = vmatpush1.msra.mxu0 0.0
    %1705 = vmatprep.subr.mxu0 0.0
    %1706 = vmatpush1.msra.mxu0 0.0
    %1707 = vmatprep.subr.mxu0 0.0
    %1708 = vmatpush1.msra.mxu0 0.0
    %1709 = vmatprep.subr.mxu0 0.0
    %1710 = vmatpush1.msra.mxu0 0.0
    %1711 = vmatprep.subr.mxu0 0.0
    %1712 = vmatpush1.msra.mxu0 0.0
    %1713 = vmatprep.mubr.f32.mxu0 0.0
    %1714 = vmatmul.mubr.f32.gmra.mrb[0].mxu0 %v1647
    %v1715 = vpop.f32.mrb[0].mxu0
    %v1716 = vadd.f32 0.0, %v1715
    %v1717 = vpop.f32.mrb[0].mxu0
    %v1718 = vadd.f32 0.0, %v1717
    %1719 = vdwg.mxu0
    %v1722 = vrot.slane %v1716, 2
    %v1723 = vrot.slane %v1718, 2
    %v1726 = vadd.f32 %v1300, %v1722
    %v1727 = vadd.f32 %v1302, %v1723
    %v1728 = vxor.u32 %v1726, 2147483648
    %v1729 = vmul.f32 %v1728, 1.442695
    %v1730 = vpow.pop %v1729
    %v1731 = vadd.f32 %v1730, 1.0
    %v1732 = vrcp.pop %v1731
    %v1733 = vmul.f32 1.0, %v1732
    %v1734 = vtanh.pop %v1727
    %v1735 = vxor.u32 %v1727, 2147483648
    %v1736 = vmul.f32 %v1735, 1.442695
    %v1737 = vpow.pop %v1736
    %v1738 = vadd.f32 %v1737, 1.0
    %v1739 = vrcp.pop %v1738
    %v1740 = vmul.f32 1.0, %v1739
    %v1742 = vrot.slane %v1640, 6
    %v1744 = vmul.f32 %v1733, %v1742
    %v1745 = vmul.f32 %v1733, %v1734
    %1747 = vrot.lane.b32.xlu0 %v1745, 64
    %v1748 = vpop.permute.xlu0 %1747
    %v1750 = vadd.f32 %v1744, %v1748
    %v1751 = vtanh.pop %v1750
    %v1752 = vmul.f32 %v1740, %v1751
    %v1754 = vrot.slane %v1752, 6
    %1755 = vrot.lane.b32.xlu0 %v1754, 64
    %v1756 = vpop.permute.xlu0 %1755
    %v1757 = vsel %vm1326, %v1756, 0
    %1759 = vmatprep.subr.mxu0 %v1311
    %1760 = vmatpush1.msra.mxu0 %v1310
    %1761 = vmatprep.subr.mxu0 %v1313
    %1762 = vmatpush1.msra.mxu0 %v1312
    %1763 = vmatprep.subr.mxu0 %v1315
    %1764 = vmatpush1.msra.mxu0 %v1314
    %1765 = vmatprep.subr.mxu0 %v1317
    %1766 = vmatpush1.msra.mxu0 %v1316
    %1767 = vmatprep.subr.mxu0 %v1319
    %1768 = vmatpush1.msra.mxu0 %v1318
    %1769 = vmatprep.subr.mxu0 %v1321
    %1770 = vmatpush1.msra.mxu0 %v1320
    %1771 = vmatprep.subr.mxu0 %v1323
    %1772 = vmatpush1.msra.mxu0 %v1322
    %1773 = vmatprep.subr.mxu0 %v1325
    %1774 = vmatpush1.msra.mxu0 %v1324
    %1775 = vmatprep.subr.mxu0 0.0
    %1776 = vmatpush1.msra.mxu0 0.0
    %1777 = vmatprep.subr.mxu0 0.0
    %1778 = vmatpush1.msra.mxu0 0.0
    %1779 = vmatprep.subr.mxu0 0.0
    %1780 = vmatpush1.msra.mxu0 0.0
    %1781 = vmatprep.subr.mxu0 0.0
    %1782 = vmatpush1.msra.mxu0 0.0
    %1783 = vmatprep.subr.mxu0 0.0
    %1784 = vmatpush1.msra.mxu0 0.0
    %1785 = vmatprep.subr.mxu0 0.0
    %1786 = vmatpush1.msra.mxu0 0.0
    %1787 = vmatprep.subr.mxu0 0.0
    %1788 = vmatpush1.msra.mxu0 0.0
    %1789 = vmatprep.subr.mxu0 0.0
    %1790 = vmatpush1.msra.mxu0 0.0
    %1791 = vmatprep.subr.mxu0 0.0
    %1792 = vmatpush1.msra.mxu0 0.0
    %1793 = vmatprep.subr.mxu0 0.0
    %1794 = vmatpush1.msra.mxu0 0.0
    %1795 = vmatprep.subr.mxu0 0.0
    %1796 = vmatpush1.msra.mxu0 0.0
    %1797 = vmatprep.subr.mxu0 0.0
    %1798 = vmatpush1.msra.mxu0 0.0
    %1799 = vmatprep.subr.mxu0 0.0
    %1800 = vmatpush1.msra.mxu0 0.0
    %1801 = vmatprep.subr.mxu0 0.0
    %1802 = vmatpush1.msra.mxu0 0.0
    %1803 = vmatprep.subr.mxu0 0.0
    %1804 = vmatpush1.msra.mxu0 0.0
    %1805 = vmatprep.subr.mxu0 0.0
    %1806 = vmatpush1.msra.mxu0 0.0
    %1807 = vmatprep.subr.mxu0 0.0
    %1808 = vmatpush1.msra.mxu0 0.0
    %1809 = vmatprep.subr.mxu0 0.0
    %1810 = vmatpush1.msra.mxu0 0.0
    %1811 = vmatprep.subr.mxu0 0.0
    %1812 = vmatpush1.msra.mxu0 0.0
    %1813 = vmatprep.subr.mxu0 0.0
    %1814 = vmatpush1.msra.mxu0 0.0
    %1815 = vmatprep.subr.mxu0 0.0
    %1816 = vmatpush1.msra.mxu0 0.0
    %1817 = vmatprep.subr.mxu0 0.0
    %1818 = vmatpush1.msra.mxu0 0.0
    %1819 = vmatprep.subr.mxu0 0.0
    %1820 = vmatpush1.msra.mxu0 0.0
    %1821 = vmatprep.subr.mxu0 0.0
    %1822 = vmatpush1.msra.mxu0 0.0
    %1823 = vmatprep.mubr.f32.mxu0 0.0
    %1824 = vmatmul.mubr.f32.gmra.mrb[0].mxu0 %v1757
    %v1825 = vpop.f32.mrb[0].mxu0
    %v1826 = vadd.f32 0.0, %v1825
    %v1827 = vpop.f32.mrb[0].mxu0
    %v1828 = vadd.f32 0.0, %v1827
    %1829 = vdwg.mxu0
    %v1830 = vadd.f32 %v1306, %v1826
    %v1831 = vadd.f32 %v1308, %v1828
    %v1832 = vxor.u32 %v1830, 2147483648
    %v1833 = vmul.f32 %v1832, 1.442695
    %v1834 = vpow.pop %v1833
    %v1835 = vadd.f32 %v1834, 1.0
    %v1836 = vrcp.pop %v1835
    %v1837 = vmul.f32 1.0, %v1836
    %v1838 = vtanh.pop %v1831
    %v1839 = vxor.u32 %v1831, 2147483648
    %v1840 = vmul.f32 %v1839, 1.442695
    %v1841 = vpow.pop %v1840
    %v1842 = vadd.f32 %v1841, 1.0
    %v1843 = vrcp.pop %v1842
    %v1844 = vmul.f32 1.0, %v1843
    %v1846 = vrot.slane %v1750, 6
    %v1848 = vmul.f32 %v1837, %v1846
    %v1849 = vmul.f32 %v1837, %v1838
    %1851 = vrot.lane.b32.xlu0 %v1849, 64
    %v1852 = vpop.permute.xlu0 %1851
    %v1854 = vadd.f32 %v1848, %v1852
    %v1855 = vtanh.pop %v1854
    %v1856 = vmul.f32 %v1844, %v1855
    %1858 = vrot.lane.b32.xlu0 %v1856, 64
    %v1859 = vpop.permute.xlu0 %1858
    %v1860 = vsel %vm1326, %v1859, 0
    %1862 = vmatprep.subr.mxu0 %v1311
    %1863 = vmatpush1.msra.mxu0 %v1310
    %1864 = vmatprep.subr.mxu0 %v1313
    %1865 = vmatpush1.msra.mxu0 %v1312
    %1866 = vmatprep.subr.mxu0 %v1315
    %1867 = vmatpush1.msra.mxu0 %v1314
    %1868 = vmatprep.subr.mxu0 %v1317
    %1869 = vmatpush1.msra.mxu0 %v1316
    %1870 = vmatprep.subr.mxu0 %v1319
    %1871 = vmatpush1.msra.mxu0 %v1318
    %1872 = vmatprep.subr.mxu0 %v1321
    %1873 = vmatpush1.msra.mxu0 %v1320
    %1874 = vmatprep.subr.mxu0 %v1323
    %1875 = vmatpush1.msra.mxu0 %v1322
    %1876 = vmatprep.subr.mxu0 %v1325
    %1877 = vmatpush1.msra.mxu0 %v1324
    %1878 = vmatprep.subr.mxu0 0.0
    %1879 = vmatpush1.msra.mxu0 0.0
    %1880 = vmatprep.subr.mxu0 0.0
    %1881 = vmatpush1.msra.mxu0 0.0
    %1882 = vmatprep.subr.mxu0 0.0
    %1883 = vmatpush1.msra.mxu0 0.0
    %1884 = vmatprep.subr.mxu0 0.0
    %1885 = vmatpush1.msra.mxu0 0.0
    %1886 = vmatprep.subr.mxu0 0.0
    %1887 = vmatpush1.msra.mxu0 0.0
    %1888 = vmatprep.subr.mxu0 0.0
    %1889 = vmatpush1.msra.mxu0 0.0
    %1890 = vmatprep.subr.mxu0 0.0
    %1891 = vmatpush1.msra.mxu0 0.0
    %1892 = vmatprep.subr.mxu0 0.0
    %1893 = vmatpush1.msra.mxu0 0.0
    %1894 = vmatprep.subr.mxu0 0.0
    %1895 = vmatpush1.msra.mxu0 0.0
    %1896 = vmatprep.subr.mxu0 0.0
    %1897 = vmatpush1.msra.mxu0 0.0
    %1898 = vmatprep.subr.mxu0 0.0
    %1899 = vmatpush1.msra.mxu0 0.0
    %1900 = vmatprep.subr.mxu0 0.0
    %1901 = vmatpush1.msra.mxu0 0.0
    %1902 = vmatprep.subr.mxu0 0.0
    %1903 = vmatpush1.msra.mxu0 0.0
    %1904 = vmatprep.subr.mxu0 0.0
    %1905 = vmatpush1.msra.mxu0 0.0
    %1906 = vmatprep.subr.mxu0 0.0
    %1907 = vmatpush1.msra.mxu0 0.0
    %1908 = vmatprep.subr.mxu0 0.0
    %1909 = vmatpush1.msra.mxu0 0.0
    %1910 = vmatprep.subr.mxu0 0.0
    %1911 = vmatpush1.msra.mxu0 0.0
    %1912 = vmatprep.subr.mxu0 0.0
    %1913 = vmatpush1.msra.mxu0 0.0
    %1914 = vmatprep.subr.mxu0 0.0
    %1915 = vmatpush1.msra.mxu0 0.0
    %1916 = vmatprep.subr.mxu0 0.0
    %1917 = vmatpush1.msra.mxu0 0.0
    %1918 = vmatprep.subr.mxu0 0.0
    %1919 = vmatpush1.msra.mxu0 0.0
    %1920 = vmatprep.subr.mxu0 0.0
    %1921 = vmatpush1.msra.mxu0 0.0
    %1922 = vmatprep.subr.mxu0 0.0
    %1923 = vmatpush1.msra.mxu0 0.0
    %1924 = vmatprep.subr.mxu0 0.0
    %1925 = vmatpush1.msra.mxu0 0.0
    %1926 = vmatprep.mubr.f32.mxu0 0.0
    %1927 = vmatmul.mubr.f32.gmra.mrb[0].mxu0 %v1860
    %v1928 = vpop.f32.mrb[0].mxu0
    %v1929 = vadd.f32 0.0, %v1928
    %v1930 = vpop.f32.mrb[0].mxu0
    %v1931 = vadd.f32 0.0, %v1930
    %1932 = vdwg.mxu0
    %v1935 = vrot.slane %v1929, 6
    %v1936 = vrot.slane %v1931, 6
    %v1939 = vadd.f32 %v1306, %v1935
    %v1940 = vadd.f32 %v1308, %v1936
    %v1941 = vxor.u32 %v1939, 2147483648
    %v1942 = vmul.f32 %v1941, 1.442695
    %v1943 = vpow.pop %v1942
    %v1944 = vadd.f32 %v1943, 1.0
    %v1945 = vrcp.pop %v1944
    %v1946 = vmul.f32 1.0, %v1945
    %v1947 = vtanh.pop %v1940
    %v1948 = vxor.u32 %v1940, 2147483648
    %v1949 = vmul.f32 %v1948, 1.442695
    %v1950 = vpow.pop %v1949
    %v1951 = vadd.f32 %v1950, 1.0
    %v1952 = vrcp.pop %v1951
    %v1953 = vmul.f32 1.0, %v1952
    %v1955 = vrot.slane %v1854, 6
    %v1957 = vmul.f32 %v1946, %v1955
    %v1958 = vmul.f32 %v1946, %v1947
    %1960 = vrot.lane.b32.xlu0 %v1958, 64
    %v1961 = vpop.permute.xlu0 %1960
    %v1963 = vadd.f32 %v1957, %v1961
    %v1964 = vtanh.pop %v1963
    %v1965 = vmul.f32 %v1953, %v1964
    %v1967 = vrot.slane %v1965, 2
    %1968 = vrot.lane.b32.xlu0 %v1967, 64
    %v1969 = vpop.permute.xlu0 %1968
    %v1970 = vsel %vm1326, %v1969, 0
    %1972 = vmatprep.subr.mxu0 %v1311
    %1973 = vmatpush1.msra.mxu0 %v1310
    %1974 = vmatprep.subr.mxu0 %v1313
    %1975 = vmatpush1.msra.mxu0 %v1312
    %1976 = vmatprep.subr.mxu0 %v1315
    %1977 = vmatpush1.msra.mxu0 %v1314
    %1978 = vmatprep.subr.mxu0 %v1317
    %1979 = vmatpush1.msra.mxu0 %v1316
    %1980 = vmatprep.subr.mxu0 %v1319
    %1981 = vmatpush1.msra.mxu0 %v1318
    %1982 = vmatprep.subr.mxu0 %v1321
    %1983 = vmatpush1.msra.mxu0 %v1320
    %1984 = vmatprep.subr.mxu0 %v1323
    %1985 = vmatpush1.msra.mxu0 %v1322
    %1986 = vmatprep.subr.mxu0 %v1325
    %1987 = vmatpush1.msra.mxu0 %v1324
    %1988 = vmatprep.subr.mxu0 0.0
    %1989 = vmatpush1.msra.mxu0 0.0
    %1990 = vmatprep.subr.mxu0 0.0
    %1991 = vmatpush1.msra.mxu0 0.0
    %1992 = vmatprep.subr.mxu0 0.0
    %1993 = vmatpush1.msra.mxu0 0.0
    %1994 = vmatprep.subr.mxu0 0.0
    %1995 = vmatpush1.msra.mxu0 0.0
    %1996 = vmatprep.subr.mxu0 0.0
    %1997 = vmatpush1.msra.mxu0 0.0
    %1998 = vmatprep.subr.mxu0 0.0
    %1999 = vmatpush1.msra.mxu0 0.0
    %2000 = vmatprep.subr.mxu0 0.0
    %2001 = vmatpush1.msra.mxu0 0.0
    %2002 = vmatprep.subr.mxu0 0.0
    %2003 = vmatpush1.msra.mxu0 0.0
    %2004 = vmatprep.subr.mxu0 0.0
    %2005 = vmatpush1.msra.mxu0 0.0
    %2006 = vmatprep.subr.mxu0 0.0
    %2007 = vmatpush1.msra.mxu0 0.0
    %2008 = vmatprep.subr.mxu0 0.0
    %2009 = vmatpush1.msra.mxu0 0.0
    %2010 = vmatprep.subr.mxu0 0.0
    %2011 = vmatpush1.msra.mxu0 0.0
    %2012 = vmatprep.subr.mxu0 0.0
    %2013 = vmatpush1.msra.mxu0 0.0
    %2014 = vmatprep.subr.mxu0 0.0
    %2015 = vmatpush1.msra.mxu0 0.0
    %2016 = vmatprep.subr.mxu0 0.0
    %2017 = vmatpush1.msra.mxu0 0.0
    %2018 = vmatprep.subr.mxu0 0.0
    %2019 = vmatpush1.msra.mxu0 0.0
    %2020 = vmatprep.subr.mxu0 0.0
    %2021 = vmatpush1.msra.mxu0 0.0
    %2022 = vmatprep.subr.mxu0 0.0
    %2023 = vmatpush1.msra.mxu0 0.0
    %2024 = vmatprep.subr.mxu0 0.0
    %2025 = vmatpush1.msra.mxu0 0.0
    %2026 = vmatprep.subr.mxu0 0.0
    %2027 = vmatpush1.msra.mxu0 0.0
    %2028 = vmatprep.subr.mxu0 0.0
    %2029 = vmatpush1.msra.mxu0 0.0
    %2030 = vmatprep.subr.mxu0 0.0
    %2031 = vmatpush1.msra.mxu0 0.0
    %2032 = vmatprep.subr.mxu0 0.0
    %2033 = vmatpush1.msra.mxu0 0.0
    %2034 = vmatprep.subr.mxu0 0.0
    %2035 = vmatpush1.msra.mxu0 0.0
    %2036 = vmatprep.mubr.f32.mxu0 0.0
    %2037 = vmatmul.mubr.f32.gmra.mrb[0].mxu0 %v1970
    %v2038 = vpop.f32.mrb[0].mxu0
    %v2039 = vadd.f32 0.0, %v2038
    %v2040 = vpop.f32.mrb[0].mxu0
    %v2041 = vadd.f32 0.0, %v2040
    %2042 = vdwg.mxu0
    %v2045 = vrot.slane %v2039, 4
    %v2046 = vrot.slane %v2041, 4
    %v2049 = vadd.f32 %v1306, %v2045
    %v2050 = vadd.f32 %v1308, %v2046
    %v2051 = vxor.u32 %v2049, 2147483648
    %v2052 = vmul.f32 %v2051, 1.442695
    %v2053 = vpow.pop %v2052
    %v2054 = vadd.f32 %v2053, 1.0
    %v2055 = vrcp.pop %v2054
    %v2056 = vmul.f32 1.0, %v2055
    %v2057 = vtanh.pop %v2050
    %v2058 = vxor.u32 %v2050, 2147483648
    %v2059 = vmul.f32 %v2058, 1.442695
    %v2060 = vpow.pop %v2059
    %v2061 = vadd.f32 %v2060, 1.0
    %v2062 = vrcp.pop %v2061
    %v2063 = vmul.f32 1.0, %v2062
    %v2065 = vrot.slane %v1963, 6
    %v2067 = vmul.f32 %v2056, %v2065
    %v2068 = vmul.f32 %v2056, %v2057
    %2070 = vrot.lane.b32.xlu0 %v2068, 64
    %v2071 = vpop.permute.xlu0 %2070
    %v2073 = vadd.f32 %v2067, %v2071
    %v2074 = vtanh.pop %v2073
    %v2075 = vmul.f32 %v2063, %v2074
    %v2077 = vrot.slane %v2075, 4
    %2078 = vrot.lane.b32.xlu0 %v2077, 64
    %v2079 = vpop.permute.xlu0 %2078
    %v2080 = vsel %vm1326, %v2079, 0
    %2082 = vmatprep.subr.mxu0 %v1311
    %2083 = vmatpush1.msra.mxu0 %v1310
    %2084 = vmatprep.subr.mxu0 %v1313
    %2085 = vmatpush1.msra.mxu0 %v1312
    %2086 = vmatprep.subr.mxu0 %v1315
    %2087 = vmatpush1.msra.mxu0 %v1314
    %2088 = vmatprep.subr.mxu0 %v1317
    %2089 = vmatpush1.msra.mxu0 %v1316
    %2090 = vmatprep.subr.mxu0 %v1319
    %2091 = vmatpush1.msra.mxu0 %v1318
    %2092 = vmatprep.subr.mxu0 %v1321
    %2093 = vmatpush1.msra.mxu0 %v1320
    %2094 = vmatprep.subr.mxu0 %v1323
    %2095 = vmatpush1.msra.mxu0 %v1322
    %2096 = vmatprep.subr.mxu0 %v1325
    %2097 = vmatpush1.msra.mxu0 %v1324
    %2098 = vmatprep.subr.mxu0 0.0
    %2099 = vmatpush1.msra.mxu0 0.0
    %2100 = vmatprep.subr.mxu0 0.0
    %2101 = vmatpush1.msra.mxu0 0.0
    %2102 = vmatprep.subr.mxu0 0.0
    %2103 = vmatpush1.msra.mxu0 0.0
    %2104 = vmatprep.subr.mxu0 0.0
    %2105 = vmatpush1.msra.mxu0 0.0
    %2106 = vmatprep.subr.mxu0 0.0
    %2107 = vmatpush1.msra.mxu0 0.0
    %2108 = vmatprep.subr.mxu0 0.0
    %2109 = vmatpush1.msra.mxu0 0.0
    %2110 = vmatprep.subr.mxu0 0.0
    %2111 = vmatpush1.msra.mxu0 0.0
    %2112 = vmatprep.subr.mxu0 0.0
    %2113 = vmatpush1.msra.mxu0 0.0
    %2114 = vmatprep.subr.mxu0 0.0
    %2115 = vmatpush1.msra.mxu0 0.0
    %2116 = vmatprep.subr.mxu0 0.0
    %2117 = vmatpush1.msra.mxu0 0.0
    %2118 = vmatprep.subr.mxu0 0.0
    %2119 = vmatpush1.msra.mxu0 0.0
    %2120 = vmatprep.subr.mxu0 0.0
    %2121 = vmatpush1.msra.mxu0 0.0
    %2122 = vmatprep.subr.mxu0 0.0
    %2123 = vmatpush1.msra.mxu0 0.0
    %2124 = vmatprep.subr.mxu0 0.0
    %2125 = vmatpush1.msra.mxu0 0.0
    %2126 = vmatprep.subr.mxu0 0.0
    %2127 = vmatpush1.msra.mxu0 0.0
    %2128 = vmatprep.subr.mxu0 0.0
    %2129 = vmatpush1.msra.mxu0 0.0
    %2130 = vmatprep.subr.mxu0 0.0
    %2131 = vmatpush1.msra.mxu0 0.0
    %2132 = vmatprep.subr.mxu0 0.0
    %2133 = vmatpush1.msra.mxu0 0.0
    %2134 = vmatprep.subr.mxu0 0.0
    %2135 = vmatpush1.msra.mxu0 0.0
    %2136 = vmatprep.subr.mxu0 0.0
    %2137 = vmatpush1.msra.mxu0 0.0
    %2138 = vmatprep.subr.mxu0 0.0
    %2139 = vmatpush1.msra.mxu0 0.0
    %2140 = vmatprep.subr.mxu0 0.0
    %2141 = vmatpush1.msra.mxu0 0.0
    %2142 = vmatprep.subr.mxu0 0.0
    %2143 = vmatpush1.msra.mxu0 0.0
    %2144 = vmatprep.subr.mxu0 0.0
    %2145 = vmatpush1.msra.mxu0 0.0
    %2146 = vmatprep.mubr.f32.mxu0 0.0
    %2147 = vmatmul.mubr.f32.gmra.mrb[0].mxu0 %v2080
    %v2148 = vpop.f32.mrb[0].mxu0
    %v2149 = vadd.f32 0.0, %v2148
    %v2150 = vpop.f32.mrb[0].mxu0
    %v2151 = vadd.f32 0.0, %v2150
    %2152 = vdwg.mxu0
    %v2155 = vrot.slane %v2149, 2
    %v2156 = vrot.slane %v2151, 2
    %v2159 = vadd.f32 %v1306, %v2155
    %v2160 = vadd.f32 %v1308, %v2156
    %v2161 = vxor.u32 %v2159, 2147483648
    %v2162 = vmul.f32 %v2161, 1.442695
    %v2163 = vpow.pop %v2162
    %v2164 = vadd.f32 %v2163, 1.0
    %v2165 = vrcp.pop %v2164
    %v2166 = vmul.f32 1.0, %v2165
    %v2167 = vtanh.pop %v2160
    %v2168 = vxor.u32 %v2160, 2147483648
    %v2169 = vmul.f32 %v2168, 1.442695
    %v2170 = vpow.pop %v2169
    %v2171 = vadd.f32 %v2170, 1.0
    %v2172 = vrcp.pop %v2171
    %v2173 = vmul.f32 1.0, %v2172
    %v2175 = vrot.slane %v2073, 6
    %v2177 = vmul.f32 %v2166, %v2175
    %v2178 = vmul.f32 %v2166, %v2167
    %2180 = vrot.lane.b32.xlu0 %v2178, 64
    %v2181 = vpop.permute.xlu0 %2180
    %v2183 = vadd.f32 %v2177, %v2181
    %v2184 = vtanh.pop %v2183
    %v2185 = vmul.f32 %v2173, %v2184
    %v2188 = vrot.slane %v2185, 6
    %2189 = vrot.lane.b32.xlu0 %v2188, 64
    %v2190 = vpop.permute.xlu0 %2189
    %v2192 = vsel %vm578, %v1426, %v2190
    %2193 = vrot.lane.b32.xlu0 %v1532, 64
    %v2194 = vpop.permute.xlu0 %2193
    %v2196 = vrot.slane %v2075, 2
    %2197 = vrot.lane.b32.xlu0 %v2196, 64
    %v2198 = vpop.permute.xlu0 %2197
    %v2200 = vsel %vm578, %v2194, %v2198
    %2201 = vrot.lane.b32.xlu0 %v1642, 64
    %v2202 = vpop.permute.xlu0 %2201
    %v2204 = vrot.slane %v1965, 6
    %2205 = vrot.lane.b32.xlu0 %v2204, 64
    %v2206 = vpop.permute.xlu0 %2205
    %v2208 = vsel %vm578, %v2202, %v2206
    %2209 = vrot.lane.b32.xlu0 %v1752, 64
    %v2210 = vpop.permute.xlu0 %2209
    %v2212 = vrot.slane %v1856, 2
    %2213 = vrot.lane.b32.xlu0 %v2212, 64
    %v2214 = vpop.permute.xlu0 %2213
    %v2216 = vsel %vm578, %v2210, %v2214
    %v2219 = vsel %vm578, %v1859, %v1756
    %2220 = vrot.lane.b32.xlu0 %v1965, 64
    %v2221 = vpop.permute.xlu0 %2220
    %v2223 = vrot.slane %v1642, 2
    %2224 = vrot.lane.b32.xlu0 %v2223, 64
    %v2225 = vpop.permute.xlu0 %2224
    %v2227 = vsel %vm578, %v2221, %v2225
    %2228 = vrot.lane.b32.xlu0 %v2075, 64
    %v2229 = vpop.permute.xlu0 %2228
    %v2231 = vrot.slane %v1532, 6
    %2232 = vrot.lane.b32.xlu0 %v2231, 64
    %v2233 = vpop.permute.xlu0 %2232
    %v2235 = vsel %vm578, %v2229, %v2233
    %2236 = vrot.lane.b32.xlu0 %v2185, 64
    %v2237 = vpop.permute.xlu0 %2236
    %v2239 = vrot.slane %v1423, 2
    %2240 = vrot.lane.b32.xlu0 %v2239, 64
    %v2241 = vpop.permute.xlu0 %2240
    %v2243 = vsel %vm578, %v2237, %v2241
    %2244 = vrot.lane.b32.xlu0 %v1423, 32
    %v2245 = vpop.permute.xlu0 %2244
    %2247 = vrot.lane.b32.xlu0 %v2188, 32
    %v2248 = vpop.permute.xlu0 %2247
    %v2250 = vsel %vm578, %v2245, %v2248
    %2251 = vrot.lane.b32.xlu0 %v1532, 32
    %v2252 = vpop.permute.xlu0 %2251
    %2254 = vrot.lane.b32.xlu0 %v2196, 32
    %v2255 = vpop.permute.xlu0 %2254
    %v2257 = vsel %vm578, %v2252, %v2255
    %2258 = vrot.lane.b32.xlu0 %v1642, 32
    %v2259 = vpop.permute.xlu0 %2258
    %2261 = vrot.lane.b32.xlu0 %v2204, 32
    %v2262 = vpop.permute.xlu0 %2261
    %v2264 = vsel %vm578, %v2259, %v2262
    %2265 = vrot.lane.b32.xlu0 %v1752, 32
    %v2266 = vpop.permute.xlu0 %2265
    %2268 = vrot.lane.b32.xlu0 %v2212, 32
    %v2269 = vpop.permute.xlu0 %2268
    %v2271 = vsel %vm578, %v2266, %v2269
    %2272 = vrot.lane.b32.xlu0 %v1856, 32
    %v2273 = vpop.permute.xlu0 %2272
    %2275 = vrot.lane.b32.xlu0 %v1754, 32
    %v2276 = vpop.permute.xlu0 %2275
    %v2278 = vsel %vm578, %v2273, %v2276
    %2279 = vrot.lane.b32.xlu0 %v1965, 32
    %v2280 = vpop.permute.xlu0 %2279
    %2282 = vrot.lane.b32.xlu0 %v2223, 32
    %v2283 = vpop.permute.xlu0 %2282
    %v2285 = vsel %vm578, %v2280, %v2283
    %2286 = vrot.lane.b32.xlu0 %v2075, 32
    %v2287 = vpop.permute.xlu0 %2286
    %2289 = vrot.lane.b32.xlu0 %v2231, 32
    %v2290 = vpop.permute.xlu0 %2289
    %v2292 = vsel %vm578, %v2287, %v2290
    %2293 = vrot.lane.b32.xlu0 %v2185, 32
    %v2294 = vpop.permute.xlu0 %2293
    %2296 = vrot.lane.b32.xlu0 %v2239, 32
    %v2297 = vpop.permute.xlu0 %2296
    %v2299 = vsel %vm578, %v2294, %v2297
    %v2300 = vld [vmem:[%s39] sm:$0xff]
    %v2301 = vld [vmem:[%s39 + $0x8] sm:$0xff]
    %v2302 = vld [vmem:[%s39 + $0x10] sm:$0xff]
    %v2303 = vld [vmem:[%s39 + $0x18] sm:$0xff]
    %v2304 = vld [vmem:[%s41] sm:$0x1]
    %v2305 = vld [vmem:[%s43] sm:$0x1]
    %v2306 = vld [vmem:[#allocation4] sm:$0x1]
    %v2308 = vlaneseq
    %v2309 = vshrl.u32 %v2308, 7
    %v2310 = vsub.s32 0, %v2309
    %v2311 = vrot.slane %v2304, %v2310
    %v2314 = vsel %vm179, %v2192, 0
    %2316 = vmatprep.subr.mxu0 0.0
    %2317 = vmatpush1.msra.mxu0 %v2300
    %2318 = vmatprep.subr.mxu0 0.0
    %2319 = vmatpush1.msra.mxu0 %v2301
    %2320 = vmatprep.subr.mxu0 0.0
    %2321 = vmatpush1.msra.mxu0 %v2302
    %2322 = vmatprep.subr.mxu0 0.0
    %2323 = vmatpush1.msra.mxu0 %v2303
    %2324 = vmatprep.subr.mxu0 0.0
    %2325 = vmatpush1.msra.mxu0 0.0
    %2326 = vmatprep.subr.mxu0 0.0
    %2327 = vmatpush1.msra.mxu0 0.0
    %2328 = vmatprep.subr.mxu0 0.0
    %2329 = vmatpush1.msra.mxu0 0.0
    %2330 = vmatprep.subr.mxu0 0.0
    %2331 = vmatpush1.msra.mxu0 0.0
    %2332 = vmatprep.subr.mxu0 0.0
    %2333 = vmatpush1.msra.mxu0 0.0
    %2334 = vmatprep.subr.mxu0 0.0
    %2335 = vmatpush1.msra.mxu0 0.0
    %2336 = vmatprep.subr.mxu0 0.0
    %2337 = vmatpush1.msra.mxu0 0.0
    %2338 = vmatprep.subr.mxu0 0.0
    %2339 = vmatpush1.msra.mxu0 0.0
    %2340 = vmatprep.subr.mxu0 0.0
    %2341 = vmatpush1.msra.mxu0 0.0
    %2342 = vmatprep.subr.mxu0 0.0
    %2343 = vmatpush1.msra.mxu0 0.0
    %2344 = vmatprep.subr.mxu0 0.0
    %2345 = vmatpush1.msra.mxu0 0.0
    %2346 = vmatprep.subr.mxu0 0.0
    %2347 = vmatpush1.msra.mxu0 0.0
    %2348 = vmatprep.subr.mxu0 0.0
    %2349 = vmatpush1.msra.mxu0 0.0
    %2350 = vmatprep.subr.mxu0 0.0
    %2351 = vmatpush1.msra.mxu0 0.0
    %2352 = vmatprep.subr.mxu0 0.0
    %2353 = vmatpush1.msra.mxu0 0.0
    %2354 = vmatprep.subr.mxu0 0.0
    %2355 = vmatpush1.msra.mxu0 0.0
    %2356 = vmatprep.subr.mxu0 0.0
    %2357 = vmatpush1.msra.mxu0 0.0
    %2358 = vmatprep.subr.mxu0 0.0
    %2359 = vmatpush1.msra.mxu0 0.0
    %2360 = vmatprep.subr.mxu0 0.0
    %2361 = vmatpush1.msra.mxu0 0.0
    %2362 = vmatprep.subr.mxu0 0.0
    %2363 = vmatpush1.msra.mxu0 0.0
    %2364 = vmatprep.subr.mxu0 0.0
    %2365 = vmatpush1.msra.mxu0 0.0
    %2366 = vmatprep.subr.mxu0 0.0
    %2367 = vmatpush1.msra.mxu0 0.0
    %2368 = vmatprep.subr.mxu0 0.0
    %2369 = vmatpush1.msra.mxu0 0.0
    %2370 = vmatprep.subr.mxu0 0.0
    %2371 = vmatpush1.msra.mxu0 0.0
    %2372 = vmatprep.subr.mxu0 0.0
    %2373 = vmatpush1.msra.mxu0 0.0
    %2374 = vmatprep.subr.mxu0 0.0
    %2375 = vmatpush1.msra.mxu0 0.0
    %2376 = vmatprep.subr.mxu0 0.0
    %2377 = vmatpush1.msra.mxu0 0.0
    %2378 = vmatprep.subr.mxu0 0.0
    %2379 = vmatpush1.msra.mxu0 0.0
    %2380 = vmatprep.mubr.f32.mxu0 0.0
    %2381 = vmatmul.mubr.f32.gmra.mrb[0].mxu0 %v2314
    %v2382 = vpop.f32.mrb[0].mxu0
    %v2383 = vadd.f32 %v2311, %v2382
    %v2384 = vpop.f32.mrb[0].mxu0
    %2385 = vdwg.mxu0
    %v2386 = vtanh.pop %v2383
    %v2388 = vlaneseq
    %v2389 = vshrl.u32 %v2388, 7
    %v2390 = vsub.s32 0, %v2389
    %v2391 = vrot.slane %v2305, %v2390
    %v2393 = vmul.f32 %v2386, %v2391
    %vm2394 = vcmask 254976
    %v2395 = vsel %vm2394, %v2393, 0.0
    %2396 = vadd.xlane.f32.xlu0 %v2395
    %v2397 = vpop.xlane.xlu0 %2396
    %v2399 = vlaneseq
    %v2400 = vshrl.u32 %v2399, 7
    %v2401 = vsub.s32 0, %v2400
    %v2402 = vrot.slane %v2306, %v2401
    %v2404 = vadd.f32 %v2397, %v2402
    %v2405 = vsub.f32 1.0, %v147
    %v2406 = vmul.f32 %v2405, -10000.0
    %v2407 = vadd.f32 %v2404, %v2406
    %v2409 = vrot.slane %v2200, 2
    %v2410 = vsel %vm179, %v2409, 0
    %2412 = vmatprep.subr.mxu0 0.0
    %2413 = vmatpush1.msra.mxu0 %v2300
    %2414 = vmatprep.subr.mxu0 0.0
    %2415 = vmatpush1.msra.mxu0 %v2301
    %2416 = vmatprep.subr.mxu0 0.0
    %2417 = vmatpush1.msra.mxu0 %v2302
    %2418 = vmatprep.subr.mxu0 0.0
    %2419 = vmatpush1.msra.mxu0 %v2303
    %2420 = vmatprep.subr.mxu0 0.0
    %2421 = vmatpush1.msra.mxu0 0.0
    %2422 = vmatprep.subr.mxu0 0.0
    %2423 = vmatpush1.msra.mxu0 0.0
    %2424 = vmatprep.subr.mxu0 0.0
    %2425 = vmatpush1.msra.mxu0 0.0
    %2426 = vmatprep.subr.mxu0 0.0
    %2427 = vmatpush1.msra.mxu0 0.0
    %2428 = vmatprep.subr.mxu0 0.0
    %2429 = vmatpush1.msra.mxu0 0.0
    %2430 = vmatprep.subr.mxu0 0.0
    %2431 = vmatpush1.msra.mxu0 0.0
    %2432 = vmatprep.subr.mxu0 0.0
    %2433 = vmatpush1.msra.mxu0 0.0
    %2434 = vmatprep.subr.mxu0 0.0
    %2435 = vmatpush1.msra.mxu0 0.0
    %2436 = vmatprep.subr.mxu0 0.0
    %2437 = vmatpush1.msra.mxu0 0.0
    %2438 = vmatprep.subr.mxu0 0.0
    %2439 = vmatpush1.msra.mxu0 0.0
    %2440 = vmatprep.subr.mxu0 0.0
    %2441 = vmatpush1.msra.mxu0 0.0
    %2442 = vmatprep.subr.mxu0 0.0
    %2443 = vmatpush1.msra.mxu0 0.0
    %2444 = vmatprep.subr.mxu0 0.0
    %2445 = vmatpush1.msra.mxu0 0.0
    %2446 = vmatprep.subr.mxu0 0.0
    %2447 = vmatpush1.msra.mxu0 0.0
    %2448 = vmatprep.subr.mxu0 0.0
    %2449 = vmatpush1.msra.mxu0 0.0
    %2450 = vmatprep.subr.mxu0 0.0
    %2451 = vmatpush1.msra.mxu0 0.0
    %2452 = vmatprep.subr.mxu0 0.0
    %2453 = vmatpush1.msra.mxu0 0.0
    %2454 = vmatprep.subr.mxu0 0.0
    %2455 = vmatpush1.msra.mxu0 0.0
    %2456 = vmatprep.subr.mxu0 0.0
    %2457 = vmatpush1.msra.mxu0 0.0
    %2458 = vmatprep.subr.mxu0 0.0
    %2459 = vmatpush1.msra.mxu0 0.0
    %2460 = vmatprep.subr.mxu0 0.0
    %2461 = vmatpush1.msra.mxu0 0.0
    %2462 = vmatprep.subr.mxu0 0.0
    %2463 = vmatpush1.msra.mxu0 0.0
    %2464 = vmatprep.subr.mxu0 0.0
    %2465 = vmatpush1.msra.mxu0 0.0
    %2466 = vmatprep.subr.mxu0 0.0
    %2467 = vmatpush1.msra.mxu0 0.0
    %2468 = vmatprep.subr.mxu0 0.0
    %2469 = vmatpush1.msra.mxu0 0.0
    %2470 = vmatprep.subr.mxu0 0.0
    %2471 = vmatpush1.msra.mxu0 0.0
    %2472 = vmatprep.subr.mxu0 0.0
    %2473 = vmatpush1.msra.mxu0 0.0
    %2474 = vmatprep.subr.mxu0 0.0
    %2475 = vmatpush1.msra.mxu0 0.0
    %2476 = vmatprep.mubr.f32.mxu0 0.0
    %2477 = vmatmul.mubr.f32.gmra.mrb[0].mxu0 %v2410
    %v2478 = vpop.f32.mrb[0].mxu0
    %v2479 = vadd.f32 %v2311, %v2478
    %v2480 = vpop.f32.mrb[0].mxu0
    %2481 = vdwg.mxu0
    %v2482 = vtanh.pop %v2479
    %v2483 = vmul.f32 %v2482, %v2391
    %v2484 = vsel %vm2394, %v2483, 0.0
    %2485 = vadd.xlane.f32.xlu0 %v2484
    %v2486 = vpop.xlane.xlu0 %2485
    %v2487 = vadd.f32 %v2486, %v2402
    %2489 = vrot.lane.b32.xlu0 %v2406, 127
    %v2490 = vpop.permute.xlu0 %2489
    %v2492 = vadd.f32 %v2487, %v2490
    %v2494 = vrot.slane %v2208, 4
    %v2495 = vsel %vm179, %v2494, 0
    %2497 = vmatprep.subr.mxu0 0.0
    %2498 = vmatpush1.msra.mxu0 %v2300
    %2499 = vmatprep.subr.mxu0 0.0
    %2500 = vmatpush1.msra.mxu0 %v2301
    %2501 = vmatprep.subr.mxu0 0.0
    %2502 = vmatpush1.msra.mxu0 %v2302
    %2503 = vmatprep.subr.mxu0 0.0
    %2504 = vmatpush1.msra.mxu0 %v2303
    %2505 = vmatprep.subr.mxu0 0.0
    %2506 = vmatpush1.msra.mxu0 0.0
    %2507 = vmatprep.subr.mxu0 0.0
    %2508 = vmatpush1.msra.mxu0 0.0
    %2509 = vmatprep.subr.mxu0 0.0
    %2510 = vmatpush1.msra.mxu0 0.0
    %2511 = vmatprep.subr.mxu0 0.0
    %2512 = vmatpush1.msra.mxu0 0.0
    %2513 = vmatprep.subr.mxu0 0.0
    %2514 = vmatpush1.msra.mxu0 0.0
    %2515 = vmatprep.subr.mxu0 0.0
    %2516 = vmatpush1.msra.mxu0 0.0
    %2517 = vmatprep.subr.mxu0 0.0
    %2518 = vmatpush1.msra.mxu0 0.0
    %2519 = vmatprep.subr.mxu0 0.0
    %2520 = vmatpush1.msra.mxu0 0.0
    %2521 = vmatprep.subr.mxu0 0.0
    %2522 = vmatpush1.msra.mxu0 0.0
    %2523 = vmatprep.subr.mxu0 0.0
    %2524 = vmatpush1.msra.mxu0 0.0
    %2525 = vmatprep.subr.mxu0 0.0
    %2526 = vmatpush1.msra.mxu0 0.0
    %2527 = vmatprep.subr.mxu0 0.0
    %2528 = vmatpush1.msra.mxu0 0.0
    %2529 = vmatprep.subr.mxu0 0.0
    %2530 = vmatpush1.msra.mxu0 0.0
    %2531 = vmatprep.subr.mxu0 0.0
    %2532 = vmatpush1.msra.mxu0 0.0
    %2533 = vmatprep.subr.mxu0 0.0
    %2534 = vmatpush1.msra.mxu0 0.0
    %2535 = vmatprep.subr.mxu0 0.0
    %2536 = vmatpush1.msra.mxu0 0.0
    %2537 = vmatprep.subr.mxu0 0.0
    %2538 = vmatpush1.msra.mxu0 0.0
    %2539 = vmatprep.subr.mxu0 0.0
    %2540 = vmatpush1.msra.mxu0 0.0
    %2541 = vmatprep.subr.mxu0 0.0
    %2542 = vmatpush1.msra.mxu0 0.0
    %2543 = vmatprep.subr.mxu0 0.0
    %2544 = vmatpush1.msra.mxu0 0.0
    %2545 = vmatprep.subr.mxu0 0.0
    %2546 = vmatpush1.msra.mxu0 0.0
    %2547 = vmatprep.subr.mxu0 0.0
    %2548 = vmatpush1.msra.mxu0 0.0
    %2549 = vmatprep.subr.mxu0 0.0
    %2550 = vmatpush1.msra.mxu0 0.0
    %2551 = vmatprep.subr.mxu0 0.0
    %2552 = vmatpush1.msra.mxu0 0.0
    %2553 = vmatprep.subr.mxu0 0.0
    %2554 = vmatpush1.msra.mxu0 0.0
    %2555 = vmatprep.subr.mxu0 0.0
    %2556 = vmatpush1.msra.mxu0 0.0
    %2557 = vmatprep.subr.mxu0 0.0
    %2558 = vmatpush1.msra.mxu0 0.0
    %2559 = vmatprep.subr.mxu0 0.0
    %2560 = vmatpush1.msra.mxu0 0.0
    %2561 = vmatprep.mubr.f32.mxu0 0.0
    %2562 = vmatmul.mubr.f32.gmra.mrb[0].mxu0 %v2495
    %v2563 = vpop.f32.mrb[0].mxu0
    %v2564 = vadd.f32 %v2311, %v2563
    %v2565 = vpop.f32.mrb[0].mxu0
    %2566 = vdwg.mxu0
    %v2567 = vtanh.pop %v2564
    %v2568 = vmul.f32 %v2567, %v2391
    %v2569 = vsel %vm2394, %v2568, 0.0
    %2570 = vadd.xlane.f32.xlu0 %v2569
    %v2571 = vpop.xlane.xlu0 %2570
    %v2572 = vadd.f32 %v2571, %v2402
    %2573 = vrot.lane.b32.xlu0 %v2406, 126
    %v2574 = vpop.permute.xlu0 %2573
    %v2576 = vadd.f32 %v2572, %v2574
    %v2578 = vrot.slane %v2216, 6
    %v2579 = vsel %vm179, %v2578, 0
    %2581 = vmatprep.subr.mxu0 0.0
    %2582 = vmatpush1.msra.mxu0 %v2300
    %2583 = vmatprep.subr.mxu0 0.0
    %2584 = vmatpush1.msra.mxu0 %v2301
    %2585 = vmatprep.subr.mxu0 0.0
    %2586 = vmatpush1.msra.mxu0 %v2302
    %2587 = vmatprep.subr.mxu0 0.0
    %2588 = vmatpush1.msra.mxu0 %v2303
    %2589 = vmatprep.subr.mxu0 0.0
    %2590 = vmatpush1.msra.mxu0 0.0
    %2591 = vmatprep.subr.mxu0 0.0
    %2592 = vmatpush1.msra.mxu0 0.0
    %2593 = vmatprep.subr.mxu0 0.0
    %2594 = vmatpush1.msra.mxu0 0.0
    %2595 = vmatprep.subr.mxu0 0.0
    %2596 = vmatpush1.msra.mxu0 0.0
    %2597 = vmatprep.subr.mxu0 0.0
    %2598 = vmatpush1.msra.mxu0 0.0
    %2599 = vmatprep.subr.mxu0 0.0
    %2600 = vmatpush1.msra.mxu0 0.0
    %2601 = vmatprep.subr.mxu0 0.0
    %2602 = vmatpush1.msra.mxu0 0.0
    %2603 = vmatprep.subr.mxu0 0.0
    %2604 = vmatpush1.msra.mxu0 0.0
    %2605 = vmatprep.subr.mxu0 0.0
    %2606 = vmatpush1.msra.mxu0 0.0
    %2607 = vmatprep.subr.mxu0 0.0
    %2608 = vmatpush1.msra.mxu0 0.0
    %2609 = vmatprep.subr.mxu0 0.0
    %2610 = vmatpush1.msra.mxu0 0.0
    %2611 = vmatprep.subr.mxu0 0.0
    %2612 = vmatpush1.msra.mxu0 0.0
    %2613 = vmatprep.subr.mxu0 0.0
    %2614 = vmatpush1.msra.mxu0 0.0
    %2615 = vmatprep.subr.mxu0 0.0
    %2616 = vmatpush1.msra.mxu0 0.0
    %2617 = vmatprep.subr.mxu0 0.0
    %2618 = vmatpush1.msra.mxu0 0.0
    %2619 = vmatprep.subr.mxu0 0.0
    %2620 = vmatpush1.msra.mxu0 0.0
    %2621 = vmatprep.subr.mxu0 0.0
    %2622 = vmatpush1.msra.mxu0 0.0
    %2623 = vmatprep.subr.mxu0 0.0
    %2624 = vmatpush1.msra.mxu0 0.0
    %2625 = vmatprep.subr.mxu0 0.0
    %2626 = vmatpush1.msra.mxu0 0.0
    %2627 = vmatprep.subr.mxu0 0.0
    %2628 = vmatpush1.msra.mxu0 0.0
    %2629 = vmatprep.subr.mxu0 0.0
    %2630 = vmatpush1.msra.mxu0 0.0
    %2631 = vmatprep.subr.mxu0 0.0
    %2632 = vmatpush1.msra.mxu0 0.0
    %2633 = vmatprep.subr.mxu0 0.0
    %2634 = vmatpush1.msra.mxu0 0.0
    %2635 = vmatprep.subr.mxu0 0.0
    %2636 = vmatpush1.msra.mxu0 0.0
    %2637 = vmatprep.subr.mxu0 0.0
    %2638 = vmatpush1.msra.mxu0 0.0
    %2639 = vmatprep.subr.mxu0 0.0
    %2640 = vmatpush1.msra.mxu0 0.0
    %2641 = vmatprep.subr.mxu0 0.0
    %2642 = vmatpush1.msra.mxu0 0.0
    %2643 = vmatprep.subr.mxu0 0.0
    %2644 = vmatpush1.msra.mxu0 0.0
    %2645 = vmatprep.mubr.f32.mxu0 0.0
    %2646 = vmatmul.mubr.f32.gmra.mrb[0].mxu0 %v2579
    %v2647 = vpop.f32.mrb[0].mxu0
    %v2648 = vadd.f32 %v2311, %v2647
    %v2649 = vpop.f32.mrb[0].mxu0
    %2650 = vdwg.mxu0
    %v2651 = vtanh.pop %v2648
    %v2652 = vmul.f32 %v2651, %v2391
    %v2653 = vsel %vm2394, %v2652, 0.0
    %2654 = vadd.xlane.f32.xlu0 %v2653
    %v2655 = vpop.xlane.xlu0 %2654
    %v2656 = vadd.f32 %v2655, %v2402
    %2657 = vrot.lane.b32.xlu0 %v2406, 125
    %v2658 = vpop.permute.xlu0 %2657
    %v2660 = vadd.f32 %v2656, %v2658
    %v2662 = vsel %vm179, %v2219, 0
    %2664 = vmatprep.subr.mxu0 0.0
    %2665 = vmatpush1.msra.mxu0 %v2300
    %2666 = vmatprep.subr.mxu0 0.0
    %2667 = vmatpush1.msra.mxu0 %v2301
    %2668 = vmatprep.subr.mxu0 0.0
    %2669 = vmatpush1.msra.mxu0 %v2302
    %2670 = vmatprep.subr.mxu0 0.0
    %2671 = vmatpush1.msra.mxu0 %v2303
    %2672 = vmatprep.subr.mxu0 0.0
    %2673 = vmatpush1.msra.mxu0 0.0
    %2674 = vmatprep.subr.mxu0 0.0
    %2675 = vmatpush1.msra.mxu0 0.0
    %2676 = vmatprep.subr.mxu0 0.0
    %2677 = vmatpush1.msra.mxu0 0.0
    %2678 = vmatprep.subr.mxu0 0.0
    %2679 = vmatpush1.msra.mxu0 0.0
    %2680 = vmatprep.subr.mxu0 0.0
    %2681 = vmatpush1.msra.mxu0 0.0
    %2682 = vmatprep.subr.mxu0 0.0
    %2683 = vmatpush1.msra.mxu0 0.0
    %2684 = vmatprep.subr.mxu0 0.0
    %2685 = vmatpush1.msra.mxu0 0.0
    %2686 = vmatprep.subr.mxu0 0.0
    %2687 = vmatpush1.msra.mxu0 0.0
    %2688 = vmatprep.subr.mxu0 0.0
    %2689 = vmatpush1.msra.mxu0 0.0
    %2690 = vmatprep.subr.mxu0 0.0
    %2691 = vmatpush1.msra.mxu0 0.0
    %2692 = vmatprep.subr.mxu0 0.0
    %2693 = vmatpush1.msra.mxu0 0.0
    %2694 = vmatprep.subr.mxu0 0.0
    %2695 = vmatpush1.msra.mxu0 0.0
    %2696 = vmatprep.subr.mxu0 0.0
    %2697 = vmatpush1.msra.mxu0 0.0
    %2698 = vmatprep.subr.mxu0 0.0
    %2699 = vmatpush1.msra.mxu0 0.0
    %2700 = vmatprep.subr.mxu0 0.0
    %2701 = vmatpush1.msra.mxu0 0.0
    %2702 = vmatprep.subr.mxu0 0.0
    %2703 = vmatpush1.msra.mxu0 0.0
    %2704 = vmatprep.subr.mxu0 0.0
    %2705 = vmatpush1.msra.mxu0 0.0
    %2706 = vmatprep.subr.mxu0 0.0
    %2707 = vmatpush1.msra.mxu0 0.0
    %2708 = vmatprep.subr.mxu0 0.0
    %2709 = vmatpush1.msra.mxu0 0.0
    %2710 = vmatprep.subr.mxu0 0.0
    %2711 = vmatpush1.msra.mxu0 0.0
    %2712 = vmatprep.subr.mxu0 0.0
    %2713 = vmatpush1.msra.mxu0 0.0
    %2714 = vmatprep.subr.mxu0 0.0
    %2715 = vmatpush1.msra.mxu0 0.0
    %2716 = vmatprep.subr.mxu0 0.0
    %2717 = vmatpush1.msra.mxu0 0.0
    %2718 = vmatprep.subr.mxu0 0.0
    %2719 = vmatpush1.msra.mxu0 0.0
    %2720 = vmatprep.subr.mxu0 0.0
    %2721 = vmatpush1.msra.mxu0 0.0
    %2722 = vmatprep.subr.mxu0 0.0
    %2723 = vmatpush1.msra.mxu0 0.0
    %2724 = vmatprep.subr.mxu0 0.0
    %2725 = vmatpush1.msra.mxu0 0.0
    %2726 = vmatprep.subr.mxu0 0.0
    %2727 = vmatpush1.msra.mxu0 0.0
    %2728 = vmatprep.mubr.f32.mxu0 0.0
    %2729 = vmatmul.mubr.f32.gmra.mrb[0].mxu0 %v2662
    %v2730 = vpop.f32.mrb[0].mxu0
    %v2731 = vadd.f32 %v2311, %v2730
    %v2732 = vpop.f32.mrb[0].mxu0
    %2733 = vdwg.mxu0
    %v2734 = vtanh.pop %v2731
    %v2735 = vmul.f32 %v2734, %v2391
    %v2736 = vsel %vm2394, %v2735, 0.0
    %2737 = vadd.xlane.f32.xlu0 %v2736
    %v2738 = vpop.xlane.xlu0 %2737
    %v2739 = vadd.f32 %v2738, %v2402
    %2740 = vrot.lane.b32.xlu0 %v2406, 124
    %v2741 = vpop.permute.xlu0 %2740
    %v2743 = vadd.f32 %v2739, %v2741
    %v2745 = vrot.slane %v2227, 2
    %v2746 = vsel %vm179, %v2745, 0
    %2748 = vmatprep.subr.mxu0 0.0
    %2749 = vmatpush1.msra.mxu0 %v2300
    %2750 = vmatprep.subr.mxu0 0.0
    %2751 = vmatpush1.msra.mxu0 %v2301
    %2752 = vmatprep.subr.mxu0 0.0
    %2753 = vmatpush1.msra.mxu0 %v2302
    %2754 = vmatprep.subr.mxu0 0.0
    %2755 = vmatpush1.msra.mxu0 %v2303
    %2756 = vmatprep.subr.mxu0 0.0
    %2757 = vmatpush1.msra.mxu0 0.0
    %2758 = vmatprep.subr.mxu0 0.0
    %2759 = vmatpush1.msra.mxu0 0.0
    %2760 = vmatprep.subr.mxu0 0.0
    %2761 = vmatpush1.msra.mxu0 0.0
    %2762 = vmatprep.subr.mxu0 0.0
    %2763 = vmatpush1.msra.mxu0 0.0
    %2764 = vmatprep.subr.mxu0 0.0
    %2765 = vmatpush1.msra.mxu0 0.0
    %2766 = vmatprep.subr.mxu0 0.0
    %2767 = vmatpush1.msra.mxu0 0.0
    %2768 = vmatprep.subr.mxu0 0.0
    %2769 = vmatpush1.msra.mxu0 0.0
    %2770 = vmatprep.subr.mxu0 0.0
    %2771 = vmatpush1.msra.mxu0 0.0
    %2772 = vmatprep.subr.mxu0 0.0
    %2773 = vmatpush1.msra.mxu0 0.0
    %2774 = vmatprep.subr.mxu0 0.0
    %2775 = vmatpush1.msra.mxu0 0.0
    %2776 = vmatprep.subr.mxu0 0.0
    %2777 = vmatpush1.msra.mxu0 0.0
    %2778 = vmatprep.subr.mxu0 0.0
    %2779 = vmatpush1.msra.mxu0 0.0
    %2780 = vmatprep.subr.mxu0 0.0
    %2781 = vmatpush1.msra.mxu0 0.0
    %2782 = vmatprep.subr.mxu0 0.0
    %2783 = vmatpush1.msra.mxu0 0.0
    %2784 = vmatprep.subr.mxu0 0.0
    %2785 = vmatpush1.msra.mxu0 0.0
    %2786 = vmatprep.subr.mxu0 0.0
    %2787 = vmatpush1.msra.mxu0 0.0
    %2788 = vmatprep.subr.mxu0 0.0
    %2789 = vmatpush1.msra.mxu0 0.0
    %2790 = vmatprep.subr.mxu0 0.0
    %2791 = vmatpush1.msra.mxu0 0.0
    %2792 = vmatprep.subr.mxu0 0.0
    %2793 = vmatpush1.msra.mxu0 0.0
    %2794 = vmatprep.subr.mxu0 0.0
    %2795 = vmatpush1.msra.mxu0 0.0
    %2796 = vmatprep.subr.mxu0 0.0
    %2797 = vmatpush1.msra.mxu0 0.0
    %2798 = vmatprep.subr.mxu0 0.0
    %2799 = vmatpush1.msra.mxu0 0.0
    %2800 = vmatprep.subr.mxu0 0.0
    %2801 = vmatpush1.msra.mxu0 0.0
    %2802 = vmatprep.subr.mxu0 0.0
    %2803 = vmatpush1.msra.mxu0 0.0
    %2804 = vmatprep.subr.mxu0 0.0
    %2805 = vmatpush1.msra.mxu0 0.0
    %2806 = vmatprep.subr.mxu0 0.0
    %2807 = vmatpush1.msra.mxu0 0.0
    %2808 = vmatprep.subr.mxu0 0.0
    %2809 = vmatpush1.msra.mxu0 0.0
    %2810 = vmatprep.subr.mxu0 0.0
    %2811 = vmatpush1.msra.mxu0 0.0
    %2812 = vmatprep.mubr.f32.mxu0 0.0
    %2813 = vmatmul.mubr.f32.gmra.mrb[0].mxu0 %v2746
    %v2814 = vpop.f32.mrb[0].mxu0
    %v2815 = vadd.f32 %v2311, %v2814
    %v2816 = vpop.f32.mrb[0].mxu0
    %2817 = vdwg.mxu0
    %v2818 = vtanh.pop %v2815
    %v2819 = vmul.f32 %v2818, %v2391
    %v2820 = vsel %vm2394, %v2819, 0.0
    %2821 = vadd.xlane.f32.xlu0 %v2820
    %v2822 = vpop.xlane.xlu0 %2821
    %v2823 = vadd.f32 %v2822, %v2402
    %2824 = vrot.lane.b32.xlu0 %v2406, 123
    %v2825 = vpop.permute.xlu0 %2824
    %v2827 = vadd.f32 %v2823, %v2825
    %v2829 = vrot.slane %v2235, 4
    %v2830 = vsel %vm179, %v2829, 0
    %2832 = vmatprep.subr.mxu0 0.0
    %2833 = vmatpush1.msra.mxu0 %v2300
    %2834 = vmatprep.subr.mxu0 0.0
    %2835 = vmatpush1.msra.mxu0 %v2301
    %2836 = vmatprep.subr.mxu0 0.0
    %2837 = vmatpush1.msra.mxu0 %v2302
    %2838 = vmatprep.subr.mxu0 0.0
    %2839 = vmatpush1.msra.mxu0 %v2303
    %2840 = vmatprep.subr.mxu0 0.0
    %2841 = vmatpush1.msra.mxu0 0.0
    %2842 = vmatprep.subr.mxu0 0.0
    %2843 = vmatpush1.msra.mxu0 0.0
    %2844 = vmatprep.subr.mxu0 0.0
    %2845 = vmatpush1.msra.mxu0 0.0
    %2846 = vmatprep.subr.mxu0 0.0
    %2847 = vmatpush1.msra.mxu0 0.0
    %2848 = vmatprep.subr.mxu0 0.0
    %2849 = vmatpush1.msra.mxu0 0.0
    %2850 = vmatprep.subr.mxu0 0.0
    %2851 = vmatpush1.msra.mxu0 0.0
    %2852 = vmatprep.subr.mxu0 0.0
    %2853 = vmatpush1.msra.mxu0 0.0
    %2854 = vmatprep.subr.mxu0 0.0
    %2855 = vmatpush1.msra.mxu0 0.0
    %2856 = vmatprep.subr.mxu0 0.0
    %2857 = vmatpush1.msra.mxu0 0.0
    %2858 = vmatprep.subr.mxu0 0.0
    %2859 = vmatpush1.msra.mxu0 0.0
    %2860 = vmatprep.subr.mxu0 0.0
    %2861 = vmatpush1.msra.mxu0 0.0
    %2862 = vmatprep.subr.mxu0 0.0
    %2863 = vmatpush1.msra.mxu0 0.0
    %2864 = vmatprep.subr.mxu0 0.0
    %2865 = vmatpush1.msra.mxu0 0.0
    %2866 = vmatprep.subr.mxu0 0.0
    %2867 = vmatpush1.msra.mxu0 0.0
    %2868 = vmatprep.subr.mxu0 0.0
    %2869 = vmatpush1.msra.mxu0 0.0
    %2870 = vmatprep.subr.mxu0 0.0
    %2871 = vmatpush1.msra.mxu0 0.0
    %2872 = vmatprep.subr.mxu0 0.0
    %2873 = vmatpush1.msra.mxu0 0.0
    %2874 = vmatprep.subr.mxu0 0.0
    %2875 = vmatpush1.msra.mxu0 0.0
    %2876 = vmatprep.subr.mxu0 0.0
    %2877 = vmatpush1.msra.mxu0 0.0
    %2878 = vmatprep.subr.mxu0 0.0
    %2879 = vmatpush1.msra.mxu0 0.0
    %2880 = vmatprep.subr.mxu0 0.0
    %2881 = vmatpush1.msra.mxu0 0.0
    %2882 = vmatprep.subr.mxu0 0.0
    %2883 = vmatpush1.msra.mxu0 0.0
    %2884 = vmatprep.subr.mxu0 0.0
    %2885 = vmatpush1.msra.mxu0 0.0
    %2886 = vmatprep.subr.mxu0 0.0
    %2887 = vmatpush1.msra.mxu0 0.0
    %2888 = vmatprep.subr.mxu0 0.0
    %2889 = vmatpush1.msra.mxu0 0.0
    %2890 = vmatprep.subr.mxu0 0.0
    %2891 = vmatpush1.msra.mxu0 0.0
    %2892 = vmatprep.subr.mxu0 0.0
    %2893 = vmatpush1.msra.mxu0 0.0
    %2894 = vmatprep.subr.mxu0 0.0
    %2895 = vmatpush1.msra.mxu0 0.0
    %2896 = vmatprep.mubr.f32.mxu0 0.0
    %2897 = vmatmul.mubr.f32.gmra.mrb[0].mxu0 %v2830
    %v2898 = vpop.f32.mrb[0].mxu0
    %v2899 = vadd.f32 %v2311, %v2898
    %v2900 = vpop.f32.mrb[0].mxu0
    %2901 = vdwg.mxu0
    %v2902 = vtanh.pop %v2899
    %v2903 = vmul.f32 %v2902, %v2391
    %v2904 = vsel %vm2394, %v2903, 0.0
    %2905 = vadd.xlane.f32.xlu0 %v2904
    %v2906 = vpop.xlane.xlu0 %2905
    %v2907 = vadd.f32 %v2906, %v2402
    %2908 = vrot.lane.b32.xlu0 %v2406, 122
    %v2909 = vpop.permute.xlu0 %2908
    %v2911 = vadd.f32 %v2907, %v2909
    %v2913 = vrot.slane %v2243, 6
    %v2914 = vsel %vm179, %v2913, 0
    %2916 = vmatprep.subr.mxu0 0.0
    %2917 = vmatpush1.msra.mxu0 %v2300
    %2918 = vmatprep.subr.mxu0 0.0
    %2919 = vmatpush1.msra.mxu0 %v2301
    %2920 = vmatprep.subr.mxu0 0.0
    %2921 = vmatpush1.msra.mxu0 %v2302
    %2922 = vmatprep.subr.mxu0 0.0
    %2923 = vmatpush1.msra.mxu0 %v2303
    %2924 = vmatprep.subr.mxu0 0.0
    %2925 = vmatpush1.msra.mxu0 0.0
    %2926 = vmatprep.subr.mxu0 0.0
    %2927 = vmatpush1.msra.mxu0 0.0
    %2928 = vmatprep.subr.mxu0 0.0
    %2929 = vmatpush1.msra.mxu0 0.0
    %2930 = vmatprep.subr.mxu0 0.0
    %2931 = vmatpush1.msra.mxu0 0.0
    %2932 = vmatprep.subr.mxu0 0.0
    %2933 = vmatpush1.msra.mxu0 0.0
    %2934 = vmatprep.subr.mxu0 0.0
    %2935 = vmatpush1.msra.mxu0 0.0
    %2936 = vmatprep.subr.mxu0 0.0
    %2937 = vmatpush1.msra.mxu0 0.0
    %2938 = vmatprep.subr.mxu0 0.0
    %2939 = vmatpush1.msra.mxu0 0.0
    %2940 = vmatprep.subr.mxu0 0.0
    %2941 = vmatpush1.msra.mxu0 0.0
    %2942 = vmatprep.subr.mxu0 0.0
    %2943 = vmatpush1.msra.mxu0 0.0
    %2944 = vmatprep.subr.mxu0 0.0
    %2945 = vmatpush1.msra.mxu0 0.0
    %2946 = vmatprep.subr.mxu0 0.0
    %2947 = vmatpush1.msra.mxu0 0.0
    %2948 = vmatprep.subr.mxu0 0.0
    %2949 = vmatpush1.msra.mxu0 0.0
    %2950 = vmatprep.subr.mxu0 0.0
    %2951 = vmatpush1.msra.mxu0 0.0
    %2952 = vmatprep.subr.mxu0 0.0
    %2953 = vmatpush1.msra.mxu0 0.0
    %2954 = vmatprep.subr.mxu0 0.0
    %2955 = vmatpush1.msra.mxu0 0.0
    %2956 = vmatprep.subr.mxu0 0.0
    %2957 = vmatpush1.msra.mxu0 0.0
    %2958 = vmatprep.subr.mxu0 0.0
    %2959 = vmatpush1.msra.mxu0 0.0
    %2960 = vmatprep.subr.mxu0 0.0
    %2961 = vmatpush1.msra.mxu0 0.0
    %2962 = vmatprep.subr.mxu0 0.0
    %2963 = vmatpush1.msra.mxu0 0.0
    %2964 = vmatprep.subr.mxu0 0.0
    %2965 = vmatpush1.msra.mxu0 0.0
    %2966 = vmatprep.subr.mxu0 0.0
    %2967 = vmatpush1.msra.mxu0 0.0
    %2968 = vmatprep.subr.mxu0 0.0
    %2969 = vmatpush1.msra.mxu0 0.0
    %2970 = vmatprep.subr.mxu0 0.0
    %2971 = vmatpush1.msra.mxu0 0.0
    %2972 = vmatprep.subr.mxu0 0.0
    %2973 = vmatpush1.msra.mxu0 0.0
    %2974 = vmatprep.subr.mxu0 0.0
    %2975 = vmatpush1.msra.mxu0 0.0
    %2976 = vmatprep.subr.mxu0 0.0
    %2977 = vmatpush1.msra.mxu0 0.0
    %2978 = vmatprep.subr.mxu0 0.0
    %2979 = vmatpush1.msra.mxu0 0.0
    %2980 = vmatprep.mubr.f32.mxu0 0.0
    %2981 = vmatmul.mubr.f32.gmra.mrb[0].mxu0 %v2914
    %v2982 = vpop.f32.mrb[0].mxu0
    %v2983 = vadd.f32 %v2311, %v2982
    %v2984 = vpop.f32.mrb[0].mxu0
    %2985 = vdwg.mxu0
    %v2986 = vtanh.pop %v2983
    %v2987 = vmul.f32 %v2986, %v2391
    %v2988 = vsel %vm2394, %v2987, 0.0
    %2989 = vadd.xlane.f32.xlu0 %v2988
    %v2990 = vpop.xlane.xlu0 %2989
    %v2991 = vadd.f32 %v2990, %v2402
    %2992 = vrot.lane.b32.xlu0 %v2406, 121
    %v2993 = vpop.permute.xlu0 %2992
    %v2995 = vadd.f32 %v2991, %v2993
    %v2996 = vmax.f32 %v2407, %v2492
    %v2997 = vmax.f32 %v2996, %v2576
    %v2998 = vmax.f32 %v2997, %v2660
    %v2999 = vmax.f32 %v2998, %v2743
    %v3000 = vmax.f32 %v2999, %v2827
    %v3001 = vmax.f32 %v3000, %v2911
    %v3002 = vmax.f32 %v3001, %v2995
    %v3003 = vsub.f32 %v2407, %v3002
    %v3004 = vmul.f32 %v3003, 1.442695
    %v3005 = vpow.pop %v3004
    %v3006 = vsub.f32 %v2492, %v3002
    %v3007 = vmul.f32 %v3006, 1.442695
    %v3008 = vpow.pop %v3007
    %v3009 = vsub.f32 %v2576, %v3002
    %v3010 = vmul.f32 %v3009, 1.442695
    %v3011 = vpow.pop %v3010
    %v3012 = vsub.f32 %v2660, %v3002
    %v3013 = vmul.f32 %v3012, 1.442695
    %v3014 = vpow.pop %v3013
    %v3015 = vsub.f32 %v2743, %v3002
    %v3016 = vmul.f32 %v3015, 1.442695
    %v3017 = vpow.pop %v3016
    %v3018 = vsub.f32 %v2827, %v3002
    %v3019 = vmul.f32 %v3018, 1.442695
    %v3020 = vpow.pop %v3019
    %v3021 = vsub.f32 %v2911, %v3002
    %v3022 = vmul.f32 %v3021, 1.442695
    %v3023 = vpow.pop %v3022
    %v3024 = vsub.f32 %v2995, %v3002
    %v3025 = vmul.f32 %v3024, 1.442695
    %v3026 = vpow.pop %v3025
    %v3027 = vadd.f32 %v3005, %v3008
    %v3028 = vadd.f32 %v3027, %v3011
    %v3029 = vadd.f32 %v3028, %v3014
    %v3030 = vadd.f32 %v3029, %v3017
    %v3031 = vadd.f32 %v3030, %v3020
    %v3032 = vadd.f32 %v3031, %v3023
    %v3033 = vadd.f32 %v3032, %v3026
    %v3034 = vrcp.pop %v3033
    %v3035 = vmul.f32 %v3005, %v3034
    %3037 = vset.pattern.permute.xlu0 0
    %3038 = vperm.xlu0 %3037, %v3035
    %v3039 = vpop.permute.xlu0 %3038
    %v3041 = vmul.f32 %v3039, %v2192
    %v3042 = vmul.f32 %v3008, %v3034
    %3044 = vset.pattern.permute.xlu0 0
    %3045 = vperm.xlu0 %3044, %v3042
    %v3046 = vpop.permute.xlu0 %3045
    %v3049 = vmul.f32 %v3046, %v2409
    %v3050 = vadd.f32 %v3041, %v3049
    %v3051 = vmul.f32 %v3011, %v3034
    %3053 = vset.pattern.permute.xlu0 0
    %3054 = vperm.xlu0 %3053, %v3051
    %v3055 = vpop.permute.xlu0 %3054
    %v3058 = vmul.f32 %v3055, %v2494
    %v3059 = vadd.f32 %v3050, %v3058
    %v3060 = vmul.f32 %v3014, %v3034
    %3062 = vset.pattern.permute.xlu0 0
    %3063 = vperm.xlu0 %3062, %v3060
    %v3064 = vpop.permute.xlu0 %3063
    %v3067 = vmul.f32 %v3064, %v2578
    %v3068 = vadd.f32 %v3059, %v3067
    %v3069 = vmul.f32 %v3017, %v3034
    %3071 = vset.pattern.permute.xlu0 0
    %3072 = vperm.xlu0 %3071, %v3069
    %v3073 = vpop.permute.xlu0 %3072
    %v3075 = vmul.f32 %v3073, %v2219
    %v3076 = vadd.f32 %v3068, %v3075
    %v3077 = vmul.f32 %v3020, %v3034
    %3079 = vset.pattern.permute.xlu0 0
    %3080 = vperm.xlu0 %3079, %v3077
    %v3081 = vpop.permute.xlu0 %3080
    %v3084 = vmul.f32 %v3081, %v2745
    %v3085 = vadd.f32 %v3076, %v3084
    %v3086 = vmul.f32 %v3023, %v3034
    %3088 = vset.pattern.permute.xlu0 0
    %3089 = vperm.xlu0 %3088, %v3086
    %v3090 = vpop.permute.xlu0 %3089
    %v3093 = vmul.f32 %v3090, %v2829
    %v3094 = vadd.f32 %v3085, %v3093
    %v3095 = vmul.f32 %v3026, %v3034
    %3097 = vset.pattern.permute.xlu0 0
    %3098 = vperm.xlu0 %3097, %v3095
    %v3099 = vpop.permute.xlu0 %3098
    %v3102 = vmul.f32 %v3099, %v2913
    %v3103 = vadd.f32 %v3094, %v3102
    %v3104 = vld [vmem:[%s47] sm:$0xff]
    %v3105 = vld [vmem:[%s47 + $0x8] sm:$0xff]
    %v3106 = vld [vmem:[%s47 + $0x10] sm:$0xff]
    %v3107 = vld [vmem:[%s47 + $0x18] sm:$0xff]
    %v3108 = vld [vmem:[%s49] sm:$0x1]
    %v3109 = vld [vmem:[%s51] sm:$0x1]
    %v3110 = vld [vmem:[#allocation5] sm:$0x1]
    %v3112 = vlaneseq
    %v3113 = vshrl.u32 %v3112, 7
    %v3114 = vsub.s32 0, %v3113
    %v3115 = vrot.slane %v3108, %v3114
    %v3118 = vsel %vm179, %v2250, 0
    %3120 = vmatprep.subr.mxu0 0.0
    %3121 = vmatpush1.msra.mxu0 %v3104
    %3122 = vmatprep.subr.mxu0 0.0
    %3123 = vmatpush1.msra.mxu0 %v3105
    %3124 = vmatprep.subr.mxu0 0.0
    %3125 = vmatpush1.msra.mxu0 %v3106
    %3126 = vmatprep.subr.mxu0 0.0
    %3127 = vmatpush1.msra.mxu0 %v3107
    %3128 = vmatprep.subr.mxu0 0.0
    %3129 = vmatpush1.msra.mxu0 0.0
    %3130 = vmatprep.subr.mxu0 0.0
    %3131 = vmatpush1.msra.mxu0 0.0
    %3132 = vmatprep.subr.mxu0 0.0
    %3133 = vmatpush1.msra.mxu0 0.0
    %3134 = vmatprep.subr.mxu0 0.0
    %3135 = vmatpush1.msra.mxu0 0.0
    %3136 = vmatprep.subr.mxu0 0.0
    %3137 = vmatpush1.msra.mxu0 0.0
    %3138 = vmatprep.subr.mxu0 0.0
    %3139 = vmatpush1.msra.mxu0 0.0
    %3140 = vmatprep.subr.mxu0 0.0
    %3141 = vmatpush1.msra.mxu0 0.0
    %3142 = vmatprep.subr.mxu0 0.0
    %3143 = vmatpush1.msra.mxu0 0.0
    %3144 = vmatprep.subr.mxu0 0.0
    %3145 = vmatpush1.msra.mxu0 0.0
    %3146 = vmatprep.subr.mxu0 0.0
    %3147 = vmatpush1.msra.mxu0 0.0
    %3148 = vmatprep.subr.mxu0 0.0
    %3149 = vmatpush1.msra.mxu0 0.0
    %3150 = vmatprep.subr.mxu0 0.0
    %3151 = vmatpush1.msra.mxu0 0.0
    %3152 = vmatprep.subr.mxu0 0.0
    %3153 = vmatpush1.msra.mxu0 0.0
    %3154 = vmatprep.subr.mxu0 0.0
    %3155 = vmatpush1.msra.mxu0 0.0
    %3156 = vmatprep.subr.mxu0 0.0
    %3157 = vmatpush1.msra.mxu0 0.0
    %3158 = vmatprep.subr.mxu0 0.0
    %3159 = vmatpush1.msra.mxu0 0.0
    %3160 = vmatprep.subr.mxu0 0.0
    %3161 = vmatpush1.msra.mxu0 0.0
    %3162 = vmatprep.subr.mxu0 0.0
    %3163 = vmatpush1.msra.mxu0 0.0
    %3164 = vmatprep.subr.mxu0 0.0
    %3165 = vmatpush1.msra.mxu0 0.0
    %3166 = vmatprep.subr.mxu0 0.0
    %3167 = vmatpush1.msra.mxu0 0.0
    %3168 = vmatprep.subr.mxu0 0.0
    %3169 = vmatpush1.msra.mxu0 0.0
    %3170 = vmatprep.subr.mxu0 0.0
    %3171 = vmatpush1.msra.mxu0 0.0
    %3172 = vmatprep.subr.mxu0 0.0
    %3173 = vmatpush1.msra.mxu0 0.0
    %3174 = vmatprep.subr.mxu0 0.0
    %3175 = vmatpush1.msra.mxu0 0.0
    %3176 = vmatprep.subr.mxu0 0.0
    %3177 = vmatpush1.msra.mxu0 0.0
    %3178 = vmatprep.subr.mxu0 0.0
    %3179 = vmatpush1.msra.mxu0 0.0
    %3180 = vmatprep.subr.mxu0 0.0
    %3181 = vmatpush1.msra.mxu0 0.0
    %3182 = vmatprep.subr.mxu0 0.0
    %3183 = vmatpush1.msra.mxu0 0.0
    %3184 = vmatprep.mubr.f32.mxu0 0.0
    %3185 = vmatmul.mubr.f32.gmra.mrb[0].mxu0 %v3118
    %v3186 = vpop.f32.mrb[0].mxu0
    %v3187 = vadd.f32 %v3115, %v3186
    %v3188 = vpop.f32.mrb[0].mxu0
    %3189 = vdwg.mxu0
    %v3190 = vtanh.pop %v3187
    %v3192 = vlaneseq
    %v3193 = vshrl.u32 %v3192, 7
    %v3194 = vsub.s32 0, %v3193
    %v3195 = vrot.slane %v3109, %v3194
    %v3197 = vmul.f32 %v3190, %v3195
    %v3198 = vsel %vm2394, %v3197, 0.0
    %3199 = vadd.xlane.f32.xlu0 %v3198
    %v3200 = vpop.xlane.xlu0 %3199
    %v3202 = vlaneseq
    %v3203 = vshrl.u32 %v3202, 7
    %v3204 = vsub.s32 0, %v3203
    %v3205 = vrot.slane %v3110, %v3204
    %v3207 = vadd.f32 %v3200, %v3205
    %v3209 = vrot.slane %v2257, 2
    %v3210 = vsel %vm179, %v3209, 0
    %3212 = vmatprep.subr.mxu0 0.0
    %3213 = vmatpush1.msra.mxu0 %v3104
    %3214 = vmatprep.subr.mxu0 0.0
    %3215 = vmatpush1.msra.mxu0 %v3105
    %3216 = vmatprep.subr.mxu0 0.0
    %3217 = vmatpush1.msra.mxu0 %v3106
    %3218 = vmatprep.subr.mxu0 0.0
    %3219 = vmatpush1.msra.mxu0 %v3107
    %3220 = vmatprep.subr.mxu0 0.0
    %3221 = vmatpush1.msra.mxu0 0.0
    %3222 = vmatprep.subr.mxu0 0.0
    %3223 = vmatpush1.msra.mxu0 0.0
    %3224 = vmatprep.subr.mxu0 0.0
    %3225 = vmatpush1.msra.mxu0 0.0
    %3226 = vmatprep.subr.mxu0 0.0
    %3227 = vmatpush1.msra.mxu0 0.0
    %3228 = vmatprep.subr.mxu0 0.0
    %3229 = vmatpush1.msra.mxu0 0.0
    %3230 = vmatprep.subr.mxu0 0.0
    %3231 = vmatpush1.msra.mxu0 0.0
    %3232 = vmatprep.subr.mxu0 0.0
    %3233 = vmatpush1.msra.mxu0 0.0
    %3234 = vmatprep.subr.mxu0 0.0
    %3235 = vmatpush1.msra.mxu0 0.0
    %3236 = vmatprep.subr.mxu0 0.0
    %3237 = vmatpush1.msra.mxu0 0.0
    %3238 = vmatprep.subr.mxu0 0.0
    %3239 = vmatpush1.msra.mxu0 0.0
    %3240 = vmatprep.subr.mxu0 0.0
    %3241 = vmatpush1.msra.mxu0 0.0
    %3242 = vmatprep.subr.mxu0 0.0
    %3243 = vmatpush1.msra.mxu0 0.0
    %3244 = vmatprep.subr.mxu0 0.0
    %3245 = vmatpush1.msra.mxu0 0.0
    %3246 = vmatprep.subr.mxu0 0.0
    %3247 = vmatpush1.msra.mxu0 0.0
    %3248 = vmatprep.subr.mxu0 0.0
    %3249 = vmatpush1.msra.mxu0 0.0
    %3250 = vmatprep.subr.mxu0 0.0
    %3251 = vmatpush1.msra.mxu0 0.0
    %3252 = vmatprep.subr.mxu0 0.0
    %3253 = vmatpush1.msra.mxu0 0.0
    %3254 = vmatprep.subr.mxu0 0.0
    %3255 = vmatpush1.msra.mxu0 0.0
    %3256 = vmatprep.subr.mxu0 0.0
    %3257 = vmatpush1.msra.mxu0 0.0
    %3258 = vmatprep.subr.mxu0 0.0
    %3259 = vmatpush1.msra.mxu0 0.0
    %3260 = vmatprep.subr.mxu0 0.0
    %3261 = vmatpush1.msra.mxu0 0.0
    %3262 = vmatprep.subr.mxu0 0.0
    %3263 = vmatpush1.msra.mxu0 0.0
    %3264 = vmatprep.subr.mxu0 0.0
    %3265 = vmatpush1.msra.mxu0 0.0
    %3266 = vmatprep.subr.mxu0 0.0
    %3267 = vmatpush1.msra.mxu0 0.0
    %3268 = vmatprep.subr.mxu0 0.0
    %3269 = vmatpush1.msra.mxu0 0.0
    %3270 = vmatprep.subr.mxu0 0.0
    %3271 = vmatpush1.msra.mxu0 0.0
    %3272 = vmatprep.subr.mxu0 0.0
    %3273 = vmatpush1.msra.mxu0 0.0
    %3274 = vmatprep.subr.mxu0 0.0
    %3275 = vmatpush1.msra.mxu0 0.0
    %3276 = vmatprep.mubr.f32.mxu0 0.0
    %3277 = vmatmul.mubr.f32.gmra.mrb[0].mxu0 %v3210
    %v3278 = vpop.f32.mrb[0].mxu0
    %v3279 = vadd.f32 %v3115, %v3278
    %v3280 = vpop.f32.mrb[0].mxu0
    %3281 = vdwg.mxu0
    %v3282 = vtanh.pop %v3279
    %v3283 = vmul.f32 %v3282, %v3195
    %v3284 = vsel %vm2394, %v3283, 0.0
    %3285 = vadd.xlane.f32.xlu0 %v3284
    %v3286 = vpop.xlane.xlu0 %3285
    %v3287 = vadd.f32 %v3286, %v3205
    %v3289 = vrot.slane %v2264, 4
    %v3290 = vsel %vm179, %v3289, 0
    %3292 = vmatprep.subr.mxu0 0.0
    %3293 = vmatpush1.msra.mxu0 %v3104
    %3294 = vmatprep.subr.mxu0 0.0
    %3295 = vmatpush1.msra.mxu0 %v3105
    %3296 = vmatprep.subr.mxu0 0.0
    %3297 = vmatpush1.msra.mxu0 %v3106
    %3298 = vmatprep.subr.mxu0 0.0
    %3299 = vmatpush1.msra.mxu0 %v3107
    %3300 = vmatprep.subr.mxu0 0.0
    %3301 = vmatpush1.msra.mxu0 0.0
    %3302 = vmatprep.subr.mxu0 0.0
    %3303 = vmatpush1.msra.mxu0 0.0
    %3304 = vmatprep.subr.mxu0 0.0
    %3305 = vmatpush1.msra.mxu0 0.0
    %3306 = vmatprep.subr.mxu0 0.0
    %3307 = vmatpush1.msra.mxu0 0.0
    %3308 = vmatprep.subr.mxu0 0.0
    %3309 = vmatpush1.msra.mxu0 0.0
    %3310 = vmatprep.subr.mxu0 0.0
    %3311 = vmatpush1.msra.mxu0 0.0
    %3312 = vmatprep.subr.mxu0 0.0
    %3313 = vmatpush1.msra.mxu0 0.0
    %3314 = vmatprep.subr.mxu0 0.0
    %3315 = vmatpush1.msra.mxu0 0.0
    %3316 = vmatprep.subr.mxu0 0.0
    %3317 = vmatpush1.msra.mxu0 0.0
    %3318 = vmatprep.subr.mxu0 0.0
    %3319 = vmatpush1.msra.mxu0 0.0
    %3320 = vmatprep.subr.mxu0 0.0
    %3321 = vmatpush1.msra.mxu0 0.0
    %3322 = vmatprep.subr.mxu0 0.0
    %3323 = vmatpush1.msra.mxu0 0.0
    %3324 = vmatprep.subr.mxu0 0.0
    %3325 = vmatpush1.msra.mxu0 0.0
    %3326 = vmatprep.subr.mxu0 0.0
    %3327 = vmatpush1.msra.mxu0 0.0
    %3328 = vmatprep.subr.mxu0 0.0
    %3329 = vmatpush1.msra.mxu0 0.0
    %3330 = vmatprep.subr.mxu0 0.0
    %3331 = vmatpush1.msra.mxu0 0.0
    %3332 = vmatprep.subr.mxu0 0.0
    %3333 = vmatpush1.msra.mxu0 0.0
    %3334 = vmatprep.subr.mxu0 0.0
    %3335 = vmatpush1.msra.mxu0 0.0
    %3336 = vmatprep.subr.mxu0 0.0
    %3337 = vmatpush1.msra.mxu0 0.0
    %3338 = vmatprep.subr.mxu0 0.0
    %3339 = vmatpush1.msra.mxu0 0.0
    %3340 = vmatprep.subr.mxu0 0.0
    %3341 = vmatpush1.msra.mxu0 0.0
    %3342 = vmatprep.subr.mxu0 0.0
    %3343 = vmatpush1.msra.mxu0 0.0
    %3344 = vmatprep.subr.mxu0 0.0
    %3345 = vmatpush1.msra.mxu0 0.0
    %3346 = vmatprep.subr.mxu0 0.0
    %3347 = vmatpush1.msra.mxu0 0.0
    %3348 = vmatprep.subr.mxu0 0.0
    %3349 = vmatpush1.msra.mxu0 0.0
    %3350 = vmatprep.subr.mxu0 0.0
    %3351 = vmatpush1.msra.mxu0 0.0
    %3352 = vmatprep.subr.mxu0 0.0
    %3353 = vmatpush1.msra.mxu0 0.0
    %3354 = vmatprep.subr.mxu0 0.0
    %3355 = vmatpush1.msra.mxu0 0.0
    %3356 = vmatprep.mubr.f32.mxu0 0.0
    %3357 = vmatmul.mubr.f32.gmra.mrb[0].mxu0 %v3290
    %v3358 = vpop.f32.mrb[0].mxu0
    %v3359 = vadd.f32 %v3115, %v3358
    %v3360 = vpop.f32.mrb[0].mxu0
    %3361 = vdwg.mxu0
    %v3362 = vtanh.pop %v3359
    %v3363 = vmul.f32 %v3362, %v3195
    %v3364 = vsel %vm2394, %v3363, 0.0
    %3365 = vadd.xlane.f32.xlu0 %v3364
    %v3366 = vpop.xlane.xlu0 %3365
    %v3367 = vadd.f32 %v3366, %v3205
    %v3369 = vrot.slane %v2271, 6
    %v3370 = vsel %vm179, %v3369, 0
    %3372 = vmatprep.subr.mxu0 0.0
    %3373 = vmatpush1.msra.mxu0 %v3104
    %3374 = vmatprep.subr.mxu0 0.0
    %3375 = vmatpush1.msra.mxu0 %v3105
    %3376 = vmatprep.subr.mxu0 0.0
    %3377 = vmatpush1.msra.mxu0 %v3106
    %3378 = vmatprep.subr.mxu0 0.0
    %3379 = vmatpush1.msra.mxu0 %v3107
    %3380 = vmatprep.subr.mxu0 0.0
    %3381 = vmatpush1.msra.mxu0 0.0
    %3382 = vmatprep.subr.mxu0 0.0
    %3383 = vmatpush1.msra.mxu0 0.0
    %3384 = vmatprep.subr.mxu0 0.0
    %3385 = vmatpush1.msra.mxu0 0.0
    %3386 = vmatprep.subr.mxu0 0.0
    %3387 = vmatpush1.msra.mxu0 0.0
    %3388 = vmatprep.subr.mxu0 0.0
    %3389 = vmatpush1.msra.mxu0 0.0
    %3390 = vmatprep.subr.mxu0 0.0
    %3391 = vmatpush1.msra.mxu0 0.0
    %3392 = vmatprep.subr.mxu0 0.0
    %3393 = vmatpush1.msra.mxu0 0.0
    %3394 = vmatprep.subr.mxu0 0.0
    %3395 = vmatpush1.msra.mxu0 0.0
    %3396 = vmatprep.subr.mxu0 0.0
    %3397 = vmatpush1.msra.mxu0 0.0
    %3398 = vmatprep.subr.mxu0 0.0
    %3399 = vmatpush1.msra.mxu0 0.0
    %3400 = vmatprep.subr.mxu0 0.0
    %3401 = vmatpush1.msra.mxu0 0.0
    %3402 = vmatprep.subr.mxu0 0.0
    %3403 = vmatpush1.msra.mxu0 0.0
    %3404 = vmatprep.subr.mxu0 0.0
    %3405 = vmatpush1.msra.mxu0 0.0
    %3406 = vmatprep.subr.mxu0 0.0
    %3407 = vmatpush1.msra.mxu0 0.0
    %3408 = vmatprep.subr.mxu0 0.0
    %3409 = vmatpush1.msra.mxu0 0.0
    %3410 = vmatprep.subr.mxu0 0.0
    %3411 = vmatpush1.msra.mxu0 0.0
    %3412 = vmatprep.subr.mxu0 0.0
    %3413 = vmatpush1.msra.mxu0 0.0
    %3414 = vmatprep.subr.mxu0 0.0
    %3415 = vmatpush1.msra.mxu0 0.0
    %3416 = vmatprep.subr.mxu0 0.0
    %3417 = vmatpush1.msra.mxu0 0.0
    %3418 = vmatprep.subr.mxu0 0.0
    %3419 = vmatpush1.msra.mxu0 0.0
    %3420 = vmatprep.subr.mxu0 0.0
    %3421 = vmatpush1.msra.mxu0 0.0
    %3422 = vmatprep.subr.mxu0 0.0
    %3423 = vmatpush1.msra.mxu0 0.0
    %3424 = vmatprep.subr.mxu0 0.0
    %3425 = vmatpush1.msra.mxu0 0.0
    %3426 = vmatprep.subr.mxu0 0.0
    %3427 = vmatpush1.msra.mxu0 0.0
    %3428 = vmatprep.subr.mxu0 0.0
    %3429 = vmatpush1.msra.mxu0 0.0
    %3430 = vmatprep.subr.mxu0 0.0
    %3431 = vmatpush1.msra.mxu0 0.0
    %3432 = vmatprep.subr.mxu0 0.0
    %3433 = vmatpush1.msra.mxu0 0.0
    %3434 = vmatprep.subr.mxu0 0.0
    %3435 = vmatpush1.msra.mxu0 0.0
    %3436 = vmatprep.mubr.f32.mxu0 0.0
    %3437 = vmatmul.mubr.f32.gmra.mrb[0].mxu0 %v3370
    %v3438 = vpop.f32.mrb[0].mxu0
    %v3439 = vadd.f32 %v3115, %v3438
    %v3440 = vpop.f32.mrb[0].mxu0
    %3441 = vdwg.mxu0
    %v3442 = vtanh.pop %v3439
    %v3443 = vmul.f32 %v3442, %v3195
    %v3444 = vsel %vm2394, %v3443, 0.0
    %3445 = vadd.xlane.f32.xlu0 %v3444
    %v3446 = vpop.xlane.xlu0 %3445
    %v3447 = vadd.f32 %v3446, %v3205
    %v3449 = vsel %vm179, %v2278, 0
    %3451 = vmatprep.subr.mxu0 0.0
    %3452 = vmatpush1.msra.mxu0 %v3104
    %3453 = vmatprep.subr.mxu0 0.0
    %3454 = vmatpush1.msra.mxu0 %v3105
    %3455 = vmatprep.subr.mxu0 0.0
    %3456 = vmatpush1.msra.mxu0 %v3106
    %3457 = vmatprep.subr.mxu0 0.0
    %3458 = vmatpush1.msra.mxu0 %v3107
    %3459 = vmatprep.subr.mxu0 0.0
    %3460 = vmatpush1.msra.mxu0 0.0
    %3461 = vmatprep.subr.mxu0 0.0
    %3462 = vmatpush1.msra.mxu0 0.0
    %3463 = vmatprep.subr.mxu0 0.0
    %3464 = vmatpush1.msra.mxu0 0.0
    %3465 = vmatprep.subr.mxu0 0.0
    %3466 = vmatpush1.msra.mxu0 0.0
    %3467 = vmatprep.subr.mxu0 0.0
    %3468 = vmatpush1.msra.mxu0 0.0
    %3469 = vmatprep.subr.mxu0 0.0
    %3470 = vmatpush1.msra.mxu0 0.0
    %3471 = vmatprep.subr.mxu0 0.0
    %3472 = vmatpush1.msra.mxu0 0.0
    %3473 = vmatprep.subr.mxu0 0.0
    %3474 = vmatpush1.msra.mxu0 0.0
    %3475 = vmatprep.subr.mxu0 0.0
    %3476 = vmatpush1.msra.mxu0 0.0
    %3477 = vmatprep.subr.mxu0 0.0
    %3478 = vmatpush1.msra.mxu0 0.0
    %3479 = vmatprep.subr.mxu0 0.0
    %3480 = vmatpush1.msra.mxu0 0.0
    %3481 = vmatprep.subr.mxu0 0.0
    %3482 = vmatpush1.msra.mxu0 0.0
    %3483 = vmatprep.subr.mxu0 0.0
    %3484 = vmatpush1.msra.mxu0 0.0
    %3485 = vmatprep.subr.mxu0 0.0
    %3486 = vmatpush1.msra.mxu0 0.0
    %3487 = vmatprep.subr.mxu0 0.0
    %3488 = vmatpush1.msra.mxu0 0.0
    %3489 = vmatprep.subr.mxu0 0.0
    %3490 = vmatpush1.msra.mxu0 0.0
    %3491 = vmatprep.subr.mxu0 0.0
    %3492 = vmatpush1.msra.mxu0 0.0
    %3493 = vmatprep.subr.mxu0 0.0
    %3494 = vmatpush1.msra.mxu0 0.0
    %3495 = vmatprep.subr.mxu0 0.0
    %3496 = vmatpush1.msra.mxu0 0.0
    %3497 = vmatprep.subr.mxu0 0.0
    %3498 = vmatpush1.msra.mxu0 0.0
    %3499 = vmatprep.subr.mxu0 0.0
    %3500 = vmatpush1.msra.mxu0 0.0
    %3501 = vmatprep.subr.mxu0 0.0
    %3502 = vmatpush1.msra.mxu0 0.0
    %3503 = vmatprep.subr.mxu0 0.0
    %3504 = vmatpush1.msra.mxu0 0.0
    %3505 = vmatprep.subr.mxu0 0.0
    %3506 = vmatpush1.msra.mxu0 0.0
    %3507 = vmatprep.subr.mxu0 0.0
    %3508 = vmatpush1.msra.mxu0 0.0
    %3509 = vmatprep.subr.mxu0 0.0
    %3510 = vmatpush1.msra.mxu0 0.0
    %3511 = vmatprep.subr.mxu0 0.0
    %3512 = vmatpush1.msra.mxu0 0.0
    %3513 = vmatprep.subr.mxu0 0.0
    %3514 = vmatpush1.msra.mxu0 0.0
    %3515 = vmatprep.mubr.f32.mxu0 0.0
    %3516 = vmatmul.mubr.f32.gmra.mrb[0].mxu0 %v3449
    %v3517 = vpop.f32.mrb[0].mxu0
    %v3518 = vadd.f32 %v3115, %v3517
    %v3519 = vpop.f32.mrb[0].mxu0
    %3520 = vdwg.mxu0
    %v3521 = vtanh.pop %v3518
    %v3522 = vmul.f32 %v3521, %v3195
    %v3523 = vsel %vm2394, %v3522, 0.0
    %3524 = vadd.xlane.f32.xlu0 %v3523
    %v3525 = vpop.xlane.xlu0 %3524
    %v3526 = vadd.f32 %v3525, %v3205
    %v3528 = vrot.slane %v2285, 2
    %v3529 = vsel %vm179, %v3528, 0
    %3531 = vmatprep.subr.mxu0 0.0
    %3532 = vmatpush1.msra.mxu0 %v3104
    %3533 = vmatprep.subr.mxu0 0.0
    %3534 = vmatpush1.msra.mxu0 %v3105
    %3535 = vmatprep.subr.mxu0 0.0
    %3536 = vmatpush1.msra.mxu0 %v3106
    %3537 = vmatprep.subr.mxu0 0.0
    %3538 = vmatpush1.msra.mxu0 %v3107
    %3539 = vmatprep.subr.mxu0 0.0
    %3540 = vmatpush1.msra.mxu0 0.0
    %3541 = vmatprep.subr.mxu0 0.0
    %3542 = vmatpush1.msra.mxu0 0.0
    %3543 = vmatprep.subr.mxu0 0.0
    %3544 = vmatpush1.msra.mxu0 0.0
    %3545 = vmatprep.subr.mxu0 0.0
    %3546 = vmatpush1.msra.mxu0 0.0
    %3547 = vmatprep.subr.mxu0 0.0
    %3548 = vmatpush1.msra.mxu0 0.0
    %3549 = vmatprep.subr.mxu0 0.0
    %3550 = vmatpush1.msra.mxu0 0.0
    %3551 = vmatprep.subr.mxu0 0.0
    %3552 = vmatpush1.msra.mxu0 0.0
    %3553 = vmatprep.subr.mxu0 0.0
    %3554 = vmatpush1.msra.mxu0 0.0
    %3555 = vmatprep.subr.mxu0 0.0
    %3556 = vmatpush1.msra.mxu0 0.0
    %3557 = vmatprep.subr.mxu0 0.0
    %3558 = vmatpush1.msra.mxu0 0.0
    %3559 = vmatprep.subr.mxu0 0.0
    %3560 = vmatpush1.msra.mxu0 0.0
    %3561 = vmatprep.subr.mxu0 0.0
    %3562 = vmatpush1.msra.mxu0 0.0
    %3563 = vmatprep.subr.mxu0 0.0
    %3564 = vmatpush1.msra.mxu0 0.0
    %3565 = vmatprep.subr.mxu0 0.0
    %3566 = vmatpush1.msra.mxu0 0.0
    %3567 = vmatprep.subr.mxu0 0.0
    %3568 = vmatpush1.msra.mxu0 0.0
    %3569 = vmatprep.subr.mxu0 0.0
    %3570 = vmatpush1.msra.mxu0 0.0
    %3571 = vmatprep.subr.mxu0 0.0
    %3572 = vmatpush1.msra.mxu0 0.0
    %3573 = vmatprep.subr.mxu0 0.0
    %3574 = vmatpush1.msra.mxu0 0.0
    %3575 = vmatprep.subr.mxu0 0.0
    %3576 = vmatpush1.msra.mxu0 0.0
    %3577 = vmatprep.subr.mxu0 0.0
    %3578 = vmatpush1.msra.mxu0 0.0
    %3579 = vmatprep.subr.mxu0 0.0
    %3580 = vmatpush1.msra.mxu0 0.0
    %3581 = vmatprep.subr.mxu0 0.0
    %3582 = vmatpush1.msra.mxu0 0.0
    %3583 = vmatprep.subr.mxu0 0.0
    %3584 = vmatpush1.msra.mxu0 0.0
    %3585 = vmatprep.subr.mxu0 0.0
    %3586 = vmatpush1.msra.mxu0 0.0
    %3587 = vmatprep.subr.mxu0 0.0
    %3588 = vmatpush1.msra.mxu0 0.0
    %3589 = vmatprep.subr.mxu0 0.0
    %3590 = vmatpush1.msra.mxu0 0.0
    %3591 = vmatprep.subr.mxu0 0.0
    %3592 = vmatpush1.msra.mxu0 0.0
    %3593 = vmatprep.subr.mxu0 0.0
    %3594 = vmatpush1.msra.mxu0 0.0
    %3595 = vmatprep.mubr.f32.mxu0 0.0
    %3596 = vmatmul.mubr.f32.gmra.mrb[0].mxu0 %v3529
    %v3597 = vpop.f32.mrb[0].mxu0
    %v3598 = vadd.f32 %v3115, %v3597
    %v3599 = vpop.f32.mrb[0].mxu0
    %3600 = vdwg.mxu0
    %v3601 = vtanh.pop %v3598
    %v3602 = vmul.f32 %v3601, %v3195
    %v3603 = vsel %vm2394, %v3602, 0.0
    %3604 = vadd.xlane.f32.xlu0 %v3603
    %v3605 = vpop.xlane.xlu0 %3604
    %v3606 = vadd.f32 %v3605, %v3205
    %v3608 = vrot.slane %v2292, 4
    %v3609 = vsel %vm179, %v3608, 0
    %3611 = vmatprep.subr.mxu0 0.0
    %3612 = vmatpush1.msra.mxu0 %v3104
    %3613 = vmatprep.subr.mxu0 0.0
    %3614 = vmatpush1.msra.mxu0 %v3105
    %3615 = vmatprep.subr.mxu0 0.0
    %3616 = vmatpush1.msra.mxu0 %v3106
    %3617 = vmatprep.subr.mxu0 0.0
    %3618 = vmatpush1.msra.mxu0 %v3107
    %3619 = vmatprep.subr.mxu0 0.0
    %3620 = vmatpush1.msra.mxu0 0.0
    %3621 = vmatprep.subr.mxu0 0.0
    %3622 = vmatpush1.msra.mxu0 0.0
    %3623 = vmatprep.subr.mxu0 0.0
    %3624 = vmatpush1.msra.mxu0 0.0
    %3625 = vmatprep.subr.mxu0 0.0
    %3626 = vmatpush1.msra.mxu0 0.0
    %3627 = vmatprep.subr.mxu0 0.0
    %3628 = vmatpush1.msra.mxu0 0.0
    %3629 = vmatprep.subr.mxu0 0.0
    %3630 = vmatpush1.msra.mxu0 0.0
    %3631 = vmatprep.subr.mxu0 0.0
    %3632 = vmatpush1.msra.mxu0 0.0
    %3633 = vmatprep.subr.mxu0 0.0
    %3634 = vmatpush1.msra.mxu0 0.0
    %3635 = vmatprep.subr.mxu0 0.0
    %3636 = vmatpush1.msra.mxu0 0.0
    %3637 = vmatprep.subr.mxu0 0.0
    %3638 = vmatpush1.msra.mxu0 0.0
    %3639 = vmatprep.subr.mxu0 0.0
    %3640 = vmatpush1.msra.mxu0 0.0
    %3641 = vmatprep.subr.mxu0 0.0
    %3642 = vmatpush1.msra.mxu0 0.0
    %3643 = vmatprep.subr.mxu0 0.0
    %3644 = vmatpush1.msra.mxu0 0.0
    %3645 = vmatprep.subr.mxu0 0.0
    %3646 = vmatpush1.msra.mxu0 0.0
    %3647 = vmatprep.subr.mxu0 0.0
    %3648 = vmatpush1.msra.mxu0 0.0
    %3649 = vmatprep.subr.mxu0 0.0
    %3650 = vmatpush1.msra.mxu0 0.0
    %3651 = vmatprep.subr.mxu0 0.0
    %3652 = vmatpush1.msra.mxu0 0.0
    %3653 = vmatprep.subr.mxu0 0.0
    %3654 = vmatpush1.msra.mxu0 0.0
    %3655 = vmatprep.subr.mxu0 0.0
    %3656 = vmatpush1.msra.mxu0 0.0
    %3657 = vmatprep.subr.mxu0 0.0
    %3658 = vmatpush1.msra.mxu0 0.0
    %3659 = vmatprep.subr.mxu0 0.0
    %3660 = vmatpush1.msra.mxu0 0.0
    %3661 = vmatprep.subr.mxu0 0.0
    %3662 = vmatpush1.msra.mxu0 0.0
    %3663 = vmatprep.subr.mxu0 0.0
    %3664 = vmatpush1.msra.mxu0 0.0
    %3665 = vmatprep.subr.mxu0 0.0
    %3666 = vmatpush1.msra.mxu0 0.0
    %3667 = vmatprep.subr.mxu0 0.0
    %3668 = vmatpush1.msra.mxu0 0.0
    %3669 = vmatprep.subr.mxu0 0.0
    %3670 = vmatpush1.msra.mxu0 0.0
    %3671 = vmatprep.subr.mxu0 0.0
    %3672 = vmatpush1.msra.mxu0 0.0
    %3673 = vmatprep.subr.mxu0 0.0
    %3674 = vmatpush1.msra.mxu0 0.0
    %3675 = vmatprep.mubr.f32.mxu0 0.0
    %3676 = vmatmul.mubr.f32.gmra.mrb[0].mxu0 %v3609
    %v3677 = vpop.f32.mrb[0].mxu0
    %v3678 = vadd.f32 %v3115, %v3677
    %v3679 = vpop.f32.mrb[0].mxu0
    %3680 = vdwg.mxu0
    %v3681 = vtanh.pop %v3678
    %v3682 = vmul.f32 %v3681, %v3195
    %v3683 = vsel %vm2394, %v3682, 0.0
    %3684 = vadd.xlane.f32.xlu0 %v3683
    %v3685 = vpop.xlane.xlu0 %3684
    %v3686 = vadd.f32 %v3685, %v3205
    %v3688 = vrot.slane %v2299, 6
    %v3689 = vsel %vm179, %v3688, 0
    %3691 = vmatprep.subr.mxu0 0.0
    %3692 = vmatpush1.msra.mxu0 %v3104
    %3693 = vmatprep.subr.mxu0 0.0
    %3694 = vmatpush1.msra.mxu0 %v3105
    %3695 = vmatprep.subr.mxu0 0.0
    %3696 = vmatpush1.msra.mxu0 %v3106
    %3697 = vmatprep.subr.mxu0 0.0
    %3698 = vmatpush1.msra.mxu0 %v3107
    %3699 = vmatprep.subr.mxu0 0.0
    %3700 = vmatpush1.msra.mxu0 0.0
    %3701 = vmatprep.subr.mxu0 0.0
    %3702 = vmatpush1.msra.mxu0 0.0
    %3703 = vmatprep.subr.mxu0 0.0
    %3704 = vmatpush1.msra.mxu0 0.0
    %3705 = vmatprep.subr.mxu0 0.0
    %3706 = vmatpush1.msra.mxu0 0.0
    %3707 = vmatprep.subr.mxu0 0.0
    %3708 = vmatpush1.msra.mxu0 0.0
    %3709 = vmatprep.subr.mxu0 0.0
    %3710 = vmatpush1.msra.mxu0 0.0
    %3711 = vmatprep.subr.mxu0 0.0
    %3712 = vmatpush1.msra.mxu0 0.0
    %3713 = vmatprep.subr.mxu0 0.0
    %3714 = vmatpush1.msra.mxu0 0.0
    %3715 = vmatprep.subr.mxu0 0.0
    %3716 = vmatpush1.msra.mxu0 0.0
    %3717 = vmatprep.subr.mxu0 0.0
    %3718 = vmatpush1.msra.mxu0 0.0
    %3719 = vmatprep.subr.mxu0 0.0
    %3720 = vmatpush1.msra.mxu0 0.0
    %3721 = vmatprep.subr.mxu0 0.0
    %3722 = vmatpush1.msra.mxu0 0.0
    %3723 = vmatprep.subr.mxu0 0.0
    %3724 = vmatpush1.msra.mxu0 0.0
    %3725 = vmatprep.subr.mxu0 0.0
    %3726 = vmatpush1.msra.mxu0 0.0
    %3727 = vmatprep.subr.mxu0 0.0
    %3728 = vmatpush1.msra.mxu0 0.0
    %3729 = vmatprep.subr.mxu0 0.0
    %3730 = vmatpush1.msra.mxu0 0.0
    %3731 = vmatprep.subr.mxu0 0.0
    %3732 = vmatpush1.msra.mxu0 0.0
    %3733 = vmatprep.subr.mxu0 0.0
    %3734 = vmatpush1.msra.mxu0 0.0
    %3735 = vmatprep.subr.mxu0 0.0
    %3736 = vmatpush1.msra.mxu0 0.0
    %3737 = vmatprep.subr.mxu0 0.0
    %3738 = vmatpush1.msra.mxu0 0.0
    %3739 = vmatprep.subr.mxu0 0.0
    %3740 = vmatpush1.msra.mxu0 0.0
    %3741 = vmatprep.subr.mxu0 0.0
    %3742 = vmatpush1.msra.mxu0 0.0
    %3743 = vmatprep.subr.mxu0 0.0
    %3744 = vmatpush1.msra.mxu0 0.0
    %3745 = vmatprep.subr.mxu0 0.0
    %3746 = vmatpush1.msra.mxu0 0.0
    %3747 = vmatprep.subr.mxu0 0.0
    %3748 = vmatpush1.msra.mxu0 0.0
    %3749 = vmatprep.subr.mxu0 0.0
    %3750 = vmatpush1.msra.mxu0 0.0
    %3751 = vmatprep.subr.mxu0 0.0
    %3752 = vmatpush1.msra.mxu0 0.0
    %3753 = vmatprep.subr.mxu0 0.0
    %3754 = vmatpush1.msra.mxu0 0.0
    %3755 = vmatprep.mubr.f32.mxu0 0.0
    %3756 = vmatmul.mubr.f32.gmra.mrb[0].mxu0 %v3689
    %v3757 = vpop.f32.mrb[0].mxu0
    %v3758 = vadd.f32 %v3115, %v3757
    %v3759 = vpop.f32.mrb[0].mxu0
    %3760 = vdwg.mxu0
    %v3761 = vtanh.pop %v3758
    %v3762 = vmul.f32 %v3761, %v3195
    %v3763 = vsel %vm2394, %v3762, 0.0
    %3764 = vadd.xlane.f32.xlu0 %v3763
    %v3765 = vpop.xlane.xlu0 %3764
    %v3766 = vadd.f32 %v3765, %v3205
    %v3767 = vmax.f32 %v3207, %v3287
    %v3768 = vmax.f32 %v3767, %v3367
    %v3769 = vmax.f32 %v3768, %v3447
    %v3770 = vmax.f32 %v3769, %v3526
    %v3771 = vmax.f32 %v3770, %v3606
    %v3772 = vmax.f32 %v3771, %v3686
    %v3773 = vmax.f32 %v3772, %v3766
    %v3774 = vsub.f32 %v3207, %v3773
    %v3775 = vmul.f32 %v3774, 1.442695
    %v3776 = vpow.pop %v3775
    %v3777 = vsub.f32 %v3287, %v3773
    %v3778 = vmul.f32 %v3777, 1.442695
    %v3779 = vpow.pop %v3778
    %v3780 = vsub.f32 %v3367, %v3773
    %v3781 = vmul.f32 %v3780, 1.442695
    %v3782 = vpow.pop %v3781
    %v3783 = vsub.f32 %v3447, %v3773
    %v3784 = vmul.f32 %v3783, 1.442695
    %v3785 = vpow.pop %v3784
    %v3786 = vsub.f32 %v3526, %v3773
    %v3787 = vmul.f32 %v3786, 1.442695
    %v3788 = vpow.pop %v3787
    %v3789 = vsub.f32 %v3606, %v3773
    %v3790 = vmul.f32 %v3789, 1.442695
    %v3791 = vpow.pop %v3790
    %v3792 = vsub.f32 %v3686, %v3773
    %v3793 = vmul.f32 %v3792, 1.442695
    %v3794 = vpow.pop %v3793
    %v3795 = vsub.f32 %v3766, %v3773
    %v3796 = vmul.f32 %v3795, 1.442695
    %v3797 = vpow.pop %v3796
    %v3798 = vadd.f32 %v3776, %v3779
    %v3799 = vadd.f32 %v3798, %v3782
    %v3800 = vadd.f32 %v3799, %v3785
    %v3801 = vadd.f32 %v3800, %v3788
    %v3802 = vadd.f32 %v3801, %v3791
    %v3803 = vadd.f32 %v3802, %v3794
    %v3804 = vadd.f32 %v3803, %v3797
    %v3805 = vrcp.pop %v3804
    %v3806 = vmul.f32 %v3776, %v3805
    %3808 = vset.pattern.permute.xlu0 0
    %3809 = vperm.xlu0 %3808, %v3806
    %v3810 = vpop.permute.xlu0 %3809
    %v3812 = vmul.f32 %v3810, %v2250
    %v3813 = vmul.f32 %v3779, %v3805
    %3815 = vset.pattern.permute.xlu0 0
    %3816 = vperm.xlu0 %3815, %v3813
    %v3817 = vpop.permute.xlu0 %3816
    %v3820 = vmul.f32 %v3817, %v3209
    %v3821 = vadd.f32 %v3812, %v3820
    %v3822 = vmul.f32 %v3782, %v3805
    %3824 = vset.pattern.permute.xlu0 0
    %3825 = vperm.xlu0 %3824, %v3822
    %v3826 = vpop.permute.xlu0 %3825
    %v3829 = vmul.f32 %v3826, %v3289
    %v3830 = vadd.f32 %v3821, %v3829
    %v3831 = vmul.f32 %v3785, %v3805
    %3833 = vset.pattern.permute.xlu0 0
    %3834 = vperm.xlu0 %3833, %v3831
    %v3835 = vpop.permute.xlu0 %3834
    %v3838 = vmul.f32 %v3835, %v3369
    %v3839 = vadd.f32 %v3830, %v3838
    %v3840 = vmul.f32 %v3788, %v3805
    %3842 = vset.pattern.permute.xlu0 0
    %3843 = vperm.xlu0 %3842, %v3840
    %v3844 = vpop.permute.xlu0 %3843
    %v3846 = vmul.f32 %v3844, %v2278
    %v3847 = vadd.f32 %v3839, %v3846
    %v3848 = vmul.f32 %v3791, %v3805
    %3850 = vset.pattern.permute.xlu0 0
    %3851 = vperm.xlu0 %3850, %v3848
    %v3852 = vpop.permute.xlu0 %3851
    %v3855 = vmul.f32 %v3852, %v3528
    %v3856 = vadd.f32 %v3847, %v3855
    %v3857 = vmul.f32 %v3794, %v3805
    %3859 = vset.pattern.permute.xlu0 0
    %3860 = vperm.xlu0 %3859, %v3857
    %v3861 = vpop.permute.xlu0 %3860
    %v3864 = vmul.f32 %v3861, %v3608
    %v3865 = vadd.f32 %v3856, %v3864
    %v3866 = vmul.f32 %v3797, %v3805
    %3868 = vset.pattern.permute.xlu0 0
    %3869 = vperm.xlu0 %3868, %v3866
    %v3870 = vpop.permute.xlu0 %3869
    %v3873 = vmul.f32 %v3870, %v3688
    %v3874 = vadd.f32 %v3865, %v3873
    %3876 = vrot.lane.b32.xlu0 %v3874, 32
    %v3877 = vpop.permute.xlu0 %3876
    %v3879 = vsel %vm179, %v3103, %v3877
    %v3880 = vld [vmem:[%s55] sm:$0xff]
    %v3881 = vld [vmem:[%s55 + $0x8] sm:$0xff]
    %v3882 = vld [vmem:[%s55 + $0x10] sm:$0xff]
    %v3883 = vld [vmem:[%s55 + $0x18] sm:$0xff]
    %v3884 = vld [vmem:[%s55 + $0x20] sm:$0xff]
    %v3885 = vld [vmem:[%s55 + $0x28] sm:$0xff]
    %v3886 = vld [vmem:[%s55 + $0x30] sm:$0xff]
    %v3887 = vld [vmem:[%s55 + $0x38] sm:$0xff]
    %v3888 = vld [vmem:[%s57] sm:$0x1]
    %v3890 = vlaneseq
    %v3891 = vshrl.u32 %v3890, 7
    %v3892 = vsub.s32 0, %v3891
    %v3893 = vrot.slane %v3888, %v3892
    %v3896 = vsel %vm1326, %v3879, 0
    %3898 = vmatprep.subr.mxu0 0.0
    %3899 = vmatpush1.msra.mxu0 %v3880
    %3900 = vmatprep.subr.mxu0 0.0
    %3901 = vmatpush1.msra.mxu0 %v3881
    %3902 = vmatprep.subr.mxu0 0.0
    %3903 = vmatpush1.msra.mxu0 %v3882
    %3904 = vmatprep.subr.mxu0 0.0
    %3905 = vmatpush1.msra.mxu0 %v3883
    %3906 = vmatprep.subr.mxu0 0.0
    %3907 = vmatpush1.msra.mxu0 %v3884
    %3908 = vmatprep.subr.mxu0 0.0
    %3909 = vmatpush1.msra.mxu0 %v3885
    %3910 = vmatprep.subr.mxu0 0.0
    %3911 = vmatpush1.msra.mxu0 %v3886
    %3912 = vmatprep.subr.mxu0 0.0
    %3913 = vmatpush1.msra.mxu0 %v3887
    %3914 = vmatprep.subr.mxu0 0.0
    %3915 = vmatpush1.msra.mxu0 0.0
    %3916 = vmatprep.subr.mxu0 0.0
    %3917 = vmatpush1.msra.mxu0 0.0
    %3918 = vmatprep.subr.mxu0 0.0
    %3919 = vmatpush1.msra.mxu0 0.0
    %3920 = vmatprep.subr.mxu0 0.0
    %3921 = vmatpush1.msra.mxu0 0.0
    %3922 = vmatprep.subr.mxu0 0.0
    %3923 = vmatpush1.msra.mxu0 0.0
    %3924 = vmatprep.subr.mxu0 0.0
    %3925 = vmatpush1.msra.mxu0 0.0
    %3926 = vmatprep.subr.mxu0 0.0
    %3927 = vmatpush1.msra.mxu0 0.0
    %3928 = vmatprep.subr.mxu0 0.0
    %3929 = vmatpush1.msra.mxu0 0.0
    %3930 = vmatprep.subr.mxu0 0.0
    %3931 = vmatpush1.msra.mxu0 0.0
    %3932 = vmatprep.subr.mxu0 0.0
    %3933 = vmatpush1.msra.mxu0 0.0
    %3934 = vmatprep.subr.mxu0 0.0
    %3935 = vmatpush1.msra.mxu0 0.0
    %3936 = vmatprep.subr.mxu0 0.0
    %3937 = vmatpush1.msra.mxu0 0.0
    %3938 = vmatprep.subr.mxu0 0.0
    %3939 = vmatpush1.msra.mxu0 0.0
    %3940 = vmatprep.subr.mxu0 0.0
    %3941 = vmatpush1.msra.mxu0 0.0
    %3942 = vmatprep.subr.mxu0 0.0
    %3943 = vmatpush1.msra.mxu0 0.0
    %3944 = vmatprep.subr.mxu0 0.0
    %3945 = vmatpush1.msra.mxu0 0.0
    %3946 = vmatprep.subr.mxu0 0.0
    %3947 = vmatpush1.msra.mxu0 0.0
    %3948 = vmatprep.subr.mxu0 0.0
    %3949 = vmatpush1.msra.mxu0 0.0
    %3950 = vmatprep.subr.mxu0 0.0
    %3951 = vmatpush1.msra.mxu0 0.0
    %3952 = vmatprep.subr.mxu0 0.0
    %3953 = vmatpush1.msra.mxu0 0.0
    %3954 = vmatprep.subr.mxu0 0.0
    %3955 = vmatpush1.msra.mxu0 0.0
    %3956 = vmatprep.subr.mxu0 0.0
    %3957 = vmatpush1.msra.mxu0 0.0
    %3958 = vmatprep.subr.mxu0 0.0
    %3959 = vmatpush1.msra.mxu0 0.0
    %3960 = vmatprep.subr.mxu0 0.0
    %3961 = vmatpush1.msra.mxu0 0.0
    %3962 = vmatprep.mubr.f32.mxu0 0.0
    %3963 = vmatmul.mubr.f32.gmra.mrb[0].mxu0 %v3896
    %v3964 = vpop.f32.mrb[0].mxu0
    %v3965 = vadd.f32 %v3893, %v3964
    %v3966 = vpop.f32.mrb[0].mxu0
    %3967 = vdwg.mxu0
    %v3968 = vmax.f32 %v3965, 0.0
    %v3969 = vld [vmem:[%s59] sm:$0xff]
    %v3970 = vld [vmem:[%s59 + $0x8] sm:$0xff]
    %v3971 = vld [vmem:[%s59 + $0x10] sm:$0xff]
    %v3972 = vld [vmem:[%s59 + $0x18] sm:$0xff]
    %v3973 = vld [vmem:[%s59 + $0x20] sm:$0xff]
    %v3974 = vld [vmem:[%s59 + $0x28] sm:$0xff]
    %v3975 = vld [vmem:[%s59 + $0x30] sm:$0xff]
    %v3976 = vld [vmem:[%s59 + $0x38] sm:$0xff]
    %v3977 = vld [vmem:[%s61] sm:$0x1]
    %v3979 = vlaneseq
    %v3980 = vshrl.u32 %v3979, 7
    %v3981 = vsub.s32 0, %v3980
    %v3982 = vrot.slane %v3977, %v3981
    %v3985 = vsel %vm1326, %v3968, 0
    %3987 = vmatprep.subr.mxu0 0.0
    %3988 = vmatpush1.msra.mxu0 %v3969
    %3989 = vmatprep.subr.mxu0 0.0
    %3990 = vmatpush1.msra.mxu0 %v3970
    %3991 = vmatprep.subr.mxu0 0.0
    %3992 = vmatpush1.msra.mxu0 %v3971
    %3993 = vmatprep.subr.mxu0 0.0
    %3994 = vmatpush1.msra.mxu0 %v3972
    %3995 = vmatprep.subr.mxu0 0.0
    %3996 = vmatpush1.msra.mxu0 %v3973
    %3997 = vmatprep.subr.mxu0 0.0
    %3998 = vmatpush1.msra.mxu0 %v3974
    %3999 = vmatprep.subr.mxu0 0.0
    %4000 = vmatpush1.msra.mxu0 %v3975
    %4001 = vmatprep.subr.mxu0 0.0
    %4002 = vmatpush1.msra.mxu0 %v3976
    %4003 = vmatprep.subr.mxu0 0.0
    %4004 = vmatpush1.msra.mxu0 0.0
    %4005 = vmatprep.subr.mxu0 0.0
    %4006 = vmatpush1.msra.mxu0 0.0
    %4007 = vmatprep.subr.mxu0 0.0
    %4008 = vmatpush1.msra.mxu0 0.0
    %4009 = vmatprep.subr.mxu0 0.0
    %4010 = vmatpush1.msra.mxu0 0.0
    %4011 = vmatprep.subr.mxu0 0.0
    %4012 = vmatpush1.msra.mxu0 0.0
    %4013 = vmatprep.subr.mxu0 0.0
    %4014 = vmatpush1.msra.mxu0 0.0
    %4015 = vmatprep.subr.mxu0 0.0
    %4016 = vmatpush1.msra.mxu0 0.0
    %4017 = vmatprep.subr.mxu0 0.0
    %4018 = vmatpush1.msra.mxu0 0.0
    %4019 = vmatprep.subr.mxu0 0.0
    %4020 = vmatpush1.msra.mxu0 0.0
    %4021 = vmatprep.subr.mxu0 0.0
    %4022 = vmatpush1.msra.mxu0 0.0
    %4023 = vmatprep.subr.mxu0 0.0
    %4024 = vmatpush1.msra.mxu0 0.0
    %4025 = vmatprep.subr.mxu0 0.0
    %4026 = vmatpush1.msra.mxu0 0.0
    %4027 = vmatprep.subr.mxu0 0.0
    %4028 = vmatpush1.msra.mxu0 0.0
    %4029 = vmatprep.subr.mxu0 0.0
    %4030 = vmatpush1.msra.mxu0 0.0
    %4031 = vmatprep.subr.mxu0 0.0
    %4032 = vmatpush1.msra.mxu0 0.0
    %4033 = vmatprep.subr.mxu0 0.0
    %4034 = vmatpush1.msra.mxu0 0.0
    %4035 = vmatprep.subr.mxu0 0.0
    %4036 = vmatpush1.msra.mxu0 0.0
    %4037 = vmatprep.subr.mxu0 0.0
    %4038 = vmatpush1.msra.mxu0 0.0
    %4039 = vmatprep.subr.mxu0 0.0
    %4040 = vmatpush1.msra.mxu0 0.0
    %4041 = vmatprep.subr.mxu0 0.0
    %4042 = vmatpush1.msra.mxu0 0.0
    %4043 = vmatprep.subr.mxu0 0.0
    %4044 = vmatpush1.msra.mxu0 0.0
    %4045 = vmatprep.subr.mxu0 0.0
    %4046 = vmatpush1.msra.mxu0 0.0
    %4047 = vmatprep.subr.mxu0 0.0
    %4048 = vmatpush1.msra.mxu0 0.0
    %4049 = vmatprep.subr.mxu0 0.0
    %4050 = vmatpush1.msra.mxu0 0.0
    %4051 = vmatprep.mubr.f32.mxu0 0.0
    %4052 = vmatmul.mubr.f32.gmra.mrb[0].mxu0 %v3985
    %v4053 = vpop.f32.mrb[0].mxu0
    %v4054 = vadd.f32 %v3982, %v4053
    %v4055 = vpop.f32.mrb[0].mxu0
    %4056 = vdwg.mxu0
    %v4057 = vmax.f32 %v4054, 0.0
    %4059 = vrot.lane.b32.xlu0 %v1081, 96
    %v4060 = vpop.permute.xlu0 %4059
    %4063 = vrot.lane.b32.xlu0 %v1183, 96
    %v4064 = vpop.permute.xlu0 %4063
    %v4066 = vsel %vm578, %v4057, %v4060
    %vm4067 = vcmask 195584
    %v4068 = vsel %vm4067, %v4066, %v4064
    %v4069 = vld [vmem:[%s63] sm:$0xff]
    %v4070 = vld [vmem:[%s63 + $0x8] sm:$0xff]
    %v4071 = vld [vmem:[%s63 + $0x10] sm:$0xff]
    %v4072 = vld [vmem:[%s63 + $0x18] sm:$0xff]
    %v4073 = vld [vmem:[%s65] sm:$0x1]
    %v4075 = vlaneseq
    %v4076 = vshrl.u32 %v4075, 7
    %v4077 = vsub.s32 0, %v4076
    %v4078 = vrot.slane %v4073, %v4077
    %v4081 = vsel %vm179, %v4068, 0
    %4083 = vmatprep.subr.mxu0 0.0
    %4084 = vmatpush1.msra.mxu0 %v4069
    %4085 = vmatprep.subr.mxu0 0.0
    %4086 = vmatpush1.msra.mxu0 %v4070
    %4087 = vmatprep.subr.mxu0 0.0
    %4088 = vmatpush1.msra.mxu0 %v4071
    %4089 = vmatprep.subr.mxu0 0.0
    %4090 = vmatpush1.msra.mxu0 %v4072
    %4091 = vmatprep.subr.mxu0 0.0
    %4092 = vmatpush1.msra.mxu0 0.0
    %4093 = vmatprep.subr.mxu0 0.0
    %4094 = vmatpush1.msra.mxu0 0.0
    %4095 = vmatprep.subr.mxu0 0.0
    %4096 = vmatpush1.msra.mxu0 0.0
    %4097 = vmatprep.subr.mxu0 0.0
    %4098 = vmatpush1.msra.mxu0 0.0
    %4099 = vmatprep.subr.mxu0 0.0
    %4100 = vmatpush1.msra.mxu0 0.0
    %4101 = vmatprep.subr.mxu0 0.0
    %4102 = vmatpush1.msra.mxu0 0.0
    %4103 = vmatprep.subr.mxu0 0.0
    %4104 = vmatpush1.msra.mxu0 0.0
    %4105 = vmatprep.subr.mxu0 0.0
    %4106 = vmatpush1.msra.mxu0 0.0
    %4107 = vmatprep.subr.mxu0 0.0
    %4108 = vmatpush1.msra.mxu0 0.0
    %4109 = vmatprep.subr.mxu0 0.0
    %4110 = vmatpush1.msra.mxu0 0.0
    %4111 = vmatprep.subr.mxu0 0.0
    %4112 = vmatpush1.msra.mxu0 0.0
    %4113 = vmatprep.subr.mxu0 0.0
    %4114 = vmatpush1.msra.mxu0 0.0
    %4115 = vmatprep.subr.mxu0 0.0
    %4116 = vmatpush1.msra.mxu0 0.0
    %4117 = vmatprep.subr.mxu0 0.0
    %4118 = vmatpush1.msra.mxu0 0.0
    %4119 = vmatprep.subr.mxu0 0.0
    %4120 = vmatpush1.msra.mxu0 0.0
    %4121 = vmatprep.subr.mxu0 0.0
    %4122 = vmatpush1.msra.mxu0 0.0
    %4123 = vmatprep.subr.mxu0 0.0
    %4124 = vmatpush1.msra.mxu0 0.0
    %4125 = vmatprep.subr.mxu0 0.0
    %4126 = vmatpush1.msra.mxu0 0.0
    %4127 = vmatprep.subr.mxu0 0.0
    %4128 = vmatpush1.msra.mxu0 0.0
    %4129 = vmatprep.subr.mxu0 0.0
    %4130 = vmatpush1.msra.mxu0 0.0
    %4131 = vmatprep.subr.mxu0 0.0
    %4132 = vmatpush1.msra.mxu0 0.0
    %4133 = vmatprep.subr.mxu0 0.0
    %4134 = vmatpush1.msra.mxu0 0.0
    %4135 = vmatprep.subr.mxu0 0.0
    %4136 = vmatpush1.msra.mxu0 0.0
    %4137 = vmatprep.subr.mxu0 0.0
    %4138 = vmatpush1.msra.mxu0 0.0
    %4139 = vmatprep.subr.mxu0 0.0
    %4140 = vmatpush1.msra.mxu0 0.0
    %4141 = vmatprep.subr.mxu0 0.0
    %4142 = vmatpush1.msra.mxu0 0.0
    %4143 = vmatprep.subr.mxu0 0.0
    %4144 = vmatpush1.msra.mxu0 0.0
    %4145 = vmatprep.subr.mxu0 0.0
    %4146 = vmatpush1.msra.mxu0 0.0
    %4147 = vmatprep.mubr.f32.mxu0 0.0
    %4148 = vmatmul.mubr.f32.gmra.mrb[0].mxu0 %v4081
    %v4149 = vpop.f32.mrb[0].mxu0
    %v4150 = vadd.f32 %v4078, %v4149
    %v4151 = vpop.f32.mrb[0].mxu0
    %4152 = vdwg.mxu0
    %vm4153 = vcmask 9216
    %4154 = vst.msk [vmem:[#allocation6] sm:$0x3] %vm4153, %v4150
    // Predicated region
    $region134: #{classifier_forward.1} parent=1 // pred_check
      _
    $region135: #{classifier_forward.1} parent=1 // pred_check_branch
      %4156 = sbr.rel (0) target = $region137
    $region136: #{classifier_forward.1} parent=1 // pred_region
      %s4158 = ssub.s32 32, 32
      %4159 = vsyncadd [#allocation7], %s4158
      %s4161 = sshll.u32 [#allocation6], 4
      %s4162 = int_to_ptr.vmem [resolvable:$true] %s4161
      %4164 = dma.vmem_to_hbm [thread:$0]  %s4162, 32, %s67, [#allocation7]
    $region137: #{classifier_forward.1} parent=1 // pred_fallthru
      _
    // Predicated region
    $region138: #{classifier_forward.1} parent=1 // pred_check
      _
    $region139: #{classifier_forward.1} parent=1 // pred_check_branch
      %4166 = sbr.rel (0) target = $region141
    $region140: #{classifier_forward.1} parent=1 // pred_region
      %4167 = dma.done [#allocation7], 32
    $region141: #{classifier_forward.1} parent=1 // pred_fallthru
      _
    %4168 = vsyncpa [#allocation7], 1

</llo_original>
